<compile_context>
chip_gen: v6e
topology: v6e:2x2x1
jax: 0.10.0
libtpu: 0.0.40
codegen_flags: <defaults>
</compile_context>

<pallas_src>
import numpy as np
import jax
import jax.numpy as jnp
from jax.experimental import pallas as pl
from jax.experimental.pallas import tpu as pltpu

# ------------------------- model hyper-parameters -------------------------
EMBED_DIM = 32
OUTPUT_SIZE = 10
VOCAB_SIZE = 128256
NUM_FILTERS = 100          # logical Conv1d out-channels
KERNEL_SIZES = (3, 4, 5)   # num_convs = 3 -> k in [3, 4, 5]
C_PAD = 128                # filters padded to a full lane width
OUT_PAD = 128              # lane-dense padded logits width

BATCH = 2
SEQ = 8


# ------------------------------ Pallas kernel ------------------------------
def textcnn_kernel(ids_ref,                     # SMEM (B*S,) int32 token ids (scalar prefetch)
                   emb_ref,                     # HBM  (V, E)  f32 embedding table
                   w3_ref, b3_ref,              # (3, E, Cp) bf16, (1, Cp) f32
                   w4_ref, b4_ref,              # (4, E, Cp) bf16, (1, Cp) f32
                   w5_ref, b5_ref,              # (5, E, Cp) bf16, (1, Cp) f32
                   f3_ref, f4_ref, f5_ref,      # (Cp, OUT_PAD) bf16 fc slices (pre-split/transposed)
                   fb_ref,                      # (1, OUT_PAD) f32 fc bias
                   o_ref,                       # (B, OUT_PAD) f32 logits
                   x_buf, sem):                 # scratch: VMEM (B*S, E) f32, DMA sems (B*S,)
    n_rows, E = x_buf.shape
    B = o_ref.shape[0]
    S = n_rows // B

    # ---- fused embedding gather: one HBM row-DMA per token, single wait-all ----
    copies = []
    for t in range(n_rows):
        cp = pltpu.make_async_copy(emb_ref.at[pl.ds(ids_ref[t], 1)],   # (1, E) row in HBM
                                   x_buf.at[pl.ds(t, 1)],              # (1, E) slot in VMEM
                                   sem.at[t])
        cp.start()
        copies.append(cp)
    for cp in copies:
        cp.wait()

    # bf16 operands for the MXU, f32 accumulation everywhere.
    x = x_buf[...].astype(jnp.bfloat16).reshape(B, S, E)               # (B, S, E)

    logits = fb_ref[...]                                               # (1, OUT_PAD) f32
    for w_ref, b_ref, f_ref in ((w3_ref, b3_ref, f3_ref),
                                (w4_ref, b4_ref, f4_ref),
                                (w5_ref, b5_ref, f5_ref)):
        k, _, C = w_ref.shape
        L = S - k + 1
        w = w_ref[...]                                                 # (k, E, C) hoisted load
        # Conv1d(E -> C, kernel k, valid padding): k shifted matmuls with the batch
        # folded into the M dimension:  (B*L, E) @ (E, C), accumulated in f32.
        acc = jnp.dot(x[:, 0:L, :].reshape(B * L, E), w[0],
                      preferred_element_type=jnp.float32)
        for j in range(1, k):
            acc = acc + jnp.dot(x[:, j:j + L, :].reshape(B * L, E), w[j],
                                preferred_element_type=jnp.float32)
        # dropout(p=0.1) is an inference no-op; bias is constant over time and relu is
        # monotone, so max-then-(bias+relu) == relu(bias+conv).max(time).
        m = jnp.max(acc.reshape(B, L, C), axis=1)                      # (B, C)
        feat = jnp.maximum(m + b_ref[...], 0.0)                        # (B, C) f32
        # fc weight was split per conv in prepare_params -> accumulate straight into
        # the logits (the feature concat from the PyTorch code disappears).
        logits = logits + jnp.dot(feat.astype(jnp.bfloat16), f_ref[...],
                                  preferred_element_type=jnp.float32)  # (B, OUT_PAD)
    o_ref[...] = logits                                                # one lane-dense store


# --------------------------- one-time parameter prep ---------------------------
def prepare_params(params):
    """Hoisted weight re-layout (done once, outside the per-call hot path)."""
    C, O = NUM_FILTERS, OUTPUT_SIZE
    prepped = {"embedding": params["embedding"].astype(jnp.float32)}   # stays in HBM
    for k in KERNEL_SIZES:
        w = params[f"conv{k}_w"]                                       # (C, E, k) torch layout
        b = params[f"conv{k}_b"]                                       # (C,)
        wt = jnp.transpose(w, (2, 1, 0))                               # (k, E, C)
        prepped[f"w{k}"] = jnp.pad(
            wt, ((0, 0), (0, 0), (0, C_PAD - C))).astype(jnp.bfloat16)  # (k, E, 128)
        prepped[f"b{k}"] = jnp.pad(b, (0, C_PAD - C)).reshape(1, C_PAD).astype(jnp.float32)
    fc_w, fc_b = params["fc_w"], params["fc_b"]                        # (O, 3C), (O,)
    for i, k in enumerate(KERNEL_SIZES):
        blk = fc_w[:, i * C:(i + 1) * C].T                             # (C, O)
        prepped[f"f{k}"] = jnp.pad(
            blk, ((0, C_PAD - C), (0, OUT_PAD - O))).astype(jnp.bfloat16)  # (128, 128)
    prepped["fb"] = jnp.pad(fc_b, (0, OUT_PAD - O)).reshape(1, OUT_PAD).astype(jnp.float32)
    return prepped


# --------------------------------- wrapper ---------------------------------
@jax.jit
def textcnn_forward(x_ids, prepped):
    """x_ids: (B, S) int32 token ids.  Returns (B, OUTPUT_SIZE) float32 logits."""
    B, S = x_ids.shape
    ids_flat = x_ids.reshape(B * S).astype(jnp.int32)

    out = pl.pallas_call(
        textcnn_kernel,
        out_shape=jax.ShapeDtypeStruct((B, OUT_PAD), jnp.float32),
        grid_spec=pltpu.PrefetchScalarGridSpec(
            num_scalar_prefetch=1,                 # token ids -> SMEM
            grid=(),                               # single invocation, no grid
            in_specs=[pl.BlockSpec(memory_space=pl.ANY)]                       # embedding (HBM)
                     + [pl.BlockSpec(memory_space=pltpu.MemorySpace.VMEM)] * 10,  # weights
            out_specs=pl.BlockSpec(memory_space=pltpu.MemorySpace.VMEM),
            scratch_shapes=[pltpu.VMEM((B * S, EMBED_DIM), jnp.float32),       # gathered rows
                            pltpu.SemaphoreType.DMA((B * S,))],
        ),
    )(ids_flat,
      prepped["embedding"],
      prepped["w3"], prepped["b3"],
      prepped["w4"], prepped["b4"],
      prepped["w5"], prepped["b5"],
      prepped["f3"], prepped["f4"], prepped["f5"],
      prepped["fb"])
    return out[:, :OUTPUT_SIZE]                                        # (B, O)


# ------------------------- pure-JAX reference (check) -------------------------
def reference_forward(x_ids, params):
    x = params["embedding"][x_ids].astype(jnp.float32)                 # (B, S, E)
    x_ncw = jnp.transpose(x, (0, 2, 1))                                # (B, E, S)
    feats = []
    for k in KERNEL_SIZES:
        w = params[f"conv{k}_w"]                                       # (C, E, k)
        b = params[f"conv{k}_b"]                                       # (C,)
        y = jax.lax.conv_general_dilated(
            x_ncw, w, window_strides=(1,), padding="VALID",
            dimension_numbers=("NCH", "OIH", "NCH"))                   # (B, C, L)
        y = y + b[None, :, None]
        y = jnp.maximum(y, 0.0)
        feats.append(jnp.max(y, axis=2))                               # (B, C)
    feats = jnp.concatenate(feats, axis=1)                             # (B, 3C)
    return feats @ params["fc_w"].T + params["fc_b"]                   # (B, O)


# ----------------------------------- main -----------------------------------
def init_params(key):
    E, C, O = EMBED_DIM, NUM_FILTERS, OUTPUT_SIZE
    ks = jax.random.split(key, 3 + 2 * len(KERNEL_SIZES))
    std = 0.02
    p = {
        "embedding": jax.random.normal(ks[0], (VOCAB_SIZE, E), jnp.float32) * std,
        "fc_w":      jax.random.normal(ks[1], (O, C * len(KERNEL_SIZES)), jnp.float32) * std,
        "fc_b":      jax.random.normal(ks[2], (O,), jnp.float32) * std,
    }
    for i, k in enumerate(KERNEL_SIZES):
        p[f"conv{k}_w"] = jax.random.normal(ks[3 + 2 * i], (C, E, k), jnp.float32) * std
        p[f"conv{k}_b"] = jax.random.normal(ks[4 + 2 * i], (C,), jnp.float32) * std
    return p


if __name__ == "__main__":
    key = jax.random.PRNGKey(0)
    k_param, k_x, k_y = jax.random.split(key, 3)
    params = init_params(k_param)
    prepped = prepare_params(params)          # one-time relayout, outside the hot path
    prepped = jax.block_until_ready(prepped)

    x_ids = jax.random.randint(k_x, (BATCH, SEQ), 0, VOCAB_SIZE, dtype=jnp.int32)
    y = jax.random.randint(k_y, (BATCH,), 0, OUTPUT_SIZE, dtype=jnp.int32)  # unused by forward

    out = textcnn_forward(x_ids, prepped)
    out = jax.block_until_ready(out)

    ref = reference_forward(x_ids, params)
    # bf16 matmul operands with f32 accumulation -> looser tolerance than pure f32.
    np.testing.assert_allclose(np.asarray(out), np.asarray(ref), rtol=2e-2, atol=5e-4)

    assert out.shape == (BATCH, OUTPUT_SIZE)
    print("KERNEL_OK")
</pallas_src>

<mosaic_0001>
module attributes {stable_mosaic.version = 11 : i64} {
  func.func @textcnn_kernel(%arg0: memref<16xi32, #tpu.memory_space<smem>>, %arg1: memref<128256x32xf32, #tpu.memory_space<any>>, %arg2: memref<3x32x128xbf16, #tpu.memory_space<vmem>>, %arg3: memref<1x128xf32, #tpu.memory_space<vmem>>, %arg4: memref<4x32x128xbf16, #tpu.memory_space<vmem>>, %arg5: memref<1x128xf32, #tpu.memory_space<vmem>>, %arg6: memref<5x32x128xbf16, #tpu.memory_space<vmem>>, %arg7: memref<1x128xf32, #tpu.memory_space<vmem>>, %arg8: memref<128x128xbf16, #tpu.memory_space<vmem>>, %arg9: memref<128x128xbf16, #tpu.memory_space<vmem>>, %arg10: memref<128x128xbf16, #tpu.memory_space<vmem>>, %arg11: memref<1x128xf32, #tpu.memory_space<vmem>>, %arg12: memref<2x128xf32, #tpu.memory_space<vmem>>, %arg13: memref<16x32xf32, #tpu.memory_space<vmem>>, %arg14: memref<16x!tpu.dma_semaphore, #tpu.memory_space<semaphore_mem>>) attributes {dimension_semantics = [], scalar_prefetch = 1 : i64, scratch_operands = 2 : i64, tpu.core_type = #tpu.core_type<tc>} {
    %c0 = arith.constant 0 : index
    %0 = memref.load %arg0[%c0] : memref<16xi32, #tpu.memory_space<smem>>
    %c0_i32 = arith.constant 0 : i32
    %c0_i32_0 = arith.constant 0 : i32
    %1 = tpu.memref_slice %arg1[%0, %c0_i32_0] : memref<128256x32xf32, #tpu.memory_space<any>> -> memref<1x32xf32, #tpu.memory_space<any>>
    %c0_i32_1 = arith.constant 0 : i32
    %c0_i32_2 = arith.constant 0 : i32
    %2 = tpu.memref_slice %arg13[%c0_i32_1, %c0_i32_2] : memref<16x32xf32, #tpu.memory_space<vmem>> -> memref<1x32xf32, #tpu.memory_space<vmem>>
    %3 = tpu.memref_slice %arg14[%c0_i32] : memref<16x!tpu.dma_semaphore, #tpu.memory_space<semaphore_mem>> -> memref<1x!tpu.dma_semaphore, #tpu.memory_space<semaphore_mem>>
    %4 = tpu.memref_squeeze %3 : memref<1x!tpu.dma_semaphore, #tpu.memory_space<semaphore_mem>> -> memref<!tpu.dma_semaphore, #tpu.memory_space<semaphore_mem>>
    tpu.enqueue_dma source(%1 : memref<1x32xf32, #tpu.memory_space<any>>) target(%2 : memref<1x32xf32, #tpu.memory_space<vmem>>) target_semaphore(%4 : memref<!tpu.dma_semaphore, #tpu.memory_space<semaphore_mem>>)
    %c1 = arith.constant 1 : index
    %5 = memref.load %arg0[%c1] : memref<16xi32, #tpu.memory_space<smem>>
    %c1_i32 = arith.constant 1 : i32
    %c0_i32_3 = arith.constant 0 : i32
    %6 = tpu.memref_slice %arg1[%5, %c0_i32_3] : memref<128256x32xf32, #tpu.memory_space<any>> -> memref<1x32xf32, #tpu.memory_space<any>>
    %c1_i32_4 = arith.constant 1 : i32
    %c0_i32_5 = arith.constant 0 : i32
    %7 = tpu.memref_slice %arg13[%c1_i32_4, %c0_i32_5] : memref<16x32xf32, #tpu.memory_space<vmem>> -> memref<1x32xf32, #tpu.memory_space<vmem>>
    %8 = tpu.memref_slice %arg14[%c1_i32] : memref<16x!tpu.dma_semaphore, #tpu.memory_space<semaphore_mem>> -> memref<1x!tpu.dma_semaphore, #tpu.memory_space<semaphore_mem>>
    %9 = tpu.memref_squeeze %8 : memref<1x!tpu.dma_semaphore, #tpu.memory_space<semaphore_mem>> -> memref<!tpu.dma_semaphore, #tpu.memory_space<semaphore_mem>>
    tpu.enqueue_dma source(%6 : memref<1x32xf32, #tpu.memory_space<any>>) target(%7 : memref<1x32xf32, #tpu.memory_space<vmem>>) target_semaphore(%9 : memref<!tpu.dma_semaphore, #tpu.memory_space<semaphore_mem>>)
    %c2 = arith.constant 2 : index
    %10 = memref.load %arg0[%c2] : memref<16xi32, #tpu.memory_space<smem>>
    %c2_i32 = arith.constant 2 : i32
    %c0_i32_6 = arith.constant 0 : i32
    %11 = tpu.memref_slice %arg1[%10, %c0_i32_6] : memref<128256x32xf32, #tpu.memory_space<any>> -> memref<1x32xf32, #tpu.memory_space<any>>
    %c2_i32_7 = arith.constant 2 : i32
    %c0_i32_8 = arith.constant 0 : i32
    %12 = tpu.memref_slice %arg13[%c2_i32_7, %c0_i32_8] : memref<16x32xf32, #tpu.memory_space<vmem>> -> memref<1x32xf32, #tpu.memory_space<vmem>>
    %13 = tpu.memref_slice %arg14[%c2_i32] : memref<16x!tpu.dma_semaphore, #tpu.memory_space<semaphore_mem>> -> memref<1x!tpu.dma_semaphore, #tpu.memory_space<semaphore_mem>>
    %14 = tpu.memref_squeeze %13 : memref<1x!tpu.dma_semaphore, #tpu.memory_space<semaphore_mem>> -> memref<!tpu.dma_semaphore, #tpu.memory_space<semaphore_mem>>
    tpu.enqueue_dma source(%11 : memref<1x32xf32, #tpu.memory_space<any>>) target(%12 : memref<1x32xf32, #tpu.memory_space<vmem>>) target_semaphore(%14 : memref<!tpu.dma_semaphore, #tpu.memory_space<semaphore_mem>>)
    %c3 = arith.constant 3 : index
    %15 = memref.load %arg0[%c3] : memref<16xi32, #tpu.memory_space<smem>>
    %c3_i32 = arith.constant 3 : i32
    %c0_i32_9 = arith.constant 0 : i32
    %16 = tpu.memref_slice %arg1[%15, %c0_i32_9] : memref<128256x32xf32, #tpu.memory_space<any>> -> memref<1x32xf32, #tpu.memory_space<any>>
    %c3_i32_10 = arith.constant 3 : i32
    %c0_i32_11 = arith.constant 0 : i32
    %17 = tpu.memref_slice %arg13[%c3_i32_10, %c0_i32_11] : memref<16x32xf32, #tpu.memory_space<vmem>> -> memref<1x32xf32, #tpu.memory_space<vmem>>
    %18 = tpu.memref_slice %arg14[%c3_i32] : memref<16x!tpu.dma_semaphore, #tpu.memory_space<semaphore_mem>> -> memref<1x!tpu.dma_semaphore, #tpu.memory_space<semaphore_mem>>
    %19 = tpu.memref_squeeze %18 : memref<1x!tpu.dma_semaphore, #tpu.memory_space<semaphore_mem>> -> memref<!tpu.dma_semaphore, #tpu.memory_space<semaphore_mem>>
    tpu.enqueue_dma source(%16 : memref<1x32xf32, #tpu.memory_space<any>>) target(%17 : memref<1x32xf32, #tpu.memory_space<vmem>>) target_semaphore(%19 : memref<!tpu.dma_semaphore, #tpu.memory_space<semaphore_mem>>)
    %c4 = arith.constant 4 : index
    %20 = memref.load %arg0[%c4] : memref<16xi32, #tpu.memory_space<smem>>
    %c4_i32 = arith.constant 4 : i32
    %c0_i32_12 = arith.constant 0 : i32
    %21 = tpu.memref_slice %arg1[%20, %c0_i32_12] : memref<128256x32xf32, #tpu.memory_space<any>> -> memref<1x32xf32, #tpu.memory_space<any>>
    %c4_i32_13 = arith.constant 4 : i32
    %c0_i32_14 = arith.constant 0 : i32
    %22 = tpu.memref_slice %arg13[%c4_i32_13, %c0_i32_14] : memref<16x32xf32, #tpu.memory_space<vmem>> -> memref<1x32xf32, #tpu.memory_space<vmem>>
    %23 = tpu.memref_slice %arg14[%c4_i32] : memref<16x!tpu.dma_semaphore, #tpu.memory_space<semaphore_mem>> -> memref<1x!tpu.dma_semaphore, #tpu.memory_space<semaphore_mem>>
    %24 = tpu.memref_squeeze %23 : memref<1x!tpu.dma_semaphore, #tpu.memory_space<semaphore_mem>> -> memref<!tpu.dma_semaphore, #tpu.memory_space<semaphore_mem>>
    tpu.enqueue_dma source(%21 : memref<1x32xf32, #tpu.memory_space<any>>) target(%22 : memref<1x32xf32, #tpu.memory_space<vmem>>) target_semaphore(%24 : memref<!tpu.dma_semaphore, #tpu.memory_space<semaphore_mem>>)
    %c5 = arith.constant 5 : index
    %25 = memref.load %arg0[%c5] : memref<16xi32, #tpu.memory_space<smem>>
    %c5_i32 = arith.constant 5 : i32
    %c0_i32_15 = arith.constant 0 : i32
    %26 = tpu.memref_slice %arg1[%25, %c0_i32_15] : memref<128256x32xf32, #tpu.memory_space<any>> -> memref<1x32xf32, #tpu.memory_space<any>>
    %c5_i32_16 = arith.constant 5 : i32
    %c0_i32_17 = arith.constant 0 : i32
    %27 = tpu.memref_slice %arg13[%c5_i32_16, %c0_i32_17] : memref<16x32xf32, #tpu.memory_space<vmem>> -> memref<1x32xf32, #tpu.memory_space<vmem>>
    %28 = tpu.memref_slice %arg14[%c5_i32] : memref<16x!tpu.dma_semaphore, #tpu.memory_space<semaphore_mem>> -> memref<1x!tpu.dma_semaphore, #tpu.memory_space<semaphore_mem>>
    %29 = tpu.memref_squeeze %28 : memref<1x!tpu.dma_semaphore, #tpu.memory_space<semaphore_mem>> -> memref<!tpu.dma_semaphore, #tpu.memory_space<semaphore_mem>>
    tpu.enqueue_dma source(%26 : memref<1x32xf32, #tpu.memory_space<any>>) target(%27 : memref<1x32xf32, #tpu.memory_space<vmem>>) target_semaphore(%29 : memref<!tpu.dma_semaphore, #tpu.memory_space<semaphore_mem>>)
    %c6 = arith.constant 6 : index
    %30 = memref.load %arg0[%c6] : memref<16xi32, #tpu.memory_space<smem>>
    %c6_i32 = arith.constant 6 : i32
    %c0_i32_18 = arith.constant 0 : i32
    %31 = tpu.memref_slice %arg1[%30, %c0_i32_18] : memref<128256x32xf32, #tpu.memory_space<any>> -> memref<1x32xf32, #tpu.memory_space<any>>
    %c6_i32_19 = arith.constant 6 : i32
    %c0_i32_20 = arith.constant 0 : i32
    %32 = tpu.memref_slice %arg13[%c6_i32_19, %c0_i32_20] : memref<16x32xf32, #tpu.memory_space<vmem>> -> memref<1x32xf32, #tpu.memory_space<vmem>>
    %33 = tpu.memref_slice %arg14[%c6_i32] : memref<16x!tpu.dma_semaphore, #tpu.memory_space<semaphore_mem>> -> memref<1x!tpu.dma_semaphore, #tpu.memory_space<semaphore_mem>>
    %34 = tpu.memref_squeeze %33 : memref<1x!tpu.dma_semaphore, #tpu.memory_space<semaphore_mem>> -> memref<!tpu.dma_semaphore, #tpu.memory_space<semaphore_mem>>
    tpu.enqueue_dma source(%31 : memref<1x32xf32, #tpu.memory_space<any>>) target(%32 : memref<1x32xf32, #tpu.memory_space<vmem>>) target_semaphore(%34 : memref<!tpu.dma_semaphore, #tpu.memory_space<semaphore_mem>>)
    %c7 = arith.constant 7 : index
    %35 = memref.load %arg0[%c7] : memref<16xi32, #tpu.memory_space<smem>>
    %c7_i32 = arith.constant 7 : i32
    %c0_i32_21 = arith.constant 0 : i32
    %36 = tpu.memref_slice %arg1[%35, %c0_i32_21] : memref<128256x32xf32, #tpu.memory_space<any>> -> memref<1x32xf32, #tpu.memory_space<any>>
    %c7_i32_22 = arith.constant 7 : i32
    %c0_i32_23 = arith.constant 0 : i32
    %37 = tpu.memref_slice %arg13[%c7_i32_22, %c0_i32_23] : memref<16x32xf32, #tpu.memory_space<vmem>> -> memref<1x32xf32, #tpu.memory_space<vmem>>
    %38 = tpu.memref_slice %arg14[%c7_i32] : memref<16x!tpu.dma_semaphore, #tpu.memory_space<semaphore_mem>> -> memref<1x!tpu.dma_semaphore, #tpu.memory_space<semaphore_mem>>
    %39 = tpu.memref_squeeze %38 : memref<1x!tpu.dma_semaphore, #tpu.memory_space<semaphore_mem>> -> memref<!tpu.dma_semaphore, #tpu.memory_space<semaphore_mem>>
    tpu.enqueue_dma source(%36 : memref<1x32xf32, #tpu.memory_space<any>>) target(%37 : memref<1x32xf32, #tpu.memory_space<vmem>>) target_semaphore(%39 : memref<!tpu.dma_semaphore, #tpu.memory_space<semaphore_mem>>)
    %c8 = arith.constant 8 : index
    %40 = memref.load %arg0[%c8] : memref<16xi32, #tpu.memory_space<smem>>
    %c8_i32 = arith.constant 8 : i32
    %c0_i32_24 = arith.constant 0 : i32
    %41 = tpu.memref_slice %arg1[%40, %c0_i32_24] : memref<128256x32xf32, #tpu.memory_space<any>> -> memref<1x32xf32, #tpu.memory_space<any>>
    %c8_i32_25 = arith.constant 8 : i32
    %c0_i32_26 = arith.constant 0 : i32
    %42 = tpu.memref_slice %arg13[%c8_i32_25, %c0_i32_26] : memref<16x32xf32, #tpu.memory_space<vmem>> -> memref<1x32xf32, #tpu.memory_space<vmem>>
    %43 = tpu.memref_slice %arg14[%c8_i32] : memref<16x!tpu.dma_semaphore, #tpu.memory_space<semaphore_mem>> -> memref<1x!tpu.dma_semaphore, #tpu.memory_space<semaphore_mem>>
    %44 = tpu.memref_squeeze %43 : memref<1x!tpu.dma_semaphore, #tpu.memory_space<semaphore_mem>> -> memref<!tpu.dma_semaphore, #tpu.memory_space<semaphore_mem>>
    tpu.enqueue_dma source(%41 : memref<1x32xf32, #tpu.memory_space<any>>) target(%42 : memref<1x32xf32, #tpu.memory_space<vmem>>) target_semaphore(%44 : memref<!tpu.dma_semaphore, #tpu.memory_space<semaphore_mem>>)
    %c9 = arith.constant 9 : index
    %45 = memref.load %arg0[%c9] : memref<16xi32, #tpu.memory_space<smem>>
    %c9_i32 = arith.constant 9 : i32
    %c0_i32_27 = arith.constant 0 : i32
    %46 = tpu.memref_slice %arg1[%45, %c0_i32_27] : memref<128256x32xf32, #tpu.memory_space<any>> -> memref<1x32xf32, #tpu.memory_space<any>>
    %c9_i32_28 = arith.constant 9 : i32
    %c0_i32_29 = arith.constant 0 : i32
    %47 = tpu.memref_slice %arg13[%c9_i32_28, %c0_i32_29] : memref<16x32xf32, #tpu.memory_space<vmem>> -> memref<1x32xf32, #tpu.memory_space<vmem>>
    %48 = tpu.memref_slice %arg14[%c9_i32] : memref<16x!tpu.dma_semaphore, #tpu.memory_space<semaphore_mem>> -> memref<1x!tpu.dma_semaphore, #tpu.memory_space<semaphore_mem>>
    %49 = tpu.memref_squeeze %48 : memref<1x!tpu.dma_semaphore, #tpu.memory_space<semaphore_mem>> -> memref<!tpu.dma_semaphore, #tpu.memory_space<semaphore_mem>>
    tpu.enqueue_dma source(%46 : memref<1x32xf32, #tpu.memory_space<any>>) target(%47 : memref<1x32xf32, #tpu.memory_space<vmem>>) target_semaphore(%49 : memref<!tpu.dma_semaphore, #tpu.memory_space<semaphore_mem>>)
    %c10 = arith.constant 10 : index
    %50 = memref.load %arg0[%c10] : memref<16xi32, #tpu.memory_space<smem>>
    %c10_i32 = arith.constant 10 : i32
    %c0_i32_30 = arith.constant 0 : i32
    %51 = tpu.memref_slice %arg1[%50, %c0_i32_30] : memref<128256x32xf32, #tpu.memory_space<any>> -> memref<1x32xf32, #tpu.memory_space<any>>
    %c10_i32_31 = arith.constant 10 : i32
    %c0_i32_32 = arith.constant 0 : i32
    %52 = tpu.memref_slice %arg13[%c10_i32_31, %c0_i32_32] : memref<16x32xf32, #tpu.memory_space<vmem>> -> memref<1x32xf32, #tpu.memory_space<vmem>>
    %53 = tpu.memref_slice %arg14[%c10_i32] : memref<16x!tpu.dma_semaphore, #tpu.memory_space<semaphore_mem>> -> memref<1x!tpu.dma_semaphore, #tpu.memory_space<semaphore_mem>>
    %54 = tpu.memref_squeeze %53 : memref<1x!tpu.dma_semaphore, #tpu.memory_space<semaphore_mem>> -> memref<!tpu.dma_semaphore, #tpu.memory_space<semaphore_mem>>
    tpu.enqueue_dma source(%51 : memref<1x32xf32, #tpu.memory_space<any>>) target(%52 : memref<1x32xf32, #tpu.memory_space<vmem>>) target_semaphore(%54 : memref<!tpu.dma_semaphore, #tpu.memory_space<semaphore_mem>>)
    %c11 = arith.constant 11 : index
    %55 = memref.load %arg0[%c11] : memref<16xi32, #tpu.memory_space<smem>>
    %c11_i32 = arith.constant 11 : i32
    %c0_i32_33 = arith.constant 0 : i32
    %56 = tpu.memref_slice %arg1[%55, %c0_i32_33] : memref<128256x32xf32, #tpu.memory_space<any>> -> memref<1x32xf32, #tpu.memory_space<any>>
    %c11_i32_34 = arith.constant 11 : i32
    %c0_i32_35 = arith.constant 0 : i32
    %57 = tpu.memref_slice %arg13[%c11_i32_34, %c0_i32_35] : memref<16x32xf32, #tpu.memory_space<vmem>> -> memref<1x32xf32, #tpu.memory_space<vmem>>
    %58 = tpu.memref_slice %arg14[%c11_i32] : memref<16x!tpu.dma_semaphore, #tpu.memory_space<semaphore_mem>> -> memref<1x!tpu.dma_semaphore, #tpu.memory_space<semaphore_mem>>
    %59 = tpu.memref_squeeze %58 : memref<1x!tpu.dma_semaphore, #tpu.memory_space<semaphore_mem>> -> memref<!tpu.dma_semaphore, #tpu.memory_space<semaphore_mem>>
    tpu.enqueue_dma source(%56 : memref<1x32xf32, #tpu.memory_space<any>>) target(%57 : memref<1x32xf32, #tpu.memory_space<vmem>>) target_semaphore(%59 : memref<!tpu.dma_semaphore, #tpu.memory_space<semaphore_mem>>)
    %c12 = arith.constant 12 : index
    %60 = memref.load %arg0[%c12] : memref<16xi32, #tpu.memory_space<smem>>
    %c12_i32 = arith.constant 12 : i32
    %c0_i32_36 = arith.constant 0 : i32
    %61 = tpu.memref_slice %arg1[%60, %c0_i32_36] : memref<128256x32xf32, #tpu.memory_space<any>> -> memref<1x32xf32, #tpu.memory_space<any>>
    %c12_i32_37 = arith.constant 12 : i32
    %c0_i32_38 = arith.constant 0 : i32
    %62 = tpu.memref_slice %arg13[%c12_i32_37, %c0_i32_38] : memref<16x32xf32, #tpu.memory_space<vmem>> -> memref<1x32xf32, #tpu.memory_space<vmem>>
    %63 = tpu.memref_slice %arg14[%c12_i32] : memref<16x!tpu.dma_semaphore, #tpu.memory_space<semaphore_mem>> -> memref<1x!tpu.dma_semaphore, #tpu.memory_space<semaphore_mem>>
    %64 = tpu.memref_squeeze %63 : memref<1x!tpu.dma_semaphore, #tpu.memory_space<semaphore_mem>> -> memref<!tpu.dma_semaphore, #tpu.memory_space<semaphore_mem>>
    tpu.enqueue_dma source(%61 : memref<1x32xf32, #tpu.memory_space<any>>) target(%62 : memref<1x32xf32, #tpu.memory_space<vmem>>) target_semaphore(%64 : memref<!tpu.dma_semaphore, #tpu.memory_space<semaphore_mem>>)
    %c13 = arith.constant 13 : index
    %65 = memref.load %arg0[%c13] : memref<16xi32, #tpu.memory_space<smem>>
    %c13_i32 = arith.constant 13 : i32
    %c0_i32_39 = arith.constant 0 : i32
    %66 = tpu.memref_slice %arg1[%65, %c0_i32_39] : memref<128256x32xf32, #tpu.memory_space<any>> -> memref<1x32xf32, #tpu.memory_space<any>>
    %c13_i32_40 = arith.constant 13 : i32
    %c0_i32_41 = arith.constant 0 : i32
    %67 = tpu.memref_slice %arg13[%c13_i32_40, %c0_i32_41] : memref<16x32xf32, #tpu.memory_space<vmem>> -> memref<1x32xf32, #tpu.memory_space<vmem>>
    %68 = tpu.memref_slice %arg14[%c13_i32] : memref<16x!tpu.dma_semaphore, #tpu.memory_space<semaphore_mem>> -> memref<1x!tpu.dma_semaphore, #tpu.memory_space<semaphore_mem>>
    %69 = tpu.memref_squeeze %68 : memref<1x!tpu.dma_semaphore, #tpu.memory_space<semaphore_mem>> -> memref<!tpu.dma_semaphore, #tpu.memory_space<semaphore_mem>>
    tpu.enqueue_dma source(%66 : memref<1x32xf32, #tpu.memory_space<any>>) target(%67 : memref<1x32xf32, #tpu.memory_space<vmem>>) target_semaphore(%69 : memref<!tpu.dma_semaphore, #tpu.memory_space<semaphore_mem>>)
    %c14 = arith.constant 14 : index
    %70 = memref.load %arg0[%c14] : memref<16xi32, #tpu.memory_space<smem>>
    %c14_i32 = arith.constant 14 : i32
    %c0_i32_42 = arith.constant 0 : i32
    %71 = tpu.memref_slice %arg1[%70, %c0_i32_42] : memref<128256x32xf32, #tpu.memory_space<any>> -> memref<1x32xf32, #tpu.memory_space<any>>
    %c14_i32_43 = arith.constant 14 : i32
    %c0_i32_44 = arith.constant 0 : i32
    %72 = tpu.memref_slice %arg13[%c14_i32_43, %c0_i32_44] : memref<16x32xf32, #tpu.memory_space<vmem>> -> memref<1x32xf32, #tpu.memory_space<vmem>>
    %73 = tpu.memref_slice %arg14[%c14_i32] : memref<16x!tpu.dma_semaphore, #tpu.memory_space<semaphore_mem>> -> memref<1x!tpu.dma_semaphore, #tpu.memory_space<semaphore_mem>>
    %74 = tpu.memref_squeeze %73 : memref<1x!tpu.dma_semaphore, #tpu.memory_space<semaphore_mem>> -> memref<!tpu.dma_semaphore, #tpu.memory_space<semaphore_mem>>
    tpu.enqueue_dma source(%71 : memref<1x32xf32, #tpu.memory_space<any>>) target(%72 : memref<1x32xf32, #tpu.memory_space<vmem>>) target_semaphore(%74 : memref<!tpu.dma_semaphore, #tpu.memory_space<semaphore_mem>>)
    %c15 = arith.constant 15 : index
    %75 = memref.load %arg0[%c15] : memref<16xi32, #tpu.memory_space<smem>>
    %c15_i32 = arith.constant 15 : i32
    %c0_i32_45 = arith.constant 0 : i32
    %76 = tpu.memref_slice %arg1[%75, %c0_i32_45] : memref<128256x32xf32, #tpu.memory_space<any>> -> memref<1x32xf32, #tpu.memory_space<any>>
    %c15_i32_46 = arith.constant 15 : i32
    %c0_i32_47 = arith.constant 0 : i32
    %77 = tpu.memref_slice %arg13[%c15_i32_46, %c0_i32_47] : memref<16x32xf32, #tpu.memory_space<vmem>> -> memref<1x32xf32, #tpu.memory_space<vmem>>
    %78 = tpu.memref_slice %arg14[%c15_i32] : memref<16x!tpu.dma_semaphore, #tpu.memory_space<semaphore_mem>> -> memref<1x!tpu.dma_semaphore, #tpu.memory_space<semaphore_mem>>
    %79 = tpu.memref_squeeze %78 : memref<1x!tpu.dma_semaphore, #tpu.memory_space<semaphore_mem>> -> memref<!tpu.dma_semaphore, #tpu.memory_space<semaphore_mem>>
    tpu.enqueue_dma source(%76 : memref<1x32xf32, #tpu.memory_space<any>>) target(%77 : memref<1x32xf32, #tpu.memory_space<vmem>>) target_semaphore(%79 : memref<!tpu.dma_semaphore, #tpu.memory_space<semaphore_mem>>)
    %c0_i32_48 = arith.constant 0 : i32
    %c0_i32_49 = arith.constant 0 : i32
    %80 = tpu.memref_slice %arg1[%0, %c0_i32_49] : memref<128256x32xf32, #tpu.memory_space<any>> -> memref<1x32xf32, #tpu.memory_space<any>>
    %c0_i32_50 = arith.constant 0 : i32
    %c0_i32_51 = arith.constant 0 : i32
    %81 = tpu.memref_slice %arg13[%c0_i32_50, %c0_i32_51] : memref<16x32xf32, #tpu.memory_space<vmem>> -> memref<1x32xf32, #tpu.memory_space<vmem>>
    %82 = tpu.memref_slice %arg14[%c0_i32_48] : memref<16x!tpu.dma_semaphore, #tpu.memory_space<semaphore_mem>> -> memref<1x!tpu.dma_semaphore, #tpu.memory_space<semaphore_mem>>
    %83 = tpu.memref_squeeze %82 : memref<1x!tpu.dma_semaphore, #tpu.memory_space<semaphore_mem>> -> memref<!tpu.dma_semaphore, #tpu.memory_space<semaphore_mem>>
    tpu.wait_dma2 semaphore(%83 : memref<!tpu.dma_semaphore, #tpu.memory_space<semaphore_mem>>) src(%80 : memref<1x32xf32, #tpu.memory_space<any>>) dst(%81 : memref<1x32xf32, #tpu.memory_space<vmem>>)
    %c1_i32_52 = arith.constant 1 : i32
    %c0_i32_53 = arith.constant 0 : i32
    %84 = tpu.memref_slice %arg1[%5, %c0_i32_53] : memref<128256x32xf32, #tpu.memory_space<any>> -> memref<1x32xf32, #tpu.memory_space<any>>
    %c1_i32_54 = arith.constant 1 : i32
    %c0_i32_55 = arith.constant 0 : i32
    %85 = tpu.memref_slice %arg13[%c1_i32_54, %c0_i32_55] : memref<16x32xf32, #tpu.memory_space<vmem>> -> memref<1x32xf32, #tpu.memory_space<vmem>>
    %86 = tpu.memref_slice %arg14[%c1_i32_52] : memref<16x!tpu.dma_semaphore, #tpu.memory_space<semaphore_mem>> -> memref<1x!tpu.dma_semaphore, #tpu.memory_space<semaphore_mem>>
    %87 = tpu.memref_squeeze %86 : memref<1x!tpu.dma_semaphore, #tpu.memory_space<semaphore_mem>> -> memref<!tpu.dma_semaphore, #tpu.memory_space<semaphore_mem>>
    tpu.wait_dma2 semaphore(%87 : memref<!tpu.dma_semaphore, #tpu.memory_space<semaphore_mem>>) src(%84 : memref<1x32xf32, #tpu.memory_space<any>>) dst(%85 : memref<1x32xf32, #tpu.memory_space<vmem>>)
    %c2_i32_56 = arith.constant 2 : i32
    %c0_i32_57 = arith.constant 0 : i32
    %88 = tpu.memref_slice %arg1[%10, %c0_i32_57] : memref<128256x32xf32, #tpu.memory_space<any>> -> memref<1x32xf32, #tpu.memory_space<any>>
    %c2_i32_58 = arith.constant 2 : i32
    %c0_i32_59 = arith.constant 0 : i32
    %89 = tpu.memref_slice %arg13[%c2_i32_58, %c0_i32_59] : memref<16x32xf32, #tpu.memory_space<vmem>> -> memref<1x32xf32, #tpu.memory_space<vmem>>
    %90 = tpu.memref_slice %arg14[%c2_i32_56] : memref<16x!tpu.dma_semaphore, #tpu.memory_space<semaphore_mem>> -> memref<1x!tpu.dma_semaphore, #tpu.memory_space<semaphore_mem>>
    %91 = tpu.memref_squeeze %90 : memref<1x!tpu.dma_semaphore, #tpu.memory_space<semaphore_mem>> -> memref<!tpu.dma_semaphore, #tpu.memory_space<semaphore_mem>>
    tpu.wait_dma2 semaphore(%91 : memref<!tpu.dma_semaphore, #tpu.memory_space<semaphore_mem>>) src(%88 : memref<1x32xf32, #tpu.memory_space<any>>) dst(%89 : memref<1x32xf32, #tpu.memory_space<vmem>>)
    %c3_i32_60 = arith.constant 3 : i32
    %c0_i32_61 = arith.constant 0 : i32
    %92 = tpu.memref_slice %arg1[%15, %c0_i32_61] : memref<128256x32xf32, #tpu.memory_space<any>> -> memref<1x32xf32, #tpu.memory_space<any>>
    %c3_i32_62 = arith.constant 3 : i32
    %c0_i32_63 = arith.constant 0 : i32
    %93 = tpu.memref_slice %arg13[%c3_i32_62, %c0_i32_63] : memref<16x32xf32, #tpu.memory_space<vmem>> -> memref<1x32xf32, #tpu.memory_space<vmem>>
    %94 = tpu.memref_slice %arg14[%c3_i32_60] : memref<16x!tpu.dma_semaphore, #tpu.memory_space<semaphore_mem>> -> memref<1x!tpu.dma_semaphore, #tpu.memory_space<semaphore_mem>>
    %95 = tpu.memref_squeeze %94 : memref<1x!tpu.dma_semaphore, #tpu.memory_space<semaphore_mem>> -> memref<!tpu.dma_semaphore, #tpu.memory_space<semaphore_mem>>
    tpu.wait_dma2 semaphore(%95 : memref<!tpu.dma_semaphore, #tpu.memory_space<semaphore_mem>>) src(%92 : memref<1x32xf32, #tpu.memory_space<any>>) dst(%93 : memref<1x32xf32, #tpu.memory_space<vmem>>)
    %c4_i32_64 = arith.constant 4 : i32
    %c0_i32_65 = arith.constant 0 : i32
    %96 = tpu.memref_slice %arg1[%20, %c0_i32_65] : memref<128256x32xf32, #tpu.memory_space<any>> -> memref<1x32xf32, #tpu.memory_space<any>>
    %c4_i32_66 = arith.constant 4 : i32
    %c0_i32_67 = arith.constant 0 : i32
    %97 = tpu.memref_slice %arg13[%c4_i32_66, %c0_i32_67] : memref<16x32xf32, #tpu.memory_space<vmem>> -> memref<1x32xf32, #tpu.memory_space<vmem>>
    %98 = tpu.memref_slice %arg14[%c4_i32_64] : memref<16x!tpu.dma_semaphore, #tpu.memory_space<semaphore_mem>> -> memref<1x!tpu.dma_semaphore, #tpu.memory_space<semaphore_mem>>
    %99 = tpu.memref_squeeze %98 : memref<1x!tpu.dma_semaphore, #tpu.memory_space<semaphore_mem>> -> memref<!tpu.dma_semaphore, #tpu.memory_space<semaphore_mem>>
    tpu.wait_dma2 semaphore(%99 : memref<!tpu.dma_semaphore, #tpu.memory_space<semaphore_mem>>) src(%96 : memref<1x32xf32, #tpu.memory_space<any>>) dst(%97 : memref<1x32xf32, #tpu.memory_space<vmem>>)
    %c5_i32_68 = arith.constant 5 : i32
    %c0_i32_69 = arith.constant 0 : i32
    %100 = tpu.memref_slice %arg1[%25, %c0_i32_69] : memref<128256x32xf32, #tpu.memory_space<any>> -> memref<1x32xf32, #tpu.memory_space<any>>
    %c5_i32_70 = arith.constant 5 : i32
    %c0_i32_71 = arith.constant 0 : i32
    %101 = tpu.memref_slice %arg13[%c5_i32_70, %c0_i32_71] : memref<16x32xf32, #tpu.memory_space<vmem>> -> memref<1x32xf32, #tpu.memory_space<vmem>>
    %102 = tpu.memref_slice %arg14[%c5_i32_68] : memref<16x!tpu.dma_semaphore, #tpu.memory_space<semaphore_mem>> -> memref<1x!tpu.dma_semaphore, #tpu.memory_space<semaphore_mem>>
    %103 = tpu.memref_squeeze %102 : memref<1x!tpu.dma_semaphore, #tpu.memory_space<semaphore_mem>> -> memref<!tpu.dma_semaphore, #tpu.memory_space<semaphore_mem>>
    tpu.wait_dma2 semaphore(%103 : memref<!tpu.dma_semaphore, #tpu.memory_space<semaphore_mem>>) src(%100 : memref<1x32xf32, #tpu.memory_space<any>>) dst(%101 : memref<1x32xf32, #tpu.memory_space<vmem>>)
    %c6_i32_72 = arith.constant 6 : i32
    %c0_i32_73 = arith.constant 0 : i32
    %104 = tpu.memref_slice %arg1[%30, %c0_i32_73] : memref<128256x32xf32, #tpu.memory_space<any>> -> memref<1x32xf32, #tpu.memory_space<any>>
    %c6_i32_74 = arith.constant 6 : i32
    %c0_i32_75 = arith.constant 0 : i32
    %105 = tpu.memref_slice %arg13[%c6_i32_74, %c0_i32_75] : memref<16x32xf32, #tpu.memory_space<vmem>> -> memref<1x32xf32, #tpu.memory_space<vmem>>
    %106 = tpu.memref_slice %arg14[%c6_i32_72] : memref<16x!tpu.dma_semaphore, #tpu.memory_space<semaphore_mem>> -> memref<1x!tpu.dma_semaphore, #tpu.memory_space<semaphore_mem>>
    %107 = tpu.memref_squeeze %106 : memref<1x!tpu.dma_semaphore, #tpu.memory_space<semaphore_mem>> -> memref<!tpu.dma_semaphore, #tpu.memory_space<semaphore_mem>>
    tpu.wait_dma2 semaphore(%107 : memref<!tpu.dma_semaphore, #tpu.memory_space<semaphore_mem>>) src(%104 : memref<1x32xf32, #tpu.memory_space<any>>) dst(%105 : memref<1x32xf32, #tpu.memory_space<vmem>>)
    %c7_i32_76 = arith.constant 7 : i32
    %c0_i32_77 = arith.constant 0 : i32
    %108 = tpu.memref_slice %arg1[%35, %c0_i32_77] : memref<128256x32xf32, #tpu.memory_space<any>> -> memref<1x32xf32, #tpu.memory_space<any>>
    %c7_i32_78 = arith.constant 7 : i32
    %c0_i32_79 = arith.constant 0 : i32
    %109 = tpu.memref_slice %arg13[%c7_i32_78, %c0_i32_79] : memref<16x32xf32, #tpu.memory_space<vmem>> -> memref<1x32xf32, #tpu.memory_space<vmem>>
    %110 = tpu.memref_slice %arg14[%c7_i32_76] : memref<16x!tpu.dma_semaphore, #tpu.memory_space<semaphore_mem>> -> memref<1x!tpu.dma_semaphore, #tpu.memory_space<semaphore_mem>>
    %111 = tpu.memref_squeeze %110 : memref<1x!tpu.dma_semaphore, #tpu.memory_space<semaphore_mem>> -> memref<!tpu.dma_semaphore, #tpu.memory_space<semaphore_mem>>
    tpu.wait_dma2 semaphore(%111 : memref<!tpu.dma_semaphore, #tpu.memory_space<semaphore_mem>>) src(%108 : memref<1x32xf32, #tpu.memory_space<any>>) dst(%109 : memref<1x32xf32, #tpu.memory_space<vmem>>)
    %c8_i32_80 = arith.constant 8 : i32
    %c0_i32_81 = arith.constant 0 : i32
    %112 = tpu.memref_slice %arg1[%40, %c0_i32_81] : memref<128256x32xf32, #tpu.memory_space<any>> -> memref<1x32xf32, #tpu.memory_space<any>>
    %c8_i32_82 = arith.constant 8 : i32
    %c0_i32_83 = arith.constant 0 : i32
    %113 = tpu.memref_slice %arg13[%c8_i32_82, %c0_i32_83] : memref<16x32xf32, #tpu.memory_space<vmem>> -> memref<1x32xf32, #tpu.memory_space<vmem>>
    %114 = tpu.memref_slice %arg14[%c8_i32_80] : memref<16x!tpu.dma_semaphore, #tpu.memory_space<semaphore_mem>> -> memref<1x!tpu.dma_semaphore, #tpu.memory_space<semaphore_mem>>
    %115 = tpu.memref_squeeze %114 : memref<1x!tpu.dma_semaphore, #tpu.memory_space<semaphore_mem>> -> memref<!tpu.dma_semaphore, #tpu.memory_space<semaphore_mem>>
    tpu.wait_dma2 semaphore(%115 : memref<!tpu.dma_semaphore, #tpu.memory_space<semaphore_mem>>) src(%112 : memref<1x32xf32, #tpu.memory_space<any>>) dst(%113 : memref<1x32xf32, #tpu.memory_space<vmem>>)
    %c9_i32_84 = arith.constant 9 : i32
    %c0_i32_85 = arith.constant 0 : i32
    %116 = tpu.memref_slice %arg1[%45, %c0_i32_85] : memref<128256x32xf32, #tpu.memory_space<any>> -> memref<1x32xf32, #tpu.memory_space<any>>
    %c9_i32_86 = arith.constant 9 : i32
    %c0_i32_87 = arith.constant 0 : i32
    %117 = tpu.memref_slice %arg13[%c9_i32_86, %c0_i32_87] : memref<16x32xf32, #tpu.memory_space<vmem>> -> memref<1x32xf32, #tpu.memory_space<vmem>>
    %118 = tpu.memref_slice %arg14[%c9_i32_84] : memref<16x!tpu.dma_semaphore, #tpu.memory_space<semaphore_mem>> -> memref<1x!tpu.dma_semaphore, #tpu.memory_space<semaphore_mem>>
    %119 = tpu.memref_squeeze %118 : memref<1x!tpu.dma_semaphore, #tpu.memory_space<semaphore_mem>> -> memref<!tpu.dma_semaphore, #tpu.memory_space<semaphore_mem>>
    tpu.wait_dma2 semaphore(%119 : memref<!tpu.dma_semaphore, #tpu.memory_space<semaphore_mem>>) src(%116 : memref<1x32xf32, #tpu.memory_space<any>>) dst(%117 : memref<1x32xf32, #tpu.memory_space<vmem>>)
    %c10_i32_88 = arith.constant 10 : i32
    %c0_i32_89 = arith.constant 0 : i32
    %120 = tpu.memref_slice %arg1[%50, %c0_i32_89] : memref<128256x32xf32, #tpu.memory_space<any>> -> memref<1x32xf32, #tpu.memory_space<any>>
    %c10_i32_90 = arith.constant 10 : i32
    %c0_i32_91 = arith.constant 0 : i32
    %121 = tpu.memref_slice %arg13[%c10_i32_90, %c0_i32_91] : memref<16x32xf32, #tpu.memory_space<vmem>> -> memref<1x32xf32, #tpu.memory_space<vmem>>
    %122 = tpu.memref_slice %arg14[%c10_i32_88] : memref<16x!tpu.dma_semaphore, #tpu.memory_space<semaphore_mem>> -> memref<1x!tpu.dma_semaphore, #tpu.memory_space<semaphore_mem>>
    %123 = tpu.memref_squeeze %122 : memref<1x!tpu.dma_semaphore, #tpu.memory_space<semaphore_mem>> -> memref<!tpu.dma_semaphore, #tpu.memory_space<semaphore_mem>>
    tpu.wait_dma2 semaphore(%123 : memref<!tpu.dma_semaphore, #tpu.memory_space<semaphore_mem>>) src(%120 : memref<1x32xf32, #tpu.memory_space<any>>) dst(%121 : memref<1x32xf32, #tpu.memory_space<vmem>>)
    %c11_i32_92 = arith.constant 11 : i32
    %c0_i32_93 = arith.constant 0 : i32
    %124 = tpu.memref_slice %arg1[%55, %c0_i32_93] : memref<128256x32xf32, #tpu.memory_space<any>> -> memref<1x32xf32, #tpu.memory_space<any>>
    %c11_i32_94 = arith.constant 11 : i32
    %c0_i32_95 = arith.constant 0 : i32
    %125 = tpu.memref_slice %arg13[%c11_i32_94, %c0_i32_95] : memref<16x32xf32, #tpu.memory_space<vmem>> -> memref<1x32xf32, #tpu.memory_space<vmem>>
    %126 = tpu.memref_slice %arg14[%c11_i32_92] : memref<16x!tpu.dma_semaphore, #tpu.memory_space<semaphore_mem>> -> memref<1x!tpu.dma_semaphore, #tpu.memory_space<semaphore_mem>>
    %127 = tpu.memref_squeeze %126 : memref<1x!tpu.dma_semaphore, #tpu.memory_space<semaphore_mem>> -> memref<!tpu.dma_semaphore, #tpu.memory_space<semaphore_mem>>
    tpu.wait_dma2 semaphore(%127 : memref<!tpu.dma_semaphore, #tpu.memory_space<semaphore_mem>>) src(%124 : memref<1x32xf32, #tpu.memory_space<any>>) dst(%125 : memref<1x32xf32, #tpu.memory_space<vmem>>)
    %c12_i32_96 = arith.constant 12 : i32
    %c0_i32_97 = arith.constant 0 : i32
    %128 = tpu.memref_slice %arg1[%60, %c0_i32_97] : memref<128256x32xf32, #tpu.memory_space<any>> -> memref<1x32xf32, #tpu.memory_space<any>>
    %c12_i32_98 = arith.constant 12 : i32
    %c0_i32_99 = arith.constant 0 : i32
    %129 = tpu.memref_slice %arg13[%c12_i32_98, %c0_i32_99] : memref<16x32xf32, #tpu.memory_space<vmem>> -> memref<1x32xf32, #tpu.memory_space<vmem>>
    %130 = tpu.memref_slice %arg14[%c12_i32_96] : memref<16x!tpu.dma_semaphore, #tpu.memory_space<semaphore_mem>> -> memref<1x!tpu.dma_semaphore, #tpu.memory_space<semaphore_mem>>
    %131 = tpu.memref_squeeze %130 : memref<1x!tpu.dma_semaphore, #tpu.memory_space<semaphore_mem>> -> memref<!tpu.dma_semaphore, #tpu.memory_space<semaphore_mem>>
    tpu.wait_dma2 semaphore(%131 : memref<!tpu.dma_semaphore, #tpu.memory_space<semaphore_mem>>) src(%128 : memref<1x32xf32, #tpu.memory_space<any>>) dst(%129 : memref<1x32xf32, #tpu.memory_space<vmem>>)
    %c13_i32_100 = arith.constant 13 : i32
    %c0_i32_101 = arith.constant 0 : i32
    %132 = tpu.memref_slice %arg1[%65, %c0_i32_101] : memref<128256x32xf32, #tpu.memory_space<any>> -> memref<1x32xf32, #tpu.memory_space<any>>
    %c13_i32_102 = arith.constant 13 : i32
    %c0_i32_103 = arith.constant 0 : i32
    %133 = tpu.memref_slice %arg13[%c13_i32_102, %c0_i32_103] : memref<16x32xf32, #tpu.memory_space<vmem>> -> memref<1x32xf32, #tpu.memory_space<vmem>>
    %134 = tpu.memref_slice %arg14[%c13_i32_100] : memref<16x!tpu.dma_semaphore, #tpu.memory_space<semaphore_mem>> -> memref<1x!tpu.dma_semaphore, #tpu.memory_space<semaphore_mem>>
    %135 = tpu.memref_squeeze %134 : memref<1x!tpu.dma_semaphore, #tpu.memory_space<semaphore_mem>> -> memref<!tpu.dma_semaphore, #tpu.memory_space<semaphore_mem>>
    tpu.wait_dma2 semaphore(%135 : memref<!tpu.dma_semaphore, #tpu.memory_space<semaphore_mem>>) src(%132 : memref<1x32xf32, #tpu.memory_space<any>>) dst(%133 : memref<1x32xf32, #tpu.memory_space<vmem>>)
    %c14_i32_104 = arith.constant 14 : i32
    %c0_i32_105 = arith.constant 0 : i32
    %136 = tpu.memref_slice %arg1[%70, %c0_i32_105] : memref<128256x32xf32, #tpu.memory_space<any>> -> memref<1x32xf32, #tpu.memory_space<any>>
    %c14_i32_106 = arith.constant 14 : i32
    %c0_i32_107 = arith.constant 0 : i32
    %137 = tpu.memref_slice %arg13[%c14_i32_106, %c0_i32_107] : memref<16x32xf32, #tpu.memory_space<vmem>> -> memref<1x32xf32, #tpu.memory_space<vmem>>
    %138 = tpu.memref_slice %arg14[%c14_i32_104] : memref<16x!tpu.dma_semaphore, #tpu.memory_space<semaphore_mem>> -> memref<1x!tpu.dma_semaphore, #tpu.memory_space<semaphore_mem>>
    %139 = tpu.memref_squeeze %138 : memref<1x!tpu.dma_semaphore, #tpu.memory_space<semaphore_mem>> -> memref<!tpu.dma_semaphore, #tpu.memory_space<semaphore_mem>>
    tpu.wait_dma2 semaphore(%139 : memref<!tpu.dma_semaphore, #tpu.memory_space<semaphore_mem>>) src(%136 : memref<1x32xf32, #tpu.memory_space<any>>) dst(%137 : memref<1x32xf32, #tpu.memory_space<vmem>>)
    %c15_i32_108 = arith.constant 15 : i32
    %c0_i32_109 = arith.constant 0 : i32
    %140 = tpu.memref_slice %arg1[%75, %c0_i32_109] : memref<128256x32xf32, #tpu.memory_space<any>> -> memref<1x32xf32, #tpu.memory_space<any>>
    %c15_i32_110 = arith.constant 15 : i32
    %c0_i32_111 = arith.constant 0 : i32
    %141 = tpu.memref_slice %arg13[%c15_i32_110, %c0_i32_111] : memref<16x32xf32, #tpu.memory_space<vmem>> -> memref<1x32xf32, #tpu.memory_space<vmem>>
    %142 = tpu.memref_slice %arg14[%c15_i32_108] : memref<16x!tpu.dma_semaphore, #tpu.memory_space<semaphore_mem>> -> memref<1x!tpu.dma_semaphore, #tpu.memory_space<semaphore_mem>>
    %143 = tpu.memref_squeeze %142 : memref<1x!tpu.dma_semaphore, #tpu.memory_space<semaphore_mem>> -> memref<!tpu.dma_semaphore, #tpu.memory_space<semaphore_mem>>
    tpu.wait_dma2 semaphore(%143 : memref<!tpu.dma_semaphore, #tpu.memory_space<semaphore_mem>>) src(%140 : memref<1x32xf32, #tpu.memory_space<any>>) dst(%141 : memref<1x32xf32, #tpu.memory_space<vmem>>)
    %c0_112 = arith.constant 0 : index
    %c0_113 = arith.constant 0 : index
    %144 = vector.load %arg13[%c0_112, %c0_113] : memref<16x32xf32, #tpu.memory_space<vmem>>, vector<16x32xf32>
    %145 = arith.truncf %144 : vector<16x32xf32> to vector<16x32xbf16>
    %146 = vector.shape_cast %145 : vector<16x32xbf16> to vector<2x8x32xbf16>
    %c0_114 = arith.constant 0 : index
    %c0_115 = arith.constant 0 : index
    %147 = vector.load %arg11[%c0_114, %c0_115] : memref<1x128xf32, #tpu.memory_space<vmem>>, vector<1x128xf32>
    %c0_116 = arith.constant 0 : index
    %c0_117 = arith.constant 0 : index
    %c0_118 = arith.constant 0 : index
    %148 = vector.load %arg2[%c0_116, %c0_117, %c0_118] : memref<3x32x128xbf16, #tpu.memory_space<vmem>>, vector<3x32x128xbf16>
    %149 = vector.extract_strided_slice %146 {offsets = [0, 0, 0], sizes = [2, 6, 32], strides = [1, 1, 1]} : vector<2x8x32xbf16> to vector<2x6x32xbf16>
    %150 = vector.shape_cast %149 : vector<2x6x32xbf16> to vector<12x32xbf16>
    %151 = vector.extract_strided_slice %148 {offsets = [0, 0, 0], sizes = [1, 32, 128], strides = [1, 1, 1]} : vector<3x32x128xbf16> to vector<1x32x128xbf16>
    %152 = vector.shape_cast %151 : vector<1x32x128xbf16> to vector<32x128xbf16>
    %cst = arith.constant dense<0.000000e+00> : vector<12x128xf32>
    %153 = tpu.matmul %150, %152, %cst {dimension_numbers = #tpu.dot_dimension_numbers<[1], [0], [0], [1], [0, 0, 1, 1], [], []>} : vector<12x32xbf16>, vector<32x128xbf16>, vector<12x128xf32> -> vector<12x128xf32>
    %154 = vector.extract_strided_slice %146 {offsets = [0, 1, 0], sizes = [2, 6, 32], strides = [1, 1, 1]} : vector<2x8x32xbf16> to vector<2x6x32xbf16>
    %155 = vector.shape_cast %154 : vector<2x6x32xbf16> to vector<12x32xbf16>
    %156 = vector.extract_strided_slice %148 {offsets = [1, 0, 0], sizes = [1, 32, 128], strides = [1, 1, 1]} : vector<3x32x128xbf16> to vector<1x32x128xbf16>
    %157 = vector.shape_cast %156 : vector<1x32x128xbf16> to vector<32x128xbf16>
    %cst_119 = arith.constant dense<0.000000e+00> : vector<12x128xf32>
    %158 = tpu.matmul %155, %157, %cst_119 {dimension_numbers = #tpu.dot_dimension_numbers<[1], [0], [0], [1], [0, 0, 1, 1], [], []>} : vector<12x32xbf16>, vector<32x128xbf16>, vector<12x128xf32> -> vector<12x128xf32>
    %159 = arith.addf %153, %158 : vector<12x128xf32>
    %160 = vector.extract_strided_slice %146 {offsets = [0, 2, 0], sizes = [2, 6, 32], strides = [1, 1, 1]} : vector<2x8x32xbf16> to vector<2x6x32xbf16>
    %161 = vector.shape_cast %160 : vector<2x6x32xbf16> to vector<12x32xbf16>
    %162 = vector.extract_strided_slice %148 {offsets = [2, 0, 0], sizes = [1, 32, 128], strides = [1, 1, 1]} : vector<3x32x128xbf16> to vector<1x32x128xbf16>
    %163 = vector.shape_cast %162 : vector<1x32x128xbf16> to vector<32x128xbf16>
    %cst_120 = arith.constant dense<0.000000e+00> : vector<12x128xf32>
    %164 = tpu.matmul %161, %163, %cst_120 {dimension_numbers = #tpu.dot_dimension_numbers<[1], [0], [0], [1], [0, 0, 1, 1], [], []>} : vector<12x32xbf16>, vector<32x128xbf16>, vector<12x128xf32> -> vector<12x128xf32>
    %165 = arith.addf %159, %164 : vector<12x128xf32>
    %166 = vector.shape_cast %165 : vector<12x128xf32> to vector<2x6x128xf32>
    %cst_121 = arith.constant dense<0xFF800000> : vector<2x128xf32>
    %167 = vector.multi_reduction <maximumf>, %166, %cst_121 [1] : vector<2x6x128xf32> to vector<2x128xf32>
    %c0_122 = arith.constant 0 : index
    %c0_123 = arith.constant 0 : index
    %168 = vector.load %arg3[%c0_122, %c0_123] : memref<1x128xf32, #tpu.memory_space<vmem>>, vector<1x128xf32>
    %169 = vector.broadcast %168 : vector<1x128xf32> to vector<2x128xf32>
    %170 = arith.addf %167, %169 : vector<2x128xf32>
    %cst_124 = arith.constant 0.000000e+00 : f32
    %171 = vector.broadcast %cst_124 : f32 to vector<2x128xf32>
    %172 = arith.maximumf %170, %171 : vector<2x128xf32>
    %173 = arith.truncf %172 : vector<2x128xf32> to vector<2x128xbf16>
    %c0_125 = arith.constant 0 : index
    %c0_126 = arith.constant 0 : index
    %174 = vector.load %arg8[%c0_125, %c0_126] : memref<128x128xbf16, #tpu.memory_space<vmem>>, vector<128x128xbf16>
    %cst_127 = arith.constant dense<0.000000e+00> : vector<2x128xf32>
    %175 = tpu.matmul %173, %174, %cst_127 {dimension_numbers = #tpu.dot_dimension_numbers<[1], [0], [0], [1], [0, 0, 1, 1], [], []>} : vector<2x128xbf16>, vector<128x128xbf16>, vector<2x128xf32> -> vector<2x128xf32>
    %176 = vector.broadcast %147 : vector<1x128xf32> to vector<2x128xf32>
    %177 = arith.addf %176, %175 : vector<2x128xf32>
    %c0_128 = arith.constant 0 : index
    %c0_129 = arith.constant 0 : index
    %c0_130 = arith.constant 0 : index
    %178 = vector.load %arg4[%c0_128, %c0_129, %c0_130] : memref<4x32x128xbf16, #tpu.memory_space<vmem>>, vector<4x32x128xbf16>
    %179 = vector.extract_strided_slice %146 {offsets = [0, 0, 0], sizes = [2, 5, 32], strides = [1, 1, 1]} : vector<2x8x32xbf16> to vector<2x5x32xbf16>
    %180 = vector.shape_cast %179 : vector<2x5x32xbf16> to vector<10x32xbf16>
    %181 = vector.extract_strided_slice %178 {offsets = [0, 0, 0], sizes = [1, 32, 128], strides = [1, 1, 1]} : vector<4x32x128xbf16> to vector<1x32x128xbf16>
    %182 = vector.shape_cast %181 : vector<1x32x128xbf16> to vector<32x128xbf16>
    %cst_131 = arith.constant dense<0.000000e+00> : vector<10x128xf32>
    %183 = tpu.matmul %180, %182, %cst_131 {dimension_numbers = #tpu.dot_dimension_numbers<[1], [0], [0], [1], [0, 0, 1, 1], [], []>} : vector<10x32xbf16>, vector<32x128xbf16>, vector<10x128xf32> -> vector<10x128xf32>
    %184 = vector.extract_strided_slice %146 {offsets = [0, 1, 0], sizes = [2, 5, 32], strides = [1, 1, 1]} : vector<2x8x32xbf16> to vector<2x5x32xbf16>
    %185 = vector.shape_cast %184 : vector<2x5x32xbf16> to vector<10x32xbf16>
    %186 = vector.extract_strided_slice %178 {offsets = [1, 0, 0], sizes = [1, 32, 128], strides = [1, 1, 1]} : vector<4x32x128xbf16> to vector<1x32x128xbf16>
    %187 = vector.shape_cast %186 : vector<1x32x128xbf16> to vector<32x128xbf16>
    %cst_132 = arith.constant dense<0.000000e+00> : vector<10x128xf32>
    %188 = tpu.matmul %185, %187, %cst_132 {dimension_numbers = #tpu.dot_dimension_numbers<[1], [0], [0], [1], [0, 0, 1, 1], [], []>} : vector<10x32xbf16>, vector<32x128xbf16>, vector<10x128xf32> -> vector<10x128xf32>
    %189 = arith.addf %183, %188 : vector<10x128xf32>
    %190 = vector.extract_strided_slice %146 {offsets = [0, 2, 0], sizes = [2, 5, 32], strides = [1, 1, 1]} : vector<2x8x32xbf16> to vector<2x5x32xbf16>
    %191 = vector.shape_cast %190 : vector<2x5x32xbf16> to vector<10x32xbf16>
    %192 = vector.extract_strided_slice %178 {offsets = [2, 0, 0], sizes = [1, 32, 128], strides = [1, 1, 1]} : vector<4x32x128xbf16> to vector<1x32x128xbf16>
    %193 = vector.shape_cast %192 : vector<1x32x128xbf16> to vector<32x128xbf16>
    %cst_133 = arith.constant dense<0.000000e+00> : vector<10x128xf32>
    %194 = tpu.matmul %191, %193, %cst_133 {dimension_numbers = #tpu.dot_dimension_numbers<[1], [0], [0], [1], [0, 0, 1, 1], [], []>} : vector<10x32xbf16>, vector<32x128xbf16>, vector<10x128xf32> -> vector<10x128xf32>
    %195 = arith.addf %189, %194 : vector<10x128xf32>
    %196 = vector.extract_strided_slice %146 {offsets = [0, 3, 0], sizes = [2, 5, 32], strides = [1, 1, 1]} : vector<2x8x32xbf16> to vector<2x5x32xbf16>
    %197 = vector.shape_cast %196 : vector<2x5x32xbf16> to vector<10x32xbf16>
    %198 = vector.extract_strided_slice %178 {offsets = [3, 0, 0], sizes = [1, 32, 128], strides = [1, 1, 1]} : vector<4x32x128xbf16> to vector<1x32x128xbf16>
    %199 = vector.shape_cast %198 : vector<1x32x128xbf16> to vector<32x128xbf16>
    %cst_134 = arith.constant dense<0.000000e+00> : vector<10x128xf32>
    %200 = tpu.matmul %197, %199, %cst_134 {dimension_numbers = #tpu.dot_dimension_numbers<[1], [0], [0], [1], [0, 0, 1, 1], [], []>} : vector<10x32xbf16>, vector<32x128xbf16>, vector<10x128xf32> -> vector<10x128xf32>
    %201 = arith.addf %195, %200 : vector<10x128xf32>
    %202 = vector.shape_cast %201 : vector<10x128xf32> to vector<2x5x128xf32>
    %cst_135 = arith.constant dense<0xFF800000> : vector<2x128xf32>
    %203 = vector.multi_reduction <maximumf>, %202, %cst_135 [1] : vector<2x5x128xf32> to vector<2x128xf32>
    %c0_136 = arith.constant 0 : index
    %c0_137 = arith.constant 0 : index
    %204 = vector.load %arg5[%c0_136, %c0_137] : memref<1x128xf32, #tpu.memory_space<vmem>>, vector<1x128xf32>
    %205 = vector.broadcast %204 : vector<1x128xf32> to vector<2x128xf32>
    %206 = arith.addf %203, %205 : vector<2x128xf32>
    %cst_138 = arith.constant 0.000000e+00 : f32
    %207 = vector.broadcast %cst_138 : f32 to vector<2x128xf32>
    %208 = arith.maximumf %206, %207 : vector<2x128xf32>
    %209 = arith.truncf %208 : vector<2x128xf32> to vector<2x128xbf16>
    %c0_139 = arith.constant 0 : index
    %c0_140 = arith.constant 0 : index
    %210 = vector.load %arg9[%c0_139, %c0_140] : memref<128x128xbf16, #tpu.memory_space<vmem>>, vector<128x128xbf16>
    %cst_141 = arith.constant dense<0.000000e+00> : vector<2x128xf32>
    %211 = tpu.matmul %209, %210, %cst_141 {dimension_numbers = #tpu.dot_dimension_numbers<[1], [0], [0], [1], [0, 0, 1, 1], [], []>} : vector<2x128xbf16>, vector<128x128xbf16>, vector<2x128xf32> -> vector<2x128xf32>
    %212 = arith.addf %177, %211 : vector<2x128xf32>
    %c0_142 = arith.constant 0 : index
    %c0_143 = arith.constant 0 : index
    %c0_144 = arith.constant 0 : index
    %213 = vector.load %arg6[%c0_142, %c0_143, %c0_144] : memref<5x32x128xbf16, #tpu.memory_space<vmem>>, vector<5x32x128xbf16>
    %214 = vector.extract_strided_slice %146 {offsets = [0, 0, 0], sizes = [2, 4, 32], strides = [1, 1, 1]} : vector<2x8x32xbf16> to vector<2x4x32xbf16>
    %215 = vector.shape_cast %214 : vector<2x4x32xbf16> to vector<8x32xbf16>
    %216 = vector.extract_strided_slice %213 {offsets = [0, 0, 0], sizes = [1, 32, 128], strides = [1, 1, 1]} : vector<5x32x128xbf16> to vector<1x32x128xbf16>
    %217 = vector.shape_cast %216 : vector<1x32x128xbf16> to vector<32x128xbf16>
    %cst_145 = arith.constant dense<0.000000e+00> : vector<8x128xf32>
    %218 = tpu.matmul %215, %217, %cst_145 {dimension_numbers = #tpu.dot_dimension_numbers<[1], [0], [0], [1], [0, 0, 1, 1], [], []>} : vector<8x32xbf16>, vector<32x128xbf16>, vector<8x128xf32> -> vector<8x128xf32>
    %219 = vector.extract_strided_slice %146 {offsets = [0, 1, 0], sizes = [2, 4, 32], strides = [1, 1, 1]} : vector<2x8x32xbf16> to vector<2x4x32xbf16>
    %220 = vector.shape_cast %219 : vector<2x4x32xbf16> to vector<8x32xbf16>
    %221 = vector.extract_strided_slice %213 {offsets = [1, 0, 0], sizes = [1, 32, 128], strides = [1, 1, 1]} : vector<5x32x128xbf16> to vector<1x32x128xbf16>
    %222 = vector.shape_cast %221 : vector<1x32x128xbf16> to vector<32x128xbf16>
    %cst_146 = arith.constant dense<0.000000e+00> : vector<8x128xf32>
    %223 = tpu.matmul %220, %222, %cst_146 {dimension_numbers = #tpu.dot_dimension_numbers<[1], [0], [0], [1], [0, 0, 1, 1], [], []>} : vector<8x32xbf16>, vector<32x128xbf16>, vector<8x128xf32> -> vector<8x128xf32>
    %224 = arith.addf %218, %223 : vector<8x128xf32>
    %225 = vector.extract_strided_slice %146 {offsets = [0, 2, 0], sizes = [2, 4, 32], strides = [1, 1, 1]} : vector<2x8x32xbf16> to vector<2x4x32xbf16>
    %226 = vector.shape_cast %225 : vector<2x4x32xbf16> to vector<8x32xbf16>
    %227 = vector.extract_strided_slice %213 {offsets = [2, 0, 0], sizes = [1, 32, 128], strides = [1, 1, 1]} : vector<5x32x128xbf16> to vector<1x32x128xbf16>
    %228 = vector.shape_cast %227 : vector<1x32x128xbf16> to vector<32x128xbf16>
    %cst_147 = arith.constant dense<0.000000e+00> : vector<8x128xf32>
    %229 = tpu.matmul %226, %228, %cst_147 {dimension_numbers = #tpu.dot_dimension_numbers<[1], [0], [0], [1], [0, 0, 1, 1], [], []>} : vector<8x32xbf16>, vector<32x128xbf16>, vector<8x128xf32> -> vector<8x128xf32>
    %230 = arith.addf %224, %229 : vector<8x128xf32>
    %231 = vector.extract_strided_slice %146 {offsets = [0, 3, 0], sizes = [2, 4, 32], strides = [1, 1, 1]} : vector<2x8x32xbf16> to vector<2x4x32xbf16>
    %232 = vector.shape_cast %231 : vector<2x4x32xbf16> to vector<8x32xbf16>
    %233 = vector.extract_strided_slice %213 {offsets = [3, 0, 0], sizes = [1, 32, 128], strides = [1, 1, 1]} : vector<5x32x128xbf16> to vector<1x32x128xbf16>
    %234 = vector.shape_cast %233 : vector<1x32x128xbf16> to vector<32x128xbf16>
    %cst_148 = arith.constant dense<0.000000e+00> : vector<8x128xf32>
    %235 = tpu.matmul %232, %234, %cst_148 {dimension_numbers = #tpu.dot_dimension_numbers<[1], [0], [0], [1], [0, 0, 1, 1], [], []>} : vector<8x32xbf16>, vector<32x128xbf16>, vector<8x128xf32> -> vector<8x128xf32>
    %236 = arith.addf %230, %235 : vector<8x128xf32>
    %237 = vector.extract_strided_slice %146 {offsets = [0, 4, 0], sizes = [2, 4, 32], strides = [1, 1, 1]} : vector<2x8x32xbf16> to vector<2x4x32xbf16>
    %238 = vector.shape_cast %237 : vector<2x4x32xbf16> to vector<8x32xbf16>
    %239 = vector.extract_strided_slice %213 {offsets = [4, 0, 0], sizes = [1, 32, 128], strides = [1, 1, 1]} : vector<5x32x128xbf16> to vector<1x32x128xbf16>
    %240 = vector.shape_cast %239 : vector<1x32x128xbf16> to vector<32x128xbf16>
    %cst_149 = arith.constant dense<0.000000e+00> : vector<8x128xf32>
    %241 = tpu.matmul %238, %240, %cst_149 {dimension_numbers = #tpu.dot_dimension_numbers<[1], [0], [0], [1], [0, 0, 1, 1], [], []>} : vector<8x32xbf16>, vector<32x128xbf16>, vector<8x128xf32> -> vector<8x128xf32>
    %242 = arith.addf %236, %241 : vector<8x128xf32>
    %243 = vector.shape_cast %242 : vector<8x128xf32> to vector<2x4x128xf32>
    %cst_150 = arith.constant dense<0xFF800000> : vector<2x128xf32>
    %244 = vector.multi_reduction <maximumf>, %243, %cst_150 [1] : vector<2x4x128xf32> to vector<2x128xf32>
    %c0_151 = arith.constant 0 : index
    %c0_152 = arith.constant 0 : index
    %245 = vector.load %arg7[%c0_151, %c0_152] : memref<1x128xf32, #tpu.memory_space<vmem>>, vector<1x128xf32>
    %246 = vector.broadcast %245 : vector<1x128xf32> to vector<2x128xf32>
    %247 = arith.addf %244, %246 : vector<2x128xf32>
    %cst_153 = arith.constant 0.000000e+00 : f32
    %248 = vector.broadcast %cst_153 : f32 to vector<2x128xf32>
    %249 = arith.maximumf %247, %248 : vector<2x128xf32>
    %250 = arith.truncf %249 : vector<2x128xf32> to vector<2x128xbf16>
    %c0_154 = arith.constant 0 : index
    %c0_155 = arith.constant 0 : index
    %251 = vector.load %arg10[%c0_154, %c0_155] : memref<128x128xbf16, #tpu.memory_space<vmem>>, vector<128x128xbf16>
    %cst_156 = arith.constant dense<0.000000e+00> : vector<2x128xf32>
    %252 = tpu.matmul %250, %251, %cst_156 {dimension_numbers = #tpu.dot_dimension_numbers<[1], [0], [0], [1], [0, 0, 1, 1], [], []>} : vector<2x128xbf16>, vector<128x128xbf16>, vector<2x128xf32> -> vector<2x128xf32>
    %253 = arith.addf %212, %252 : vector<2x128xf32>
    %c0_157 = arith.constant 0 : index
    %c0_158 = arith.constant 0 : index
    %254 = vector.load %arg12[%c0_157, %c0_158] : memref<2x128xf32, #tpu.memory_space<vmem>>, vector<2x128xf32>
    tpu.vector_store %arg12[%c0_157, %c0_158], %253 {strides = array<i32>} : memref<2x128xf32, #tpu.memory_space<vmem>>, vector<2x128xf32>,
    return
  }
}

</mosaic_0001>

<llo_original>
// kernel: textcnn_forward.1
$region0: #{textcnn_forward.1}
  #allocation0 [shape = 'u32[]', space=smem, size = 0x4, offset = 0x4, fixed_abs, tag = 'smem constant byte address 0x4 - core index']
  #allocation1 [shape = 'u32[144,128]{1,0:T(1,128)}', space=vmem, size = 0x12000, scoped, tag = 'internal scratch']
  #allocation2 [shape = 'f32[16,32]{1,0:T(8,128)}', space=vmem, size = 0x2000, scoped, tag = 'scratch operand']
  #allocation3 [shape = 's32[16]{0}', space=sflag, size = 0x40, scoped, tag = 'scratch operand']
  #allocation4 [shape = 's32[1]{0}', space=sflag, size = 0x4, scoped, tag = 'scoped memory for textcnn_forward.1']
  #allocation5 [shape = 'u8[512]{0}', space=smem, size = 0x200, scoped, tag = 'prefetched SMEM operand 0']
  #allocation8 [shape = 's32[]', space=sflag, size = 0x4, offset = 0, fixed_abs, tag = 'sflag constant byte address 0x0 - dummy sync flag']
  #allocation9 [shape = 's32[]', space=sflag, size = 0x4, offset = 0, fixed_abs, tag = 'sflag constant byte address 0x0 - dummy sync flag']
  #allocation10 [shape = 's32[]', space=sflag, size = 0x4, offset = 0, fixed_abs, tag = 'sflag constant byte address 0x0 - dummy sync flag']
  #allocation11 [shape = 's32[]', space=sflag, size = 0x4, offset = 0, fixed_abs, tag = 'sflag constant byte address 0x0 - dummy sync flag']
  #allocation12 [shape = 's32[]', space=sflag, size = 0x4, offset = 0, fixed_abs, tag = 'sflag constant byte address 0x0 - dummy sync flag']
  #allocation13 [shape = 's32[]', space=sflag, size = 0x4, offset = 0, fixed_abs, tag = 'sflag constant byte address 0x0 - dummy sync flag']
  #allocation14 [shape = 's32[]', space=sflag, size = 0x4, offset = 0, fixed_abs, tag = 'sflag constant byte address 0x0 - dummy sync flag']
  #allocation15 [shape = 's32[]', space=sflag, size = 0x4, offset = 0, fixed_abs, tag = 'sflag constant byte address 0x0 - dummy sync flag']
  #allocation16 [shape = 's32[]', space=sflag, size = 0x4, offset = 0, fixed_abs, tag = 'sflag constant byte address 0x0 - dummy sync flag']
  #allocation17 [shape = 's32[]', space=sflag, size = 0x4, offset = 0, fixed_abs, tag = 'sflag constant byte address 0x0 - dummy sync flag']
  #allocation18 [shape = 's32[]', space=sflag, size = 0x4, offset = 0, fixed_abs, tag = 'sflag constant byte address 0x0 - dummy sync flag']
  #allocation19 [shape = 's32[]', space=sflag, size = 0x4, offset = 0, fixed_abs, tag = 'sflag constant byte address 0x0 - dummy sync flag']
  #allocation20 [shape = 's32[]', space=sflag, size = 0x4, offset = 0, fixed_abs, tag = 'sflag constant byte address 0x0 - dummy sync flag']
  #allocation21 [shape = 's32[]', space=sflag, size = 0x4, offset = 0, fixed_abs, tag = 'sflag constant byte address 0x0 - dummy sync flag']
  #allocation22 [shape = 's32[]', space=sflag, size = 0x4, offset = 0, fixed_abs, tag = 'sflag constant byte address 0x0 - dummy sync flag']
  #allocation23 [shape = 's32[]', space=sflag, size = 0x4, offset = 0, fixed_abs, tag = 'sflag constant byte address 0x0 - dummy sync flag']
  %s0 = inlined_call_operand.vmem [shape: s32[16], index: 0, kind: input, shape index: {}]
  %s1 = inlined_call_operand.vmem [shape: f32[128256,32], index: 1, kind: input, shape index: {}]
  %s2 = inlined_call_operand.vmem [shape: bf16[3,32,128], index: 2, kind: input, shape index: {}]
  %s3 = inlined_call_operand.vmem [shape: f32[1,128], index: 3, kind: input, shape index: {}]
  %s4 = inlined_call_operand.vmem [shape: bf16[4,32,128], index: 4, kind: input, shape index: {}]
  %s5 = inlined_call_operand.vmem [shape: f32[1,128], index: 5, kind: input, shape index: {}]
  %s6 = inlined_call_operand.vmem [shape: bf16[5,32,128], index: 6, kind: input, shape index: {}]
  %s7 = inlined_call_operand.vmem [shape: f32[1,128], index: 7, kind: input, shape index: {}]
  %s8 = inlined_call_operand.vmem [shape: bf16[128,128], index: 8, kind: input, shape index: {}]
  %s9 = inlined_call_operand.vmem [shape: bf16[128,128], index: 9, kind: input, shape index: {}]
  %s10 = inlined_call_operand.vmem [shape: bf16[128,128], index: 10, kind: input, shape index: {}]
  %s11 = inlined_call_operand.vmem [shape: f32[1,128], index: 11, kind: input, shape index: {}]
  %s12 = inlined_call_operand.hbm [shape: f32[2,128], index: 12, kind: output, shape index: {}]
  %s13 = sld [smem:[#allocation0]]
  $region530: #{textcnn_forward.1} parent=0
    _
  %s15 = ssub.s32 1, %s13
  %s16 = scalar_select 0, %s15, %s13
  %s17 = sshll.u32 %s0, 4
  %s18 = int_to_ptr.vmem [resolvable:$true] %s17
  %20 = dma.vmem_to_smem %s18, 16, [#allocation5], [#allocation4]
  %21 = dma.done [#allocation4], 16
  %22 = sfence
  $region1: #{textcnn_forward.1} parent=0
    #allocation6 [shape = 'u8[1024]{0}', space=vmem, size = 0x400, scoped, tag = 'output window, operand 0, single buffered']
    #allocation7 [shape = 's32[1]{0}', space=sflag, size = 0x4, scoped, tag = 'scoped memory for textcnn_forward.1']
    %23 = vsyncpa [#allocation7], 0
    // Predicated region
    $region2: #{textcnn_forward.1} parent=1 // pred_check
      _
    $region3: #{textcnn_forward.1} parent=1 // pred_check_branch
      %25 = sbr.rel (0) target = $region5
    $region4: #{textcnn_forward.1} parent=1 // pred_region
      _
    $region5: #{textcnn_forward.1} parent=1 // pred_fallthru
      _
    // Predicated region
    $region6: #{textcnn_forward.1} parent=1 // pred_check
      _
    $region7: #{textcnn_forward.1} parent=1 // pred_check_branch
      %27 = sbr.rel (0) target = $region9
    $region8: #{textcnn_forward.1} parent=1 // pred_region
      _
    $region9: #{textcnn_forward.1} parent=1 // pred_fallthru
      _
    // Predicated region
    $region10: #{textcnn_forward.1} parent=1 // pred_check
      _
    $region11: #{textcnn_forward.1} parent=1 // pred_check_branch
      %29 = sbr.rel (0) target = $region13
    $region12: #{textcnn_forward.1} parent=1 // pred_region
      _
    $region13: #{textcnn_forward.1} parent=1 // pred_fallthru
      _
    // Predicated region
    $region14: #{textcnn_forward.1} parent=1 // pred_check
      _
    $region15: #{textcnn_forward.1} parent=1 // pred_check_branch
      %31 = sbr.rel (0) target = $region17
    $region16: #{textcnn_forward.1} parent=1 // pred_region
      _
    $region17: #{textcnn_forward.1} parent=1 // pred_fallthru
      _
    // Predicated region
    $region18: #{textcnn_forward.1} parent=1 // pred_check
      _
    $region19: #{textcnn_forward.1} parent=1 // pred_check_branch
      %33 = sbr.rel (0) target = $region21
    $region20: #{textcnn_forward.1} parent=1 // pred_region
      _
    $region21: #{textcnn_forward.1} parent=1 // pred_fallthru
      _
    // Predicated region
    $region22: #{textcnn_forward.1} parent=1 // pred_check
      _
    $region23: #{textcnn_forward.1} parent=1 // pred_check_branch
      %35 = sbr.rel (0) target = $region25
    $region24: #{textcnn_forward.1} parent=1 // pred_region
      _
    $region25: #{textcnn_forward.1} parent=1 // pred_fallthru
      _
    // Predicated region
    $region26: #{textcnn_forward.1} parent=1 // pred_check
      _
    $region27: #{textcnn_forward.1} parent=1 // pred_check_branch
      %37 = sbr.rel (0) target = $region29
    $region28: #{textcnn_forward.1} parent=1 // pred_region
      _
    $region29: #{textcnn_forward.1} parent=1 // pred_fallthru
      _
    // Predicated region
    $region30: #{textcnn_forward.1} parent=1 // pred_check
      _
    $region31: #{textcnn_forward.1} parent=1 // pred_check_branch
      %39 = sbr.rel (0) target = $region33
    $region32: #{textcnn_forward.1} parent=1 // pred_region
      _
    $region33: #{textcnn_forward.1} parent=1 // pred_fallthru
      _
    // Predicated region
    $region34: #{textcnn_forward.1} parent=1 // pred_check
      _
    $region35: #{textcnn_forward.1} parent=1 // pred_check_branch
      %41 = sbr.rel (0) target = $region37
    $region36: #{textcnn_forward.1} parent=1 // pred_region
      _
    $region37: #{textcnn_forward.1} parent=1 // pred_fallthru
      _
    // Predicated region
    $region38: #{textcnn_forward.1} parent=1 // pred_check
      _
    $region39: #{textcnn_forward.1} parent=1 // pred_check_branch
      %43 = sbr.rel (0) target = $region41
    $region40: #{textcnn_forward.1} parent=1 // pred_region
      _
    $region41: #{textcnn_forward.1} parent=1 // pred_fallthru
      _
    %s45 = sld [smem:[#allocation5]]
    %s46 = scalar_lea.vmem %s1, %s45
    %p48 = scmp.lt.u32.totalorder 1, 8
    %p49 = pneg %p48
    // Predicated region
    $region42: #{textcnn_forward.1} parent=1 // pred_check
      _
    $region43: #{textcnn_forward.1} parent=1 // pred_check_branch
      %51 = sbr.rel (%p48) target = $region45
    $region44: #{textcnn_forward.1} parent=1 // pred_region
      %s67 = sand.u32 1, 7
      %p68 = scmp.eq.s32.totalorder %s67, 0
      %p69 = pneg %p68
      // Predicated region
      $region57: #{textcnn_forward.1} parent=44 // pred_check
        _
      $region58: #{textcnn_forward.1} parent=44 // pred_check_branch
        %71 = sbr.rel (%p68) target = $region60
      $region59: #{textcnn_forward.1} parent=44 // pred_region
        %s72 = sand.u32 1, 7
        %s73 = ssub.s32 1, %s72
        %s74 = scalar_lea.vmem %s46, %s73
        %s75 = ssub.s32 1, %s72
        %s76 = scalar_lea.vmem [#allocation2], %s75
        %s77 = sshll.u32 1, %s72
        %s78 = ssub.s32 %s77, 1
        loop: start=0, step=1, limit=1
        $region61: #{textcnn_forward.1} parent=59 // loop_pre_header
          _
        $region62: #{textcnn_forward.1} parent=59 // loop_header
          %s80 = sphi 0, %s84
          %p81 = scmp.ge.s32.totalorder %s80, 1
          %s85 = sphi %s74, %s74
          %s86 = sphi %s76, %s76
        $region63: #{textcnn_forward.1} parent=59 // loop_header_branch
          %83 = sbr.rel (%p81) target = $region67
        $region64: #{textcnn_forward.1} parent=59 // loop_body
          %v87 = vld [vmem:[%s85] sm:%s78]
          %88 = vst [vmem:[%s86] sm:%s78] %v87
        $region65: #{textcnn_forward.1} parent=59 // loop_footer
          %s84 = sadd.s32 1, %s80
        $region66: #{textcnn_forward.1} parent=59 // loop_footer_branch
          %79 = sbr.rel target = $region62
        $region67: #{textcnn_forward.1} parent=59 // loop_exit
          _
      $region60: #{textcnn_forward.1} parent=44 // pred_fallthru
        _
    $region45: #{textcnn_forward.1} parent=1 // pred_fallthru
      _
    // Predicated region
    $region46: #{textcnn_forward.1} parent=1 // pred_check
      %p52 = pneg %p48
    $region47: #{textcnn_forward.1} parent=1 // pred_check_branch
      %54 = sbr.rel (%p52) target = $region49
    $region48: #{textcnn_forward.1} parent=1 // pred_region
      %s55 = sshll.u32 1, 1
      %s56 = ssub.s32 %s55, 1
      loop: start=0, step=1, limit=1
      $region50: #{textcnn_forward.1} parent=48 // loop_pre_header
        _
      $region51: #{textcnn_forward.1} parent=48 // loop_header
        %s58 = sphi 0, %s62
        %p59 = scmp.ge.s32.totalorder %s58, 1
        %s63 = sphi %s46, %s46
        %s64 = sphi [#allocation2], [#allocation2]
      $region52: #{textcnn_forward.1} parent=48 // loop_header_branch
        %61 = sbr.rel (%p59) target = $region56
      $region53: #{textcnn_forward.1} parent=48 // loop_body
        %v65 = vld [vmem:[%s63] sm:%s56]
        %66 = vst [vmem:[%s64] sm:%s56] %v65
      $region54: #{textcnn_forward.1} parent=48 // loop_footer
        %s62 = sadd.s32 1, %s58
      $region55: #{textcnn_forward.1} parent=48 // loop_footer_branch
        %57 = sbr.rel target = $region51
      $region56: #{textcnn_forward.1} parent=48 // loop_exit
        _
    $region49: #{textcnn_forward.1} parent=1 // pred_fallthru
      _
    // Predicated region
    $region68: #{textcnn_forward.1} parent=1 // pred_check
      _
    $region69: #{textcnn_forward.1} parent=1 // pred_check_branch
      %91 = sbr.rel (0) target = $region71
    $region70: #{textcnn_forward.1} parent=1 // pred_region
      %92 = vsyncadd [#allocation3], 16
    $region71: #{textcnn_forward.1} parent=1 // pred_fallthru
      _
    %s93 = sld [smem:[#allocation5 + $0x1]]
    %s94 = scalar_lea.vmem %s1, %s93
    %s95 = scalar_lea.vmem [#allocation2], 1
    %s96 = scalar_lea.sflag [#allocation3], 1
    %p98 = scmp.lt.u32.totalorder 1, 8
    %p99 = pneg %p98
    // Predicated region
    $region72: #{textcnn_forward.1} parent=1 // pred_check
      _
    $region73: #{textcnn_forward.1} parent=1 // pred_check_branch
      %101 = sbr.rel (%p98) target = $region75
    $region74: #{textcnn_forward.1} parent=1 // pred_region
      %s117 = sand.u32 1, 7
      %p118 = scmp.eq.s32.totalorder %s117, 0
      %p119 = pneg %p118
      // Predicated region
      $region87: #{textcnn_forward.1} parent=74 // pred_check
        _
      $region88: #{textcnn_forward.1} parent=74 // pred_check_branch
        %121 = sbr.rel (%p118) target = $region90
      $region89: #{textcnn_forward.1} parent=74 // pred_region
        %s122 = sand.u32 1, 7
        %s123 = ssub.s32 1, %s122
        %s124 = scalar_lea.vmem %s94, %s123
        %s125 = ssub.s32 1, %s122
        %s126 = scalar_lea.vmem %s95, %s125 [#allocation2]
        %s127 = sshll.u32 1, %s122
        %s128 = ssub.s32 %s127, 1
        loop: start=0, step=1, limit=1
        $region91: #{textcnn_forward.1} parent=89 // loop_pre_header
          _
        $region92: #{textcnn_forward.1} parent=89 // loop_header
          %s130 = sphi 0, %s134
          %p131 = scmp.ge.s32.totalorder %s130, 1
          %s135 = sphi %s124, %s124
          %s136 = sphi %s126, %s126
        $region93: #{textcnn_forward.1} parent=89 // loop_header_branch
          %133 = sbr.rel (%p131) target = $region97
        $region94: #{textcnn_forward.1} parent=89 // loop_body
          %v137 = vld [vmem:[%s135] sm:%s128]
          %138 = vst [vmem:[%s136] sm:%s128] %v137
        $region95: #{textcnn_forward.1} parent=89 // loop_footer
          %s134 = sadd.s32 1, %s130
        $region96: #{textcnn_forward.1} parent=89 // loop_footer_branch
          %129 = sbr.rel target = $region92
        $region97: #{textcnn_forward.1} parent=89 // loop_exit
          _
      $region90: #{textcnn_forward.1} parent=74 // pred_fallthru
        _
    $region75: #{textcnn_forward.1} parent=1 // pred_fallthru
      _
    // Predicated region
    $region76: #{textcnn_forward.1} parent=1 // pred_check
      %p102 = pneg %p98
    $region77: #{textcnn_forward.1} parent=1 // pred_check_branch
      %104 = sbr.rel (%p102) target = $region79
    $region78: #{textcnn_forward.1} parent=1 // pred_region
      %s105 = sshll.u32 1, 1
      %s106 = ssub.s32 %s105, 1
      loop: start=0, step=1, limit=1
      $region80: #{textcnn_forward.1} parent=78 // loop_pre_header
        _
      $region81: #{textcnn_forward.1} parent=78 // loop_header
        %s108 = sphi 0, %s112
        %p109 = scmp.ge.s32.totalorder %s108, 1
        %s113 = sphi %s94, %s94
        %s114 = sphi %s95, %s95
      $region82: #{textcnn_forward.1} parent=78 // loop_header_branch
        %111 = sbr.rel (%p109) target = $region86
      $region83: #{textcnn_forward.1} parent=78 // loop_body
        %v115 = vld [vmem:[%s113] sm:%s106]
        %116 = vst [vmem:[%s114] sm:%s106] %v115
      $region84: #{textcnn_forward.1} parent=78 // loop_footer
        %s112 = sadd.s32 1, %s108
      $region85: #{textcnn_forward.1} parent=78 // loop_footer_branch
        %107 = sbr.rel target = $region81
      $region86: #{textcnn_forward.1} parent=78 // loop_exit
        _
    $region79: #{textcnn_forward.1} parent=1 // pred_fallthru
      _
    // Predicated region
    $region98: #{textcnn_forward.1} parent=1 // pred_check
      _
    $region99: #{textcnn_forward.1} parent=1 // pred_check_branch
      %141 = sbr.rel (0) target = $region101
    $region100: #{textcnn_forward.1} parent=1 // pred_region
      %142 = vsyncadd %s96, 16
    $region101: #{textcnn_forward.1} parent=1 // pred_fallthru
      _
    %s143 = sld [smem:[#allocation5 + $0x2]]
    %s144 = scalar_lea.vmem %s1, %s143
    %s145 = scalar_lea.vmem [#allocation2], 2
    %s146 = scalar_lea.sflag [#allocation3], 2
    %p148 = scmp.lt.u32.totalorder 1, 8
    %p149 = pneg %p148
    // Predicated region
    $region102: #{textcnn_forward.1} parent=1 // pred_check
      _
    $region103: #{textcnn_forward.1} parent=1 // pred_check_branch
      %151 = sbr.rel (%p148) target = $region105
    $region104: #{textcnn_forward.1} parent=1 // pred_region
      %s167 = sand.u32 1, 7
      %p168 = scmp.eq.s32.totalorder %s167, 0
      %p169 = pneg %p168
      // Predicated region
      $region117: #{textcnn_forward.1} parent=104 // pred_check
        _
      $region118: #{textcnn_forward.1} parent=104 // pred_check_branch
        %171 = sbr.rel (%p168) target = $region120
      $region119: #{textcnn_forward.1} parent=104 // pred_region
        %s172 = sand.u32 1, 7
        %s173 = ssub.s32 1, %s172
        %s174 = scalar_lea.vmem %s144, %s173
        %s175 = ssub.s32 1, %s172
        %s176 = scalar_lea.vmem %s145, %s175 [#allocation2]
        %s177 = sshll.u32 1, %s172
        %s178 = ssub.s32 %s177, 1
        loop: start=0, step=1, limit=1
        $region121: #{textcnn_forward.1} parent=119 // loop_pre_header
          _
        $region122: #{textcnn_forward.1} parent=119 // loop_header
          %s180 = sphi 0, %s184
          %p181 = scmp.ge.s32.totalorder %s180, 1
          %s185 = sphi %s174, %s174
          %s186 = sphi %s176, %s176
        $region123: #{textcnn_forward.1} parent=119 // loop_header_branch
          %183 = sbr.rel (%p181) target = $region127
        $region124: #{textcnn_forward.1} parent=119 // loop_body
          %v187 = vld [vmem:[%s185] sm:%s178]
          %188 = vst [vmem:[%s186] sm:%s178] %v187
        $region125: #{textcnn_forward.1} parent=119 // loop_footer
          %s184 = sadd.s32 1, %s180
        $region126: #{textcnn_forward.1} parent=119 // loop_footer_branch
          %179 = sbr.rel target = $region122
        $region127: #{textcnn_forward.1} parent=119 // loop_exit
          _
      $region120: #{textcnn_forward.1} parent=104 // pred_fallthru
        _
    $region105: #{textcnn_forward.1} parent=1 // pred_fallthru
      _
    // Predicated region
    $region106: #{textcnn_forward.1} parent=1 // pred_check
      %p152 = pneg %p148
    $region107: #{textcnn_forward.1} parent=1 // pred_check_branch
      %154 = sbr.rel (%p152) target = $region109
    $region108: #{textcnn_forward.1} parent=1 // pred_region
      %s155 = sshll.u32 1, 1
      %s156 = ssub.s32 %s155, 1
      loop: start=0, step=1, limit=1
      $region110: #{textcnn_forward.1} parent=108 // loop_pre_header
        _
      $region111: #{textcnn_forward.1} parent=108 // loop_header
        %s158 = sphi 0, %s162
        %p159 = scmp.ge.s32.totalorder %s158, 1
        %s163 = sphi %s144, %s144
        %s164 = sphi %s145, %s145
      $region112: #{textcnn_forward.1} parent=108 // loop_header_branch
        %161 = sbr.rel (%p159) target = $region116
      $region113: #{textcnn_forward.1} parent=108 // loop_body
        %v165 = vld [vmem:[%s163] sm:%s156]
        %166 = vst [vmem:[%s164] sm:%s156] %v165
      $region114: #{textcnn_forward.1} parent=108 // loop_footer
        %s162 = sadd.s32 1, %s158
      $region115: #{textcnn_forward.1} parent=108 // loop_footer_branch
        %157 = sbr.rel target = $region111
      $region116: #{textcnn_forward.1} parent=108 // loop_exit
        _
    $region109: #{textcnn_forward.1} parent=1 // pred_fallthru
      _
    // Predicated region
    $region128: #{textcnn_forward.1} parent=1 // pred_check
      _
    $region129: #{textcnn_forward.1} parent=1 // pred_check_branch
      %191 = sbr.rel (0) target = $region131
    $region130: #{textcnn_forward.1} parent=1 // pred_region
      %192 = vsyncadd %s146, 16
    $region131: #{textcnn_forward.1} parent=1 // pred_fallthru
      _
    %s193 = sld [smem:[#allocation5 + $0x3]]
    %s194 = scalar_lea.vmem %s1, %s193
    %s195 = scalar_lea.vmem [#allocation2], 3
    %s196 = scalar_lea.sflag [#allocation3], 3
    %p198 = scmp.lt.u32.totalorder 1, 8
    %p199 = pneg %p198
    // Predicated region
    $region132: #{textcnn_forward.1} parent=1 // pred_check
      _
    $region133: #{textcnn_forward.1} parent=1 // pred_check_branch
      %201 = sbr.rel (%p198) target = $region135
    $region134: #{textcnn_forward.1} parent=1 // pred_region
      %s217 = sand.u32 1, 7
      %p218 = scmp.eq.s32.totalorder %s217, 0
      %p219 = pneg %p218
      // Predicated region
      $region147: #{textcnn_forward.1} parent=134 // pred_check
        _
      $region148: #{textcnn_forward.1} parent=134 // pred_check_branch
        %221 = sbr.rel (%p218) target = $region150
      $region149: #{textcnn_forward.1} parent=134 // pred_region
        %s222 = sand.u32 1, 7
        %s223 = ssub.s32 1, %s222
        %s224 = scalar_lea.vmem %s194, %s223
        %s225 = ssub.s32 1, %s222
        %s226 = scalar_lea.vmem %s195, %s225 [#allocation2]
        %s227 = sshll.u32 1, %s222
        %s228 = ssub.s32 %s227, 1
        loop: start=0, step=1, limit=1
        $region151: #{textcnn_forward.1} parent=149 // loop_pre_header
          _
        $region152: #{textcnn_forward.1} parent=149 // loop_header
          %s230 = sphi 0, %s234
          %p231 = scmp.ge.s32.totalorder %s230, 1
          %s235 = sphi %s224, %s224
          %s236 = sphi %s226, %s226
        $region153: #{textcnn_forward.1} parent=149 // loop_header_branch
          %233 = sbr.rel (%p231) target = $region157
        $region154: #{textcnn_forward.1} parent=149 // loop_body
          %v237 = vld [vmem:[%s235] sm:%s228]
          %238 = vst [vmem:[%s236] sm:%s228] %v237
        $region155: #{textcnn_forward.1} parent=149 // loop_footer
          %s234 = sadd.s32 1, %s230
        $region156: #{textcnn_forward.1} parent=149 // loop_footer_branch
          %229 = sbr.rel target = $region152
        $region157: #{textcnn_forward.1} parent=149 // loop_exit
          _
      $region150: #{textcnn_forward.1} parent=134 // pred_fallthru
        _
    $region135: #{textcnn_forward.1} parent=1 // pred_fallthru
      _
    // Predicated region
    $region136: #{textcnn_forward.1} parent=1 // pred_check
      %p202 = pneg %p198
    $region137: #{textcnn_forward.1} parent=1 // pred_check_branch
      %204 = sbr.rel (%p202) target = $region139
    $region138: #{textcnn_forward.1} parent=1 // pred_region
      %s205 = sshll.u32 1, 1
      %s206 = ssub.s32 %s205, 1
      loop: start=0, step=1, limit=1
      $region140: #{textcnn_forward.1} parent=138 // loop_pre_header
        _
      $region141: #{textcnn_forward.1} parent=138 // loop_header
        %s208 = sphi 0, %s212
        %p209 = scmp.ge.s32.totalorder %s208, 1
        %s213 = sphi %s194, %s194
        %s214 = sphi %s195, %s195
      $region142: #{textcnn_forward.1} parent=138 // loop_header_branch
        %211 = sbr.rel (%p209) target = $region146
      $region143: #{textcnn_forward.1} parent=138 // loop_body
        %v215 = vld [vmem:[%s213] sm:%s206]
        %216 = vst [vmem:[%s214] sm:%s206] %v215
      $region144: #{textcnn_forward.1} parent=138 // loop_footer
        %s212 = sadd.s32 1, %s208
      $region145: #{textcnn_forward.1} parent=138 // loop_footer_branch
        %207 = sbr.rel target = $region141
      $region146: #{textcnn_forward.1} parent=138 // loop_exit
        _
    $region139: #{textcnn_forward.1} parent=1 // pred_fallthru
      _
    // Predicated region
    $region158: #{textcnn_forward.1} parent=1 // pred_check
      _
    $region159: #{textcnn_forward.1} parent=1 // pred_check_branch
      %241 = sbr.rel (0) target = $region161
    $region160: #{textcnn_forward.1} parent=1 // pred_region
      %242 = vsyncadd %s196, 16
    $region161: #{textcnn_forward.1} parent=1 // pred_fallthru
      _
    %s243 = sld [smem:[#allocation5 + $0x4]]
    %s244 = scalar_lea.vmem %s1, %s243
    %s245 = scalar_lea.vmem [#allocation2], 4
    %s246 = scalar_lea.sflag [#allocation3], 4
    %p248 = scmp.lt.u32.totalorder 1, 8
    %p249 = pneg %p248
    // Predicated region
    $region162: #{textcnn_forward.1} parent=1 // pred_check
      _
    $region163: #{textcnn_forward.1} parent=1 // pred_check_branch
      %251 = sbr.rel (%p248) target = $region165
    $region164: #{textcnn_forward.1} parent=1 // pred_region
      %s267 = sand.u32 1, 7
      %p268 = scmp.eq.s32.totalorder %s267, 0
      %p269 = pneg %p268
      // Predicated region
      $region177: #{textcnn_forward.1} parent=164 // pred_check
        _
      $region178: #{textcnn_forward.1} parent=164 // pred_check_branch
        %271 = sbr.rel (%p268) target = $region180
      $region179: #{textcnn_forward.1} parent=164 // pred_region
        %s272 = sand.u32 1, 7
        %s273 = ssub.s32 1, %s272
        %s274 = scalar_lea.vmem %s244, %s273
        %s275 = ssub.s32 1, %s272
        %s276 = scalar_lea.vmem %s245, %s275 [#allocation2]
        %s277 = sshll.u32 1, %s272
        %s278 = ssub.s32 %s277, 1
        loop: start=0, step=1, limit=1
        $region181: #{textcnn_forward.1} parent=179 // loop_pre_header
          _
        $region182: #{textcnn_forward.1} parent=179 // loop_header
          %s280 = sphi 0, %s284
          %p281 = scmp.ge.s32.totalorder %s280, 1
          %s285 = sphi %s274, %s274
          %s286 = sphi %s276, %s276
        $region183: #{textcnn_forward.1} parent=179 // loop_header_branch
          %283 = sbr.rel (%p281) target = $region187
        $region184: #{textcnn_forward.1} parent=179 // loop_body
          %v287 = vld [vmem:[%s285] sm:%s278]
          %288 = vst [vmem:[%s286] sm:%s278] %v287
        $region185: #{textcnn_forward.1} parent=179 // loop_footer
          %s284 = sadd.s32 1, %s280
        $region186: #{textcnn_forward.1} parent=179 // loop_footer_branch
          %279 = sbr.rel target = $region182
        $region187: #{textcnn_forward.1} parent=179 // loop_exit
          _
      $region180: #{textcnn_forward.1} parent=164 // pred_fallthru
        _
    $region165: #{textcnn_forward.1} parent=1 // pred_fallthru
      _
    // Predicated region
    $region166: #{textcnn_forward.1} parent=1 // pred_check
      %p252 = pneg %p248
    $region167: #{textcnn_forward.1} parent=1 // pred_check_branch
      %254 = sbr.rel (%p252) target = $region169
    $region168: #{textcnn_forward.1} parent=1 // pred_region
      %s255 = sshll.u32 1, 1
      %s256 = ssub.s32 %s255, 1
      loop: start=0, step=1, limit=1
      $region170: #{textcnn_forward.1} parent=168 // loop_pre_header
        _
      $region171: #{textcnn_forward.1} parent=168 // loop_header
        %s258 = sphi 0, %s262
        %p259 = scmp.ge.s32.totalorder %s258, 1
        %s263 = sphi %s244, %s244
        %s264 = sphi %s245, %s245
      $region172: #{textcnn_forward.1} parent=168 // loop_header_branch
        %261 = sbr.rel (%p259) target = $region176
      $region173: #{textcnn_forward.1} parent=168 // loop_body
        %v265 = vld [vmem:[%s263] sm:%s256]
        %266 = vst [vmem:[%s264] sm:%s256] %v265
      $region174: #{textcnn_forward.1} parent=168 // loop_footer
        %s262 = sadd.s32 1, %s258
      $region175: #{textcnn_forward.1} parent=168 // loop_footer_branch
        %257 = sbr.rel target = $region171
      $region176: #{textcnn_forward.1} parent=168 // loop_exit
        _
    $region169: #{textcnn_forward.1} parent=1 // pred_fallthru
      _
    // Predicated region
    $region188: #{textcnn_forward.1} parent=1 // pred_check
      _
    $region189: #{textcnn_forward.1} parent=1 // pred_check_branch
      %291 = sbr.rel (0) target = $region191
    $region190: #{textcnn_forward.1} parent=1 // pred_region
      %292 = vsyncadd %s246, 16
    $region191: #{textcnn_forward.1} parent=1 // pred_fallthru
      _
    %s293 = sld [smem:[#allocation5 + $0x5]]
    %s294 = scalar_lea.vmem %s1, %s293
    %s295 = scalar_lea.vmem [#allocation2], 5
    %s296 = scalar_lea.sflag [#allocation3], 5
    %p298 = scmp.lt.u32.totalorder 1, 8
    %p299 = pneg %p298
    // Predicated region
    $region192: #{textcnn_forward.1} parent=1 // pred_check
      _
    $region193: #{textcnn_forward.1} parent=1 // pred_check_branch
      %301 = sbr.rel (%p298) target = $region195
    $region194: #{textcnn_forward.1} parent=1 // pred_region
      %s317 = sand.u32 1, 7
      %p318 = scmp.eq.s32.totalorder %s317, 0
      %p319 = pneg %p318
      // Predicated region
      $region207: #{textcnn_forward.1} parent=194 // pred_check
        _
      $region208: #{textcnn_forward.1} parent=194 // pred_check_branch
        %321 = sbr.rel (%p318) target = $region210
      $region209: #{textcnn_forward.1} parent=194 // pred_region
        %s322 = sand.u32 1, 7
        %s323 = ssub.s32 1, %s322
        %s324 = scalar_lea.vmem %s294, %s323
        %s325 = ssub.s32 1, %s322
        %s326 = scalar_lea.vmem %s295, %s325 [#allocation2]
        %s327 = sshll.u32 1, %s322
        %s328 = ssub.s32 %s327, 1
        loop: start=0, step=1, limit=1
        $region211: #{textcnn_forward.1} parent=209 // loop_pre_header
          _
        $region212: #{textcnn_forward.1} parent=209 // loop_header
          %s330 = sphi 0, %s334
          %p331 = scmp.ge.s32.totalorder %s330, 1
          %s335 = sphi %s324, %s324
          %s336 = sphi %s326, %s326
        $region213: #{textcnn_forward.1} parent=209 // loop_header_branch
          %333 = sbr.rel (%p331) target = $region217
        $region214: #{textcnn_forward.1} parent=209 // loop_body
          %v337 = vld [vmem:[%s335] sm:%s328]
          %338 = vst [vmem:[%s336] sm:%s328] %v337
        $region215: #{textcnn_forward.1} parent=209 // loop_footer
          %s334 = sadd.s32 1, %s330
        $region216: #{textcnn_forward.1} parent=209 // loop_footer_branch
          %329 = sbr.rel target = $region212
        $region217: #{textcnn_forward.1} parent=209 // loop_exit
          _
      $region210: #{textcnn_forward.1} parent=194 // pred_fallthru
        _
    $region195: #{textcnn_forward.1} parent=1 // pred_fallthru
      _
    // Predicated region
    $region196: #{textcnn_forward.1} parent=1 // pred_check
      %p302 = pneg %p298
    $region197: #{textcnn_forward.1} parent=1 // pred_check_branch
      %304 = sbr.rel (%p302) target = $region199
    $region198: #{textcnn_forward.1} parent=1 // pred_region
      %s305 = sshll.u32 1, 1
      %s306 = ssub.s32 %s305, 1
      loop: start=0, step=1, limit=1
      $region200: #{textcnn_forward.1} parent=198 // loop_pre_header
        _
      $region201: #{textcnn_forward.1} parent=198 // loop_header
        %s308 = sphi 0, %s312
        %p309 = scmp.ge.s32.totalorder %s308, 1
        %s313 = sphi %s294, %s294
        %s314 = sphi %s295, %s295
      $region202: #{textcnn_forward.1} parent=198 // loop_header_branch
        %311 = sbr.rel (%p309) target = $region206
      $region203: #{textcnn_forward.1} parent=198 // loop_body
        %v315 = vld [vmem:[%s313] sm:%s306]
        %316 = vst [vmem:[%s314] sm:%s306] %v315
      $region204: #{textcnn_forward.1} parent=198 // loop_footer
        %s312 = sadd.s32 1, %s308
      $region205: #{textcnn_forward.1} parent=198 // loop_footer_branch
        %307 = sbr.rel target = $region201
      $region206: #{textcnn_forward.1} parent=198 // loop_exit
        _
    $region199: #{textcnn_forward.1} parent=1 // pred_fallthru
      _
    // Predicated region
    $region218: #{textcnn_forward.1} parent=1 // pred_check
      _
    $region219: #{textcnn_forward.1} parent=1 // pred_check_branch
      %341 = sbr.rel (0) target = $region221
    $region220: #{textcnn_forward.1} parent=1 // pred_region
      %342 = vsyncadd %s296, 16
    $region221: #{textcnn_forward.1} parent=1 // pred_fallthru
      _
    %s343 = sld [smem:[#allocation5 + $0x6]]
    %s344 = scalar_lea.vmem %s1, %s343
    %s345 = scalar_lea.vmem [#allocation2], 6
    %s346 = scalar_lea.sflag [#allocation3], 6
    %p348 = scmp.lt.u32.totalorder 1, 8
    %p349 = pneg %p348
    // Predicated region
    $region222: #{textcnn_forward.1} parent=1 // pred_check
      _
    $region223: #{textcnn_forward.1} parent=1 // pred_check_branch
      %351 = sbr.rel (%p348) target = $region225
    $region224: #{textcnn_forward.1} parent=1 // pred_region
      %s367 = sand.u32 1, 7
      %p368 = scmp.eq.s32.totalorder %s367, 0
      %p369 = pneg %p368
      // Predicated region
      $region237: #{textcnn_forward.1} parent=224 // pred_check
        _
      $region238: #{textcnn_forward.1} parent=224 // pred_check_branch
        %371 = sbr.rel (%p368) target = $region240
      $region239: #{textcnn_forward.1} parent=224 // pred_region
        %s372 = sand.u32 1, 7
        %s373 = ssub.s32 1, %s372
        %s374 = scalar_lea.vmem %s344, %s373
        %s375 = ssub.s32 1, %s372
        %s376 = scalar_lea.vmem %s345, %s375 [#allocation2]
        %s377 = sshll.u32 1, %s372
        %s378 = ssub.s32 %s377, 1
        loop: start=0, step=1, limit=1
        $region241: #{textcnn_forward.1} parent=239 // loop_pre_header
          _
        $region242: #{textcnn_forward.1} parent=239 // loop_header
          %s380 = sphi 0, %s384
          %p381 = scmp.ge.s32.totalorder %s380, 1
          %s385 = sphi %s374, %s374
          %s386 = sphi %s376, %s376
        $region243: #{textcnn_forward.1} parent=239 // loop_header_branch
          %383 = sbr.rel (%p381) target = $region247
        $region244: #{textcnn_forward.1} parent=239 // loop_body
          %v387 = vld [vmem:[%s385] sm:%s378]
          %388 = vst [vmem:[%s386] sm:%s378] %v387
        $region245: #{textcnn_forward.1} parent=239 // loop_footer
          %s384 = sadd.s32 1, %s380
        $region246: #{textcnn_forward.1} parent=239 // loop_footer_branch
          %379 = sbr.rel target = $region242
        $region247: #{textcnn_forward.1} parent=239 // loop_exit
          _
      $region240: #{textcnn_forward.1} parent=224 // pred_fallthru
        _
    $region225: #{textcnn_forward.1} parent=1 // pred_fallthru
      _
    // Predicated region
    $region226: #{textcnn_forward.1} parent=1 // pred_check
      %p352 = pneg %p348
    $region227: #{textcnn_forward.1} parent=1 // pred_check_branch
      %354 = sbr.rel (%p352) target = $region229
    $region228: #{textcnn_forward.1} parent=1 // pred_region
      %s355 = sshll.u32 1, 1
      %s356 = ssub.s32 %s355, 1
      loop: start=0, step=1, limit=1
      $region230: #{textcnn_forward.1} parent=228 // loop_pre_header
        _
      $region231: #{textcnn_forward.1} parent=228 // loop_header
        %s358 = sphi 0, %s362
        %p359 = scmp.ge.s32.totalorder %s358, 1
        %s363 = sphi %s344, %s344
        %s364 = sphi %s345, %s345
      $region232: #{textcnn_forward.1} parent=228 // loop_header_branch
        %361 = sbr.rel (%p359) target = $region236
      $region233: #{textcnn_forward.1} parent=228 // loop_body
        %v365 = vld [vmem:[%s363] sm:%s356]
        %366 = vst [vmem:[%s364] sm:%s356] %v365
      $region234: #{textcnn_forward.1} parent=228 // loop_footer
        %s362 = sadd.s32 1, %s358
      $region235: #{textcnn_forward.1} parent=228 // loop_footer_branch
        %357 = sbr.rel target = $region231
      $region236: #{textcnn_forward.1} parent=228 // loop_exit
        _
    $region229: #{textcnn_forward.1} parent=1 // pred_fallthru
      _
    // Predicated region
    $region248: #{textcnn_forward.1} parent=1 // pred_check
      _
    $region249: #{textcnn_forward.1} parent=1 // pred_check_branch
      %391 = sbr.rel (0) target = $region251
    $region250: #{textcnn_forward.1} parent=1 // pred_region
      %392 = vsyncadd %s346, 16
    $region251: #{textcnn_forward.1} parent=1 // pred_fallthru
      _
    %s393 = sld [smem:[#allocation5 + $0x7]]
    %s394 = scalar_lea.vmem %s1, %s393
    %s395 = scalar_lea.vmem [#allocation2], 7
    %s396 = scalar_lea.sflag [#allocation3], 7
    %p398 = scmp.lt.u32.totalorder 1, 8
    %p399 = pneg %p398
    // Predicated region
    $region252: #{textcnn_forward.1} parent=1 // pred_check
      _
    $region253: #{textcnn_forward.1} parent=1 // pred_check_branch
      %401 = sbr.rel (%p398) target = $region255
    $region254: #{textcnn_forward.1} parent=1 // pred_region
      %s417 = sand.u32 1, 7
      %p418 = scmp.eq.s32.totalorder %s417, 0
      %p419 = pneg %p418
      // Predicated region
      $region267: #{textcnn_forward.1} parent=254 // pred_check
        _
      $region268: #{textcnn_forward.1} parent=254 // pred_check_branch
        %421 = sbr.rel (%p418) target = $region270
      $region269: #{textcnn_forward.1} parent=254 // pred_region
        %s422 = sand.u32 1, 7
        %s423 = ssub.s32 1, %s422
        %s424 = scalar_lea.vmem %s394, %s423
        %s425 = ssub.s32 1, %s422
        %s426 = scalar_lea.vmem %s395, %s425 [#allocation2]
        %s427 = sshll.u32 1, %s422
        %s428 = ssub.s32 %s427, 1
        loop: start=0, step=1, limit=1
        $region271: #{textcnn_forward.1} parent=269 // loop_pre_header
          _
        $region272: #{textcnn_forward.1} parent=269 // loop_header
          %s430 = sphi 0, %s434
          %p431 = scmp.ge.s32.totalorder %s430, 1
          %s435 = sphi %s424, %s424
          %s436 = sphi %s426, %s426
        $region273: #{textcnn_forward.1} parent=269 // loop_header_branch
          %433 = sbr.rel (%p431) target = $region277
        $region274: #{textcnn_forward.1} parent=269 // loop_body
          %v437 = vld [vmem:[%s435] sm:%s428]
          %438 = vst [vmem:[%s436] sm:%s428] %v437
        $region275: #{textcnn_forward.1} parent=269 // loop_footer
          %s434 = sadd.s32 1, %s430
        $region276: #{textcnn_forward.1} parent=269 // loop_footer_branch
          %429 = sbr.rel target = $region272
        $region277: #{textcnn_forward.1} parent=269 // loop_exit
          _
      $region270: #{textcnn_forward.1} parent=254 // pred_fallthru
        _
    $region255: #{textcnn_forward.1} parent=1 // pred_fallthru
      _
    // Predicated region
    $region256: #{textcnn_forward.1} parent=1 // pred_check
      %p402 = pneg %p398
    $region257: #{textcnn_forward.1} parent=1 // pred_check_branch
      %404 = sbr.rel (%p402) target = $region259
    $region258: #{textcnn_forward.1} parent=1 // pred_region
      %s405 = sshll.u32 1, 1
      %s406 = ssub.s32 %s405, 1
      loop: start=0, step=1, limit=1
      $region260: #{textcnn_forward.1} parent=258 // loop_pre_header
        _
      $region261: #{textcnn_forward.1} parent=258 // loop_header
        %s408 = sphi 0, %s412
        %p409 = scmp.ge.s32.totalorder %s408, 1
        %s413 = sphi %s394, %s394
        %s414 = sphi %s395, %s395
      $region262: #{textcnn_forward.1} parent=258 // loop_header_branch
        %411 = sbr.rel (%p409) target = $region266
      $region263: #{textcnn_forward.1} parent=258 // loop_body
        %v415 = vld [vmem:[%s413] sm:%s406]
        %416 = vst [vmem:[%s414] sm:%s406] %v415
      $region264: #{textcnn_forward.1} parent=258 // loop_footer
        %s412 = sadd.s32 1, %s408
      $region265: #{textcnn_forward.1} parent=258 // loop_footer_branch
        %407 = sbr.rel target = $region261
      $region266: #{textcnn_forward.1} parent=258 // loop_exit
        _
    $region259: #{textcnn_forward.1} parent=1 // pred_fallthru
      _
    // Predicated region
    $region278: #{textcnn_forward.1} parent=1 // pred_check
      _
    $region279: #{textcnn_forward.1} parent=1 // pred_check_branch
      %441 = sbr.rel (0) target = $region281
    $region280: #{textcnn_forward.1} parent=1 // pred_region
      %442 = vsyncadd %s396, 16
    $region281: #{textcnn_forward.1} parent=1 // pred_fallthru
      _
    %s443 = sld [smem:[#allocation5 + $0x8]]
    %s444 = scalar_lea.vmem %s1, %s443
    %s445 = scalar_lea.vmem [#allocation2], 8
    %s446 = scalar_lea.sflag [#allocation3], 8
    %p448 = scmp.lt.u32.totalorder 1, 8
    %p449 = pneg %p448
    // Predicated region
    $region282: #{textcnn_forward.1} parent=1 // pred_check
      _
    $region283: #{textcnn_forward.1} parent=1 // pred_check_branch
      %451 = sbr.rel (%p448) target = $region285
    $region284: #{textcnn_forward.1} parent=1 // pred_region
      %s467 = sand.u32 1, 7
      %p468 = scmp.eq.s32.totalorder %s467, 0
      %p469 = pneg %p468
      // Predicated region
      $region297: #{textcnn_forward.1} parent=284 // pred_check
        _
      $region298: #{textcnn_forward.1} parent=284 // pred_check_branch
        %471 = sbr.rel (%p468) target = $region300
      $region299: #{textcnn_forward.1} parent=284 // pred_region
        %s472 = sand.u32 1, 7
        %s473 = ssub.s32 1, %s472
        %s474 = scalar_lea.vmem %s444, %s473
        %s475 = ssub.s32 1, %s472
        %s476 = scalar_lea.vmem %s445, %s475 [#allocation2]
        %s477 = sshll.u32 1, %s472
        %s478 = ssub.s32 %s477, 1
        loop: start=0, step=1, limit=1
        $region301: #{textcnn_forward.1} parent=299 // loop_pre_header
          _
        $region302: #{textcnn_forward.1} parent=299 // loop_header
          %s480 = sphi 0, %s484
          %p481 = scmp.ge.s32.totalorder %s480, 1
          %s485 = sphi %s474, %s474
          %s486 = sphi %s476, %s476
        $region303: #{textcnn_forward.1} parent=299 // loop_header_branch
          %483 = sbr.rel (%p481) target = $region307
        $region304: #{textcnn_forward.1} parent=299 // loop_body
          %v487 = vld [vmem:[%s485] sm:%s478]
          %488 = vst [vmem:[%s486] sm:%s478] %v487
        $region305: #{textcnn_forward.1} parent=299 // loop_footer
          %s484 = sadd.s32 1, %s480
        $region306: #{textcnn_forward.1} parent=299 // loop_footer_branch
          %479 = sbr.rel target = $region302
        $region307: #{textcnn_forward.1} parent=299 // loop_exit
          _
      $region300: #{textcnn_forward.1} parent=284 // pred_fallthru
        _
    $region285: #{textcnn_forward.1} parent=1 // pred_fallthru
      _
    // Predicated region
    $region286: #{textcnn_forward.1} parent=1 // pred_check
      %p452 = pneg %p448
    $region287: #{textcnn_forward.1} parent=1 // pred_check_branch
      %454 = sbr.rel (%p452) target = $region289
    $region288: #{textcnn_forward.1} parent=1 // pred_region
      %s455 = sshll.u32 1, 1
      %s456 = ssub.s32 %s455, 1
      loop: start=0, step=1, limit=1
      $region290: #{textcnn_forward.1} parent=288 // loop_pre_header
        _
      $region291: #{textcnn_forward.1} parent=288 // loop_header
        %s458 = sphi 0, %s462
        %p459 = scmp.ge.s32.totalorder %s458, 1
        %s463 = sphi %s444, %s444
        %s464 = sphi %s445, %s445
      $region292: #{textcnn_forward.1} parent=288 // loop_header_branch
        %461 = sbr.rel (%p459) target = $region296
      $region293: #{textcnn_forward.1} parent=288 // loop_body
        %v465 = vld [vmem:[%s463] sm:%s456]
        %466 = vst [vmem:[%s464] sm:%s456] %v465
      $region294: #{textcnn_forward.1} parent=288 // loop_footer
        %s462 = sadd.s32 1, %s458
      $region295: #{textcnn_forward.1} parent=288 // loop_footer_branch
        %457 = sbr.rel target = $region291
      $region296: #{textcnn_forward.1} parent=288 // loop_exit
        _
    $region289: #{textcnn_forward.1} parent=1 // pred_fallthru
      _
    // Predicated region
    $region308: #{textcnn_forward.1} parent=1 // pred_check
      _
    $region309: #{textcnn_forward.1} parent=1 // pred_check_branch
      %491 = sbr.rel (0) target = $region311
    $region310: #{textcnn_forward.1} parent=1 // pred_region
      %492 = vsyncadd %s446, 16
    $region311: #{textcnn_forward.1} parent=1 // pred_fallthru
      _
    %s493 = sld [smem:[#allocation5 + $0x9]]
    %s494 = scalar_lea.vmem %s1, %s493
    %s495 = scalar_lea.vmem [#allocation2], 9
    %s496 = scalar_lea.sflag [#allocation3], 9
    %p498 = scmp.lt.u32.totalorder 1, 8
    %p499 = pneg %p498
    // Predicated region
    $region312: #{textcnn_forward.1} parent=1 // pred_check
      _
    $region313: #{textcnn_forward.1} parent=1 // pred_check_branch
      %501 = sbr.rel (%p498) target = $region315
    $region314: #{textcnn_forward.1} parent=1 // pred_region
      %s517 = sand.u32 1, 7
      %p518 = scmp.eq.s32.totalorder %s517, 0
      %p519 = pneg %p518
      // Predicated region
      $region327: #{textcnn_forward.1} parent=314 // pred_check
        _
      $region328: #{textcnn_forward.1} parent=314 // pred_check_branch
        %521 = sbr.rel (%p518) target = $region330
      $region329: #{textcnn_forward.1} parent=314 // pred_region
        %s522 = sand.u32 1, 7
        %s523 = ssub.s32 1, %s522
        %s524 = scalar_lea.vmem %s494, %s523
        %s525 = ssub.s32 1, %s522
        %s526 = scalar_lea.vmem %s495, %s525 [#allocation2]
        %s527 = sshll.u32 1, %s522
        %s528 = ssub.s32 %s527, 1
        loop: start=0, step=1, limit=1
        $region331: #{textcnn_forward.1} parent=329 // loop_pre_header
          _
        $region332: #{textcnn_forward.1} parent=329 // loop_header
          %s530 = sphi 0, %s534
          %p531 = scmp.ge.s32.totalorder %s530, 1
          %s535 = sphi %s524, %s524
          %s536 = sphi %s526, %s526
        $region333: #{textcnn_forward.1} parent=329 // loop_header_branch
          %533 = sbr.rel (%p531) target = $region337
        $region334: #{textcnn_forward.1} parent=329 // loop_body
          %v537 = vld [vmem:[%s535] sm:%s528]
          %538 = vst [vmem:[%s536] sm:%s528] %v537
        $region335: #{textcnn_forward.1} parent=329 // loop_footer
          %s534 = sadd.s32 1, %s530
        $region336: #{textcnn_forward.1} parent=329 // loop_footer_branch
          %529 = sbr.rel target = $region332
        $region337: #{textcnn_forward.1} parent=329 // loop_exit
          _
      $region330: #{textcnn_forward.1} parent=314 // pred_fallthru
        _
    $region315: #{textcnn_forward.1} parent=1 // pred_fallthru
      _
    // Predicated region
    $region316: #{textcnn_forward.1} parent=1 // pred_check
      %p502 = pneg %p498
    $region317: #{textcnn_forward.1} parent=1 // pred_check_branch
      %504 = sbr.rel (%p502) target = $region319
    $region318: #{textcnn_forward.1} parent=1 // pred_region
      %s505 = sshll.u32 1, 1
      %s506 = ssub.s32 %s505, 1
      loop: start=0, step=1, limit=1
      $region320: #{textcnn_forward.1} parent=318 // loop_pre_header
        _
      $region321: #{textcnn_forward.1} parent=318 // loop_header
        %s508 = sphi 0, %s512
        %p509 = scmp.ge.s32.totalorder %s508, 1
        %s513 = sphi %s494, %s494
        %s514 = sphi %s495, %s495
      $region322: #{textcnn_forward.1} parent=318 // loop_header_branch
        %511 = sbr.rel (%p509) target = $region326
      $region323: #{textcnn_forward.1} parent=318 // loop_body
        %v515 = vld [vmem:[%s513] sm:%s506]
        %516 = vst [vmem:[%s514] sm:%s506] %v515
      $region324: #{textcnn_forward.1} parent=318 // loop_footer
        %s512 = sadd.s32 1, %s508
      $region325: #{textcnn_forward.1} parent=318 // loop_footer_branch
        %507 = sbr.rel target = $region321
      $region326: #{textcnn_forward.1} parent=318 // loop_exit
        _
    $region319: #{textcnn_forward.1} parent=1 // pred_fallthru
      _
    // Predicated region
    $region338: #{textcnn_forward.1} parent=1 // pred_check
      _
    $region339: #{textcnn_forward.1} parent=1 // pred_check_branch
      %541 = sbr.rel (0) target = $region341
    $region340: #{textcnn_forward.1} parent=1 // pred_region
      %542 = vsyncadd %s496, 16
    $region341: #{textcnn_forward.1} parent=1 // pred_fallthru
      _
    %s543 = sld [smem:[#allocation5 + $0xa]]
    %s544 = scalar_lea.vmem %s1, %s543
    %s545 = scalar_lea.vmem [#allocation2], 10
    %s546 = scalar_lea.sflag [#allocation3], 10
    %p548 = scmp.lt.u32.totalorder 1, 8
    %p549 = pneg %p548
    // Predicated region
    $region342: #{textcnn_forward.1} parent=1 // pred_check
      _
    $region343: #{textcnn_forward.1} parent=1 // pred_check_branch
      %551 = sbr.rel (%p548) target = $region345
    $region344: #{textcnn_forward.1} parent=1 // pred_region
      %s567 = sand.u32 1, 7
      %p568 = scmp.eq.s32.totalorder %s567, 0
      %p569 = pneg %p568
      // Predicated region
      $region357: #{textcnn_forward.1} parent=344 // pred_check
        _
      $region358: #{textcnn_forward.1} parent=344 // pred_check_branch
        %571 = sbr.rel (%p568) target = $region360
      $region359: #{textcnn_forward.1} parent=344 // pred_region
        %s572 = sand.u32 1, 7
        %s573 = ssub.s32 1, %s572
        %s574 = scalar_lea.vmem %s544, %s573
        %s575 = ssub.s32 1, %s572
        %s576 = scalar_lea.vmem %s545, %s575 [#allocation2]
        %s577 = sshll.u32 1, %s572
        %s578 = ssub.s32 %s577, 1
        loop: start=0, step=1, limit=1
        $region361: #{textcnn_forward.1} parent=359 // loop_pre_header
          _
        $region362: #{textcnn_forward.1} parent=359 // loop_header
          %s580 = sphi 0, %s584
          %p581 = scmp.ge.s32.totalorder %s580, 1
          %s585 = sphi %s574, %s574
          %s586 = sphi %s576, %s576
        $region363: #{textcnn_forward.1} parent=359 // loop_header_branch
          %583 = sbr.rel (%p581) target = $region367
        $region364: #{textcnn_forward.1} parent=359 // loop_body
          %v587 = vld [vmem:[%s585] sm:%s578]
          %588 = vst [vmem:[%s586] sm:%s578] %v587
        $region365: #{textcnn_forward.1} parent=359 // loop_footer
          %s584 = sadd.s32 1, %s580
        $region366: #{textcnn_forward.1} parent=359 // loop_footer_branch
          %579 = sbr.rel target = $region362
        $region367: #{textcnn_forward.1} parent=359 // loop_exit
          _
      $region360: #{textcnn_forward.1} parent=344 // pred_fallthru
        _
    $region345: #{textcnn_forward.1} parent=1 // pred_fallthru
      _
    // Predicated region
    $region346: #{textcnn_forward.1} parent=1 // pred_check
      %p552 = pneg %p548
    $region347: #{textcnn_forward.1} parent=1 // pred_check_branch
      %554 = sbr.rel (%p552) target = $region349
    $region348: #{textcnn_forward.1} parent=1 // pred_region
      %s555 = sshll.u32 1, 1
      %s556 = ssub.s32 %s555, 1
      loop: start=0, step=1, limit=1
      $region350: #{textcnn_forward.1} parent=348 // loop_pre_header
        _
      $region351: #{textcnn_forward.1} parent=348 // loop_header
        %s558 = sphi 0, %s562
        %p559 = scmp.ge.s32.totalorder %s558, 1
        %s563 = sphi %s544, %s544
        %s564 = sphi %s545, %s545
      $region352: #{textcnn_forward.1} parent=348 // loop_header_branch
        %561 = sbr.rel (%p559) target = $region356
      $region353: #{textcnn_forward.1} parent=348 // loop_body
        %v565 = vld [vmem:[%s563] sm:%s556]
        %566 = vst [vmem:[%s564] sm:%s556] %v565
      $region354: #{textcnn_forward.1} parent=348 // loop_footer
        %s562 = sadd.s32 1, %s558
      $region355: #{textcnn_forward.1} parent=348 // loop_footer_branch
        %557 = sbr.rel target = $region351
      $region356: #{textcnn_forward.1} parent=348 // loop_exit
        _
    $region349: #{textcnn_forward.1} parent=1 // pred_fallthru
      _
    // Predicated region
    $region368: #{textcnn_forward.1} parent=1 // pred_check
      _
    $region369: #{textcnn_forward.1} parent=1 // pred_check_branch
      %591 = sbr.rel (0) target = $region371
    $region370: #{textcnn_forward.1} parent=1 // pred_region
      %592 = vsyncadd %s546, 16
    $region371: #{textcnn_forward.1} parent=1 // pred_fallthru
      _
    %s593 = sld [smem:[#allocation5 + $0xb]]
    %s594 = scalar_lea.vmem %s1, %s593
    %s595 = scalar_lea.vmem [#allocation2], 11
    %s596 = scalar_lea.sflag [#allocation3], 11
    %p598 = scmp.lt.u32.totalorder 1, 8
    %p599 = pneg %p598
    // Predicated region
    $region372: #{textcnn_forward.1} parent=1 // pred_check
      _
    $region373: #{textcnn_forward.1} parent=1 // pred_check_branch
      %601 = sbr.rel (%p598) target = $region375
    $region374: #{textcnn_forward.1} parent=1 // pred_region
      %s617 = sand.u32 1, 7
      %p618 = scmp.eq.s32.totalorder %s617, 0
      %p619 = pneg %p618
      // Predicated region
      $region387: #{textcnn_forward.1} parent=374 // pred_check
        _
      $region388: #{textcnn_forward.1} parent=374 // pred_check_branch
        %621 = sbr.rel (%p618) target = $region390
      $region389: #{textcnn_forward.1} parent=374 // pred_region
        %s622 = sand.u32 1, 7
        %s623 = ssub.s32 1, %s622
        %s624 = scalar_lea.vmem %s594, %s623
        %s625 = ssub.s32 1, %s622
        %s626 = scalar_lea.vmem %s595, %s625 [#allocation2]
        %s627 = sshll.u32 1, %s622
        %s628 = ssub.s32 %s627, 1
        loop: start=0, step=1, limit=1
        $region391: #{textcnn_forward.1} parent=389 // loop_pre_header
          _
        $region392: #{textcnn_forward.1} parent=389 // loop_header
          %s630 = sphi 0, %s634
          %p631 = scmp.ge.s32.totalorder %s630, 1
          %s635 = sphi %s624, %s624
          %s636 = sphi %s626, %s626
        $region393: #{textcnn_forward.1} parent=389 // loop_header_branch
          %633 = sbr.rel (%p631) target = $region397
        $region394: #{textcnn_forward.1} parent=389 // loop_body
          %v637 = vld [vmem:[%s635] sm:%s628]
          %638 = vst [vmem:[%s636] sm:%s628] %v637
        $region395: #{textcnn_forward.1} parent=389 // loop_footer
          %s634 = sadd.s32 1, %s630
        $region396: #{textcnn_forward.1} parent=389 // loop_footer_branch
          %629 = sbr.rel target = $region392
        $region397: #{textcnn_forward.1} parent=389 // loop_exit
          _
      $region390: #{textcnn_forward.1} parent=374 // pred_fallthru
        _
    $region375: #{textcnn_forward.1} parent=1 // pred_fallthru
      _
    // Predicated region
    $region376: #{textcnn_forward.1} parent=1 // pred_check
      %p602 = pneg %p598
    $region377: #{textcnn_forward.1} parent=1 // pred_check_branch
      %604 = sbr.rel (%p602) target = $region379
    $region378: #{textcnn_forward.1} parent=1 // pred_region
      %s605 = sshll.u32 1, 1
      %s606 = ssub.s32 %s605, 1
      loop: start=0, step=1, limit=1
      $region380: #{textcnn_forward.1} parent=378 // loop_pre_header
        _
      $region381: #{textcnn_forward.1} parent=378 // loop_header
        %s608 = sphi 0, %s612
        %p609 = scmp.ge.s32.totalorder %s608, 1
        %s613 = sphi %s594, %s594
        %s614 = sphi %s595, %s595
      $region382: #{textcnn_forward.1} parent=378 // loop_header_branch
        %611 = sbr.rel (%p609) target = $region386
      $region383: #{textcnn_forward.1} parent=378 // loop_body
        %v615 = vld [vmem:[%s613] sm:%s606]
        %616 = vst [vmem:[%s614] sm:%s606] %v615
      $region384: #{textcnn_forward.1} parent=378 // loop_footer
        %s612 = sadd.s32 1, %s608
      $region385: #{textcnn_forward.1} parent=378 // loop_footer_branch
        %607 = sbr.rel target = $region381
      $region386: #{textcnn_forward.1} parent=378 // loop_exit
        _
    $region379: #{textcnn_forward.1} parent=1 // pred_fallthru
      _
    // Predicated region
    $region398: #{textcnn_forward.1} parent=1 // pred_check
      _
    $region399: #{textcnn_forward.1} parent=1 // pred_check_branch
      %641 = sbr.rel (0) target = $region401
    $region400: #{textcnn_forward.1} parent=1 // pred_region
      %642 = vsyncadd %s596, 16
    $region401: #{textcnn_forward.1} parent=1 // pred_fallthru
      _
    %s643 = sld [smem:[#allocation5 + $0xc]]
    %s644 = scalar_lea.vmem %s1, %s643
    %s645 = scalar_lea.vmem [#allocation2], 12
    %s646 = scalar_lea.sflag [#allocation3], 12
    %p648 = scmp.lt.u32.totalorder 1, 8
    %p649 = pneg %p648
    // Predicated region
    $region402: #{textcnn_forward.1} parent=1 // pred_check
      _
    $region403: #{textcnn_forward.1} parent=1 // pred_check_branch
      %651 = sbr.rel (%p648) target = $region405
    $region404: #{textcnn_forward.1} parent=1 // pred_region
      %s667 = sand.u32 1, 7
      %p668 = scmp.eq.s32.totalorder %s667, 0
      %p669 = pneg %p668
      // Predicated region
      $region417: #{textcnn_forward.1} parent=404 // pred_check
        _
      $region418: #{textcnn_forward.1} parent=404 // pred_check_branch
        %671 = sbr.rel (%p668) target = $region420
      $region419: #{textcnn_forward.1} parent=404 // pred_region
        %s672 = sand.u32 1, 7
        %s673 = ssub.s32 1, %s672
        %s674 = scalar_lea.vmem %s644, %s673
        %s675 = ssub.s32 1, %s672
        %s676 = scalar_lea.vmem %s645, %s675 [#allocation2]
        %s677 = sshll.u32 1, %s672
        %s678 = ssub.s32 %s677, 1
        loop: start=0, step=1, limit=1
        $region421: #{textcnn_forward.1} parent=419 // loop_pre_header
          _
        $region422: #{textcnn_forward.1} parent=419 // loop_header
          %s680 = sphi 0, %s684
          %p681 = scmp.ge.s32.totalorder %s680, 1
          %s685 = sphi %s674, %s674
          %s686 = sphi %s676, %s676
        $region423: #{textcnn_forward.1} parent=419 // loop_header_branch
          %683 = sbr.rel (%p681) target = $region427
        $region424: #{textcnn_forward.1} parent=419 // loop_body
          %v687 = vld [vmem:[%s685] sm:%s678]
          %688 = vst [vmem:[%s686] sm:%s678] %v687
        $region425: #{textcnn_forward.1} parent=419 // loop_footer
          %s684 = sadd.s32 1, %s680
        $region426: #{textcnn_forward.1} parent=419 // loop_footer_branch
          %679 = sbr.rel target = $region422
        $region427: #{textcnn_forward.1} parent=419 // loop_exit
          _
      $region420: #{textcnn_forward.1} parent=404 // pred_fallthru
        _
    $region405: #{textcnn_forward.1} parent=1 // pred_fallthru
      _
    // Predicated region
    $region406: #{textcnn_forward.1} parent=1 // pred_check
      %p652 = pneg %p648
    $region407: #{textcnn_forward.1} parent=1 // pred_check_branch
      %654 = sbr.rel (%p652) target = $region409
    $region408: #{textcnn_forward.1} parent=1 // pred_region
      %s655 = sshll.u32 1, 1
      %s656 = ssub.s32 %s655, 1
      loop: start=0, step=1, limit=1
      $region410: #{textcnn_forward.1} parent=408 // loop_pre_header
        _
      $region411: #{textcnn_forward.1} parent=408 // loop_header
        %s658 = sphi 0, %s662
        %p659 = scmp.ge.s32.totalorder %s658, 1
        %s663 = sphi %s644, %s644
        %s664 = sphi %s645, %s645
      $region412: #{textcnn_forward.1} parent=408 // loop_header_branch
        %661 = sbr.rel (%p659) target = $region416
      $region413: #{textcnn_forward.1} parent=408 // loop_body
        %v665 = vld [vmem:[%s663] sm:%s656]
        %666 = vst [vmem:[%s664] sm:%s656] %v665
      $region414: #{textcnn_forward.1} parent=408 // loop_footer
        %s662 = sadd.s32 1, %s658
      $region415: #{textcnn_forward.1} parent=408 // loop_footer_branch
        %657 = sbr.rel target = $region411
      $region416: #{textcnn_forward.1} parent=408 // loop_exit
        _
    $region409: #{textcnn_forward.1} parent=1 // pred_fallthru
      _
    // Predicated region
    $region428: #{textcnn_forward.1} parent=1 // pred_check
      _
    $region429: #{textcnn_forward.1} parent=1 // pred_check_branch
      %691 = sbr.rel (0) target = $region431
    $region430: #{textcnn_forward.1} parent=1 // pred_region
      %692 = vsyncadd %s646, 16
    $region431: #{textcnn_forward.1} parent=1 // pred_fallthru
      _
    %s693 = sld [smem:[#allocation5 + $0xd]]
    %s694 = scalar_lea.vmem %s1, %s693
    %s695 = scalar_lea.vmem [#allocation2], 13
    %s696 = scalar_lea.sflag [#allocation3], 13
    %p698 = scmp.lt.u32.totalorder 1, 8
    %p699 = pneg %p698
    // Predicated region
    $region432: #{textcnn_forward.1} parent=1 // pred_check
      _
    $region433: #{textcnn_forward.1} parent=1 // pred_check_branch
      %701 = sbr.rel (%p698) target = $region435
    $region434: #{textcnn_forward.1} parent=1 // pred_region
      %s717 = sand.u32 1, 7
      %p718 = scmp.eq.s32.totalorder %s717, 0
      %p719 = pneg %p718
      // Predicated region
      $region447: #{textcnn_forward.1} parent=434 // pred_check
        _
      $region448: #{textcnn_forward.1} parent=434 // pred_check_branch
        %721 = sbr.rel (%p718) target = $region450
      $region449: #{textcnn_forward.1} parent=434 // pred_region
        %s722 = sand.u32 1, 7
        %s723 = ssub.s32 1, %s722
        %s724 = scalar_lea.vmem %s694, %s723
        %s725 = ssub.s32 1, %s722
        %s726 = scalar_lea.vmem %s695, %s725 [#allocation2]
        %s727 = sshll.u32 1, %s722
        %s728 = ssub.s32 %s727, 1
        loop: start=0, step=1, limit=1
        $region451: #{textcnn_forward.1} parent=449 // loop_pre_header
          _
        $region452: #{textcnn_forward.1} parent=449 // loop_header
          %s730 = sphi 0, %s734
          %p731 = scmp.ge.s32.totalorder %s730, 1
          %s735 = sphi %s724, %s724
          %s736 = sphi %s726, %s726
        $region453: #{textcnn_forward.1} parent=449 // loop_header_branch
          %733 = sbr.rel (%p731) target = $region457
        $region454: #{textcnn_forward.1} parent=449 // loop_body
          %v737 = vld [vmem:[%s735] sm:%s728]
          %738 = vst [vmem:[%s736] sm:%s728] %v737
        $region455: #{textcnn_forward.1} parent=449 // loop_footer
          %s734 = sadd.s32 1, %s730
        $region456: #{textcnn_forward.1} parent=449 // loop_footer_branch
          %729 = sbr.rel target = $region452
        $region457: #{textcnn_forward.1} parent=449 // loop_exit
          _
      $region450: #{textcnn_forward.1} parent=434 // pred_fallthru
        _
    $region435: #{textcnn_forward.1} parent=1 // pred_fallthru
      _
    // Predicated region
    $region436: #{textcnn_forward.1} parent=1 // pred_check
      %p702 = pneg %p698
    $region437: #{textcnn_forward.1} parent=1 // pred_check_branch
      %704 = sbr.rel (%p702) target = $region439
    $region438: #{textcnn_forward.1} parent=1 // pred_region
      %s705 = sshll.u32 1, 1
      %s706 = ssub.s32 %s705, 1
      loop: start=0, step=1, limit=1
      $region440: #{textcnn_forward.1} parent=438 // loop_pre_header
        _
      $region441: #{textcnn_forward.1} parent=438 // loop_header
        %s708 = sphi 0, %s712
        %p709 = scmp.ge.s32.totalorder %s708, 1
        %s713 = sphi %s694, %s694
        %s714 = sphi %s695, %s695
      $region442: #{textcnn_forward.1} parent=438 // loop_header_branch
        %711 = sbr.rel (%p709) target = $region446
      $region443: #{textcnn_forward.1} parent=438 // loop_body
        %v715 = vld [vmem:[%s713] sm:%s706]
        %716 = vst [vmem:[%s714] sm:%s706] %v715
      $region444: #{textcnn_forward.1} parent=438 // loop_footer
        %s712 = sadd.s32 1, %s708
      $region445: #{textcnn_forward.1} parent=438 // loop_footer_branch
        %707 = sbr.rel target = $region441
      $region446: #{textcnn_forward.1} parent=438 // loop_exit
        _
    $region439: #{textcnn_forward.1} parent=1 // pred_fallthru
      _
    // Predicated region
    $region458: #{textcnn_forward.1} parent=1 // pred_check
      _
    $region459: #{textcnn_forward.1} parent=1 // pred_check_branch
      %741 = sbr.rel (0) target = $region461
    $region460: #{textcnn_forward.1} parent=1 // pred_region
      %742 = vsyncadd %s696, 16
    $region461: #{textcnn_forward.1} parent=1 // pred_fallthru
      _
    %s743 = sld [smem:[#allocation5 + $0xe]]
    %s744 = scalar_lea.vmem %s1, %s743
    %s745 = scalar_lea.vmem [#allocation2], 14
    %s746 = scalar_lea.sflag [#allocation3], 14
    %p748 = scmp.lt.u32.totalorder 1, 8
    %p749 = pneg %p748
    // Predicated region
    $region462: #{textcnn_forward.1} parent=1 // pred_check
      _
    $region463: #{textcnn_forward.1} parent=1 // pred_check_branch
      %751 = sbr.rel (%p748) target = $region465
    $region464: #{textcnn_forward.1} parent=1 // pred_region
      %s767 = sand.u32 1, 7
      %p768 = scmp.eq.s32.totalorder %s767, 0
      %p769 = pneg %p768
      // Predicated region
      $region477: #{textcnn_forward.1} parent=464 // pred_check
        _
      $region478: #{textcnn_forward.1} parent=464 // pred_check_branch
        %771 = sbr.rel (%p768) target = $region480
      $region479: #{textcnn_forward.1} parent=464 // pred_region
        %s772 = sand.u32 1, 7
        %s773 = ssub.s32 1, %s772
        %s774 = scalar_lea.vmem %s744, %s773
        %s775 = ssub.s32 1, %s772
        %s776 = scalar_lea.vmem %s745, %s775 [#allocation2]
        %s777 = sshll.u32 1, %s772
        %s778 = ssub.s32 %s777, 1
        loop: start=0, step=1, limit=1
        $region481: #{textcnn_forward.1} parent=479 // loop_pre_header
          _
        $region482: #{textcnn_forward.1} parent=479 // loop_header
          %s780 = sphi 0, %s784
          %p781 = scmp.ge.s32.totalorder %s780, 1
          %s785 = sphi %s774, %s774
          %s786 = sphi %s776, %s776
        $region483: #{textcnn_forward.1} parent=479 // loop_header_branch
          %783 = sbr.rel (%p781) target = $region487
        $region484: #{textcnn_forward.1} parent=479 // loop_body
          %v787 = vld [vmem:[%s785] sm:%s778]
          %788 = vst [vmem:[%s786] sm:%s778] %v787
        $region485: #{textcnn_forward.1} parent=479 // loop_footer
          %s784 = sadd.s32 1, %s780
        $region486: #{textcnn_forward.1} parent=479 // loop_footer_branch
          %779 = sbr.rel target = $region482
        $region487: #{textcnn_forward.1} parent=479 // loop_exit
          _
      $region480: #{textcnn_forward.1} parent=464 // pred_fallthru
        _
    $region465: #{textcnn_forward.1} parent=1 // pred_fallthru
      _
    // Predicated region
    $region466: #{textcnn_forward.1} parent=1 // pred_check
      %p752 = pneg %p748
    $region467: #{textcnn_forward.1} parent=1 // pred_check_branch
      %754 = sbr.rel (%p752) target = $region469
    $region468: #{textcnn_forward.1} parent=1 // pred_region
      %s755 = sshll.u32 1, 1
      %s756 = ssub.s32 %s755, 1
      loop: start=0, step=1, limit=1
      $region470: #{textcnn_forward.1} parent=468 // loop_pre_header
        _
      $region471: #{textcnn_forward.1} parent=468 // loop_header
        %s758 = sphi 0, %s762
        %p759 = scmp.ge.s32.totalorder %s758, 1
        %s763 = sphi %s744, %s744
        %s764 = sphi %s745, %s745
      $region472: #{textcnn_forward.1} parent=468 // loop_header_branch
        %761 = sbr.rel (%p759) target = $region476
      $region473: #{textcnn_forward.1} parent=468 // loop_body
        %v765 = vld [vmem:[%s763] sm:%s756]
        %766 = vst [vmem:[%s764] sm:%s756] %v765
      $region474: #{textcnn_forward.1} parent=468 // loop_footer
        %s762 = sadd.s32 1, %s758
      $region475: #{textcnn_forward.1} parent=468 // loop_footer_branch
        %757 = sbr.rel target = $region471
      $region476: #{textcnn_forward.1} parent=468 // loop_exit
        _
    $region469: #{textcnn_forward.1} parent=1 // pred_fallthru
      _
    // Predicated region
    $region488: #{textcnn_forward.1} parent=1 // pred_check
      _
    $region489: #{textcnn_forward.1} parent=1 // pred_check_branch
      %791 = sbr.rel (0) target = $region491
    $region490: #{textcnn_forward.1} parent=1 // pred_region
      %792 = vsyncadd %s746, 16
    $region491: #{textcnn_forward.1} parent=1 // pred_fallthru
      _
    %s793 = sld [smem:[#allocation5 + $0xf]]
    %s794 = scalar_lea.vmem %s1, %s793
    %s795 = scalar_lea.vmem [#allocation2], 15
    %s796 = scalar_lea.sflag [#allocation3], 15
    %p798 = scmp.lt.u32.totalorder 1, 8
    %p799 = pneg %p798
    // Predicated region
    $region492: #{textcnn_forward.1} parent=1 // pred_check
      _
    $region493: #{textcnn_forward.1} parent=1 // pred_check_branch
      %801 = sbr.rel (%p798) target = $region495
    $region494: #{textcnn_forward.1} parent=1 // pred_region
      %s817 = sand.u32 1, 7
      %p818 = scmp.eq.s32.totalorder %s817, 0
      %p819 = pneg %p818
      // Predicated region
      $region507: #{textcnn_forward.1} parent=494 // pred_check
        _
      $region508: #{textcnn_forward.1} parent=494 // pred_check_branch
        %821 = sbr.rel (%p818) target = $region510
      $region509: #{textcnn_forward.1} parent=494 // pred_region
        %s822 = sand.u32 1, 7
        %s823 = ssub.s32 1, %s822
        %s824 = scalar_lea.vmem %s794, %s823
        %s825 = ssub.s32 1, %s822
        %s826 = scalar_lea.vmem %s795, %s825 [#allocation2]
        %s827 = sshll.u32 1, %s822
        %s828 = ssub.s32 %s827, 1
        loop: start=0, step=1, limit=1
        $region511: #{textcnn_forward.1} parent=509 // loop_pre_header
          _
        $region512: #{textcnn_forward.1} parent=509 // loop_header
          %s830 = sphi 0, %s834
          %p831 = scmp.ge.s32.totalorder %s830, 1
          %s835 = sphi %s824, %s824
          %s836 = sphi %s826, %s826
        $region513: #{textcnn_forward.1} parent=509 // loop_header_branch
          %833 = sbr.rel (%p831) target = $region517
        $region514: #{textcnn_forward.1} parent=509 // loop_body
          %v837 = vld [vmem:[%s835] sm:%s828]
          %838 = vst [vmem:[%s836] sm:%s828] %v837
        $region515: #{textcnn_forward.1} parent=509 // loop_footer
          %s834 = sadd.s32 1, %s830
        $region516: #{textcnn_forward.1} parent=509 // loop_footer_branch
          %829 = sbr.rel target = $region512
        $region517: #{textcnn_forward.1} parent=509 // loop_exit
          _
      $region510: #{textcnn_forward.1} parent=494 // pred_fallthru
        _
    $region495: #{textcnn_forward.1} parent=1 // pred_fallthru
      _
    // Predicated region
    $region496: #{textcnn_forward.1} parent=1 // pred_check
      %p802 = pneg %p798
    $region497: #{textcnn_forward.1} parent=1 // pred_check_branch
      %804 = sbr.rel (%p802) target = $region499
    $region498: #{textcnn_forward.1} parent=1 // pred_region
      %s805 = sshll.u32 1, 1
      %s806 = ssub.s32 %s805, 1
      loop: start=0, step=1, limit=1
      $region500: #{textcnn_forward.1} parent=498 // loop_pre_header
        _
      $region501: #{textcnn_forward.1} parent=498 // loop_header
        %s808 = sphi 0, %s812
        %p809 = scmp.ge.s32.totalorder %s808, 1
        %s813 = sphi %s794, %s794
        %s814 = sphi %s795, %s795
      $region502: #{textcnn_forward.1} parent=498 // loop_header_branch
        %811 = sbr.rel (%p809) target = $region506
      $region503: #{textcnn_forward.1} parent=498 // loop_body
        %v815 = vld [vmem:[%s813] sm:%s806]
        %816 = vst [vmem:[%s814] sm:%s806] %v815
      $region504: #{textcnn_forward.1} parent=498 // loop_footer
        %s812 = sadd.s32 1, %s808
      $region505: #{textcnn_forward.1} parent=498 // loop_footer_branch
        %807 = sbr.rel target = $region501
      $region506: #{textcnn_forward.1} parent=498 // loop_exit
        _
    $region499: #{textcnn_forward.1} parent=1 // pred_fallthru
      _
    // Predicated region
    $region518: #{textcnn_forward.1} parent=1 // pred_check
      _
    $region519: #{textcnn_forward.1} parent=1 // pred_check_branch
      %841 = sbr.rel (0) target = $region521
    $region520: #{textcnn_forward.1} parent=1 // pred_region
      %842 = vsyncadd %s796, 16
    $region521: #{textcnn_forward.1} parent=1 // pred_fallthru
      _
    %s843 = smul.u32 1, 1
    %s844 = sshll.u32 %s843, 4
    %845 = dma.done [#allocation3], %s844
    %s846 = sshll.u32 %s843, 4
    %847 = dma.done %s96, %s846
    %s848 = sshll.u32 %s843, 4
    %849 = dma.done %s146, %s848
    %s850 = sshll.u32 %s843, 4
    %851 = dma.done %s196, %s850
    %s852 = sshll.u32 %s843, 4
    %853 = dma.done %s246, %s852
    %s854 = sshll.u32 %s843, 4
    %855 = dma.done %s296, %s854
    %s856 = sshll.u32 %s843, 4
    %857 = dma.done %s346, %s856
    %s858 = sshll.u32 %s843, 4
    %859 = dma.done %s396, %s858
    %s860 = sshll.u32 %s843, 4
    %861 = dma.done %s446, %s860
    %s862 = sshll.u32 %s843, 4
    %863 = dma.done %s496, %s862
    %s864 = sshll.u32 %s843, 4
    %865 = dma.done %s546, %s864
    %s866 = sshll.u32 %s843, 4
    %867 = dma.done %s596, %s866
    %s868 = sshll.u32 %s843, 4
    %869 = dma.done %s646, %s868
    %s870 = sshll.u32 %s843, 4
    %871 = dma.done %s696, %s870
    %s872 = sshll.u32 %s843, 4
    %873 = dma.done %s746, %s872
    %s874 = sshll.u32 %s843, 4
    %875 = dma.done %s796, %s874
    %v876 = vld [vmem:[#allocation2] sm:$0xff]
    %v877 = vld [vmem:[#allocation2 + $0x8] sm:$0xff]
    %v878 = vpack.c.bf16 %v877, %v876
    %v880 = vunpack.c.l.b16 %v878
    %v881 = vunpack.c.h.b16 %v878
    %v882 = vpack.c.b16 %v880, %v880
    %v883 = vpack.c.b16 %v881, %v881
    %v884 = vld [vmem:[%s11] sm:$0x1]
    %v885 = vld [vmem:[%s2] sm:$0xf]
    %v886 = vld [vmem:[%s2 + $0x4] sm:$0xf]
    %v887 = vld [vmem:[%s2 + $0x8] sm:$0xf]
    %v888 = vld [vmem:[%s2 + $0xc] sm:$0xf]
    %v889 = vld [vmem:[%s2 + $0x10] sm:$0xf]
    %v890 = vld [vmem:[%s2 + $0x14] sm:$0xf]
    %v891 = vld [vmem:[%s2 + $0x18] sm:$0xf]
    %v892 = vld [vmem:[%s2 + $0x1c] sm:$0xf]
    %v893 = vld [vmem:[%s2 + $0x20] sm:$0xf]
    %v894 = vld [vmem:[%s2 + $0x24] sm:$0xf]
    %v895 = vld [vmem:[%s2 + $0x28] sm:$0xf]
    %v896 = vld [vmem:[%s2 + $0x2c] sm:$0xf]
    %v898 = vunpack.c.l.s4 1966171168
    %v899 = vunpack.c.0.s8 %v898
    %v900 = vlaneseq
    %v901 = vshrl.u32 %v900, 7
    %v902 = vsub.s32 %v899, %v901
    %v903 = vrot.slane %v882, %v902
    %v904 = vcombine.high %v903, %v903
    %v906 = vunpack.c.l.s4 1966171168
    %v907 = vunpack.c.0.s8 %v906
    %v908 = vlaneseq
    %v909 = vshrl.u32 %v908, 7
    %v910 = vsub.s32 %v907, %v909
    %v911 = vrot.slane %v903, %v910
    %v913 = vunpack.c.l.s4 1966171168
    %v914 = vunpack.c.0.s8 %v913
    %v915 = vlaneseq
    %v916 = vshrl.u32 %v915, 7
    %v917 = vsub.s32 %v914, %v916
    %v918 = vrot.slane %v904, %v917
    %v919 = vcombine.high %v911, %v911
    %v921 = vunpack.c.l.s4 1966171168
    %v922 = vunpack.c.0.s8 %v921
    %v923 = vlaneseq
    %v924 = vshrl.u32 %v923, 7
    %v925 = vsub.s32 %v922, %v924
    %v926 = vrot.slane %v883, %v925
    %v927 = vcombine.high %v926, %v926
    %v929 = vunpack.c.l.s4 1966171168
    %v930 = vunpack.c.0.s8 %v929
    %v931 = vlaneseq
    %v932 = vshrl.u32 %v931, 7
    %v933 = vsub.s32 %v930, %v932
    %v934 = vrot.slane %v926, %v933
    %v936 = vunpack.c.l.s4 1966171168
    %v937 = vunpack.c.0.s8 %v936
    %v938 = vlaneseq
    %v939 = vshrl.u32 %v938, 7
    %v940 = vsub.s32 %v937, %v939
    %v941 = vrot.slane %v927, %v940
    %v942 = vcombine.high %v934, %v934
    %v943 = vcombine.high %v918, %v918
    %v944 = vcombine.high %v941, %v941
    %vm945 = vsmask.f32 256
    %vm946 = vsmask.f32 1284
    %vm947 = vmor %vm945, %vm946
    %vm948 = vsmask.f32 2312
    %vm949 = vmor %vm947, %vm948
    %vm950 = vsmask.f32 3340
    %vm951 = vmor %vm949, %vm950
    %vm952 = vsmask.f32 4368
    %vm953 = vmor %vm951, %vm952
    %vm954 = vsmask.f32 5396
    %vm955 = vmor %vm953, %vm954
    %vm956 = vsmask.f32 6424
    %vm957 = vmor %vm955, %vm956
    %vm958 = vsmask.f32 7452
    %vm959 = vmor %vm957, %vm958
    %v961 = vshrl.u32 %v911, 16
    %v963 = vrot.slane %v961, 7
    %v964 = vrot.slane %v963, 1
    %v966 = vshll.u32 %v918, 16
    %v968 = vsel %vm959, %v964, %v966
    %v969 = vshrl.u32 %v918, 16
    %v971 = vrot.slane %v969, 7
    %v972 = vrot.slane %v971, 1
    %v974 = vshll.u32 %v919, 16
    %v976 = vsel %vm959, %v972, %v974
    %v977 = vshrl.u32 %v919, 16
    %v979 = vrot.slane %v977, 7
    %v980 = vrot.slane %v979, 1
    %v982 = vshll.u32 %v943, 16
    %v984 = vsel %vm959, %v980, %v982
    %v986 = vshrl.u32 %v934, 16
    %v988 = vrot.slane %v986, 7
    %v989 = vrot.slane %v988, 1
    %v991 = vshll.u32 %v941, 16
    %v993 = vsel %vm959, %v989, %v991
    %v994 = vshrl.u32 %v941, 16
    %v996 = vrot.slane %v994, 7
    %v997 = vrot.slane %v996, 1
    %v999 = vshll.u32 %v942, 16
    %v1001 = vsel %vm959, %v997, %v999
    %v1002 = vshrl.u32 %v942, 16
    %v1004 = vrot.slane %v1002, 7
    %v1005 = vrot.slane %v1004, 1
    %v1007 = vshll.u32 %v944, 16
    %v1009 = vsel %vm959, %v1005, %v1007
    %v1010 = vcombine.low %v968, %v976
    %v1011 = vcombine.low %v984, %v993
    %v1012 = vcombine.low %v1001, %v1009
    %v1014 = vunpack.c.l.s4 1966171168
    %v1015 = vunpack.c.0.s8 %v1014
    %v1016 = vlaneseq
    %v1017 = vshrl.u32 %v1016, 7
    %v1018 = vsub.s32 %v1015, %v1017
    %v1019 = vrot.slane %v1010, %v1018
    %v1021 = vunpack.c.l.s4 1966171168
    %v1022 = vunpack.c.0.s8 %v1021
    %v1023 = vlaneseq
    %v1024 = vshrl.u32 %v1023, 7
    %v1025 = vsub.s32 %v1022, %v1024
    %v1026 = vrot.slane %v1011, %v1025
    %v1028 = vunpack.c.l.s4 1966171168
    %v1029 = vunpack.c.0.s8 %v1028
    %v1030 = vlaneseq
    %v1031 = vshrl.u32 %v1030, 7
    %v1032 = vsub.s32 %v1029, %v1031
    %v1033 = vrot.slane %v1012, %v1032
    %v1034 = vcombine.low %v1019, %v1026
    %v1036 = vunpack.c.l.s4 1966171168
    %v1037 = vunpack.c.0.s8 %v1036
    %v1038 = vlaneseq
    %v1039 = vshrl.u32 %v1038, 7
    %v1040 = vsub.s32 %v1037, %v1039
    %v1041 = vrot.slane %v1034, %v1040
    %v1043 = vunpack.c.l.s4 1966171168
    %v1044 = vunpack.c.0.s8 %v1043
    %v1045 = vlaneseq
    %v1046 = vshrl.u32 %v1045, 7
    %v1047 = vsub.s32 %v1044, %v1046
    %v1048 = vrot.slane %v1033, %v1047
    %v1049 = vcombine.low %v1041, %v1048
    %v1054 = vunpack.c.l.b16 %v889
    %v1055 = vunpack.c.l.b16 %v890
    %v1056 = vunpack.c.l.b16 %v891
    %v1057 = vunpack.c.l.b16 %v892
    %v1058 = vpack.c.b16 %v1055, %v1054
    %v1059 = vpack.c.b16 %v1057, %v1056
    %vm1062 = vcmask 261120
    %v1064 = vsel %vm1062, %v1049, 0
    %1066 = vmatprep.subr.bf16.mxu0 0
    %1067 = vmatpush1.bf16.msra.mxu0 0
    %1068 = vmatprep.subr.bf16.mxu0 0
    %1069 = vmatpush1.bf16.msra.mxu0 0
    %1070 = vmatprep.subr.bf16.mxu0 0
    %1071 = vmatpush1.bf16.msra.mxu0 0
    %1072 = vmatprep.subr.bf16.mxu0 0
    %1073 = vmatpush1.bf16.msra.mxu0 0
    %1074 = vmatprep.subr.bf16.mxu0 0
    %1075 = vmatpush1.bf16.msra.mxu0 0
    %1076 = vmatprep.subr.bf16.mxu0 0
    %1077 = vmatpush1.bf16.msra.mxu0 0
    %1078 = vmatprep.subr.bf16.mxu0 0
    %1079 = vmatpush1.bf16.msra.mxu0 %v1059
    %1080 = vmatprep.subr.bf16.mxu0 0
    %1081 = vmatpush1.bf16.msra.mxu0 %v1058
    %1082 = vmatprep.subr.bf16.mxu0 0
    %1083 = vmatpush2.bf16.msra.mxu0 0
    %1084 = vmatprep.subr.bf16.mxu0 0
    %1085 = vmatpush2.bf16.msra.mxu0 0
    %1086 = vmatprep.subr.bf16.mxu0 0
    %1087 = vmatpush2.bf16.msra.mxu0 0
    %1088 = vmatprep.subr.bf16.mxu0 0
    %1089 = vmatpush2.bf16.msra.mxu0 0
    %1090 = vmatprep.subr.bf16.mxu0 0
    %1091 = vmatpush2.bf16.msra.mxu0 0
    %1092 = vmatprep.subr.bf16.mxu0 0
    %1093 = vmatpush2.bf16.msra.mxu0 0
    %1094 = vmatprep.subr.bf16.mxu0 0
    %1095 = vmatpush2.bf16.msra.mxu0 0
    %1096 = vmatprep.subr.bf16.mxu0 0
    %1097 = vmatpush2.bf16.msra.mxu0 0
    %1098 = vmatprep.mubr.bf16.mxu0 0
    %1099 = vmatmul.mubr.bf16.gmra.mxu0 %v1064
    %v1100 = vpop.f32.mrf.mxu0
    %v1101 = vadd.f32 0.0, %v1100
    %v1102 = vpop.f32.mrf.mxu0
    %v1103 = vpop.f32.mrf.mxu0
    %v1104 = vadd.f32 0.0, %v1103
    %v1105 = vpop.f32.mrf.mxu0
    %1106 = vdwg.mxu0
    %v1107 = vcombine.low %v911, %v918
    %v1108 = vcombine.low %v919, %v934
    %v1109 = vcombine.low %v941, %v942
    %v1111 = vunpack.c.l.s4 1966171168
    %v1112 = vunpack.c.0.s8 %v1111
    %v1113 = vlaneseq
    %v1114 = vshrl.u32 %v1113, 7
    %v1115 = vsub.s32 %v1112, %v1114
    %v1116 = vrot.slane %v1107, %v1115
    %v1118 = vunpack.c.l.s4 1966171168
    %v1119 = vunpack.c.0.s8 %v1118
    %v1120 = vlaneseq
    %v1121 = vshrl.u32 %v1120, 7
    %v1122 = vsub.s32 %v1119, %v1121
    %v1123 = vrot.slane %v1108, %v1122
    %v1125 = vunpack.c.l.s4 1966171168
    %v1126 = vunpack.c.0.s8 %v1125
    %v1127 = vlaneseq
    %v1128 = vshrl.u32 %v1127, 7
    %v1129 = vsub.s32 %v1126, %v1128
    %v1130 = vrot.slane %v1109, %v1129
    %v1131 = vcombine.low %v1116, %v1123
    %v1133 = vunpack.c.l.s4 1966171168
    %v1134 = vunpack.c.0.s8 %v1133
    %v1135 = vlaneseq
    %v1136 = vshrl.u32 %v1135, 7
    %v1137 = vsub.s32 %v1134, %v1136
    %v1138 = vrot.slane %v1131, %v1137
    %v1140 = vunpack.c.l.s4 1966171168
    %v1141 = vunpack.c.0.s8 %v1140
    %v1142 = vlaneseq
    %v1143 = vshrl.u32 %v1142, 7
    %v1144 = vsub.s32 %v1141, %v1143
    %v1145 = vrot.slane %v1130, %v1144
    %v1146 = vcombine.low %v1138, %v1145
    %v1151 = vunpack.c.l.b16 %v885
    %v1152 = vunpack.c.l.b16 %v886
    %v1153 = vunpack.c.l.b16 %v887
    %v1154 = vunpack.c.l.b16 %v888
    %v1155 = vpack.c.b16 %v1152, %v1151
    %v1156 = vpack.c.b16 %v1154, %v1153
    %v1160 = vsel %vm1062, %v1146, 0
    %1162 = vmatprep.subr.bf16.mxu0 0
    %1163 = vmatpush1.bf16.msra.mxu0 0
    %1164 = vmatprep.subr.bf16.mxu0 0
    %1165 = vmatpush1.bf16.msra.mxu0 0
    %1166 = vmatprep.subr.bf16.mxu0 0
    %1167 = vmatpush1.bf16.msra.mxu0 0
    %1168 = vmatprep.subr.bf16.mxu0 0
    %1169 = vmatpush1.bf16.msra.mxu0 0
    %1170 = vmatprep.subr.bf16.mxu0 0
    %1171 = vmatpush1.bf16.msra.mxu0 0
    %1172 = vmatprep.subr.bf16.mxu0 0
    %1173 = vmatpush1.bf16.msra.mxu0 0
    %1174 = vmatprep.subr.bf16.mxu0 0
    %1175 = vmatpush1.bf16.msra.mxu0 %v1156
    %1176 = vmatprep.subr.bf16.mxu0 0
    %1177 = vmatpush1.bf16.msra.mxu0 %v1155
    %1178 = vmatprep.subr.bf16.mxu0 0
    %1179 = vmatpush2.bf16.msra.mxu0 0
    %1180 = vmatprep.subr.bf16.mxu0 0
    %1181 = vmatpush2.bf16.msra.mxu0 0
    %1182 = vmatprep.subr.bf16.mxu0 0
    %1183 = vmatpush2.bf16.msra.mxu0 0
    %1184 = vmatprep.subr.bf16.mxu0 0
    %1185 = vmatpush2.bf16.msra.mxu0 0
    %1186 = vmatprep.subr.bf16.mxu0 0
    %1187 = vmatpush2.bf16.msra.mxu0 0
    %1188 = vmatprep.subr.bf16.mxu0 0
    %1189 = vmatpush2.bf16.msra.mxu0 0
    %1190 = vmatprep.subr.bf16.mxu0 0
    %1191 = vmatpush2.bf16.msra.mxu0 0
    %1192 = vmatprep.subr.bf16.mxu0 0
    %1193 = vmatpush2.bf16.msra.mxu0 0
    %1194 = vmatprep.mubr.bf16.mxu0 0
    %1195 = vmatmul.mubr.bf16.gmra.mxu0 %v1160
    %v1196 = vpop.f32.mrf.mxu0
    %v1197 = vadd.f32 %v1101, %v1196
    %v1198 = vpop.f32.mrf.mxu0
    %v1199 = vpop.f32.mrf.mxu0
    %v1200 = vadd.f32 %v1104, %v1199
    %v1201 = vpop.f32.mrf.mxu0
    %1202 = vdwg.mxu0
    %v1203 = vcombine.low %v918, %v919
    %v1204 = vcombine.low %v943, %v941
    %v1205 = vcombine.low %v942, %v944
    %v1207 = vunpack.c.l.s4 1966171168
    %v1208 = vunpack.c.0.s8 %v1207
    %v1209 = vlaneseq
    %v1210 = vshrl.u32 %v1209, 7
    %v1211 = vsub.s32 %v1208, %v1210
    %v1212 = vrot.slane %v1203, %v1211
    %v1214 = vunpack.c.l.s4 1966171168
    %v1215 = vunpack.c.0.s8 %v1214
    %v1216 = vlaneseq
    %v1217 = vshrl.u32 %v1216, 7
    %v1218 = vsub.s32 %v1215, %v1217
    %v1219 = vrot.slane %v1204, %v1218
    %v1221 = vunpack.c.l.s4 1966171168
    %v1222 = vunpack.c.0.s8 %v1221
    %v1223 = vlaneseq
    %v1224 = vshrl.u32 %v1223, 7
    %v1225 = vsub.s32 %v1222, %v1224
    %v1226 = vrot.slane %v1205, %v1225
    %v1227 = vcombine.low %v1212, %v1219
    %v1229 = vunpack.c.l.s4 1966171168
    %v1230 = vunpack.c.0.s8 %v1229
    %v1231 = vlaneseq
    %v1232 = vshrl.u32 %v1231, 7
    %v1233 = vsub.s32 %v1230, %v1232
    %v1234 = vrot.slane %v1227, %v1233
    %v1236 = vunpack.c.l.s4 1966171168
    %v1237 = vunpack.c.0.s8 %v1236
    %v1238 = vlaneseq
    %v1239 = vshrl.u32 %v1238, 7
    %v1240 = vsub.s32 %v1237, %v1239
    %v1241 = vrot.slane %v1226, %v1240
    %v1242 = vcombine.low %v1234, %v1241
    %v1247 = vunpack.c.l.b16 %v893
    %v1248 = vunpack.c.l.b16 %v894
    %v1249 = vunpack.c.l.b16 %v895
    %v1250 = vunpack.c.l.b16 %v896
    %v1251 = vpack.c.b16 %v1248, %v1247
    %v1252 = vpack.c.b16 %v1250, %v1249
    %v1256 = vsel %vm1062, %v1242, 0
    %1258 = vmatprep.subr.bf16.mxu0 0
    %1259 = vmatpush1.bf16.msra.mxu0 0
    %1260 = vmatprep.subr.bf16.mxu0 0
    %1261 = vmatpush1.bf16.msra.mxu0 0
    %1262 = vmatprep.subr.bf16.mxu0 0
    %1263 = vmatpush1.bf16.msra.mxu0 0
    %1264 = vmatprep.subr.bf16.mxu0 0
    %1265 = vmatpush1.bf16.msra.mxu0 0
    %1266 = vmatprep.subr.bf16.mxu0 0
    %1267 = vmatpush1.bf16.msra.mxu0 0
    %1268 = vmatprep.subr.bf16.mxu0 0
    %1269 = vmatpush1.bf16.msra.mxu0 0
    %1270 = vmatprep.subr.bf16.mxu0 0
    %1271 = vmatpush1.bf16.msra.mxu0 %v1252
    %1272 = vmatprep.subr.bf16.mxu0 0
    %1273 = vmatpush1.bf16.msra.mxu0 %v1251
    %1274 = vmatprep.subr.bf16.mxu0 0
    %1275 = vmatpush2.bf16.msra.mxu0 0
    %1276 = vmatprep.subr.bf16.mxu0 0
    %1277 = vmatpush2.bf16.msra.mxu0 0
    %1278 = vmatprep.subr.bf16.mxu0 0
    %1279 = vmatpush2.bf16.msra.mxu0 0
    %1280 = vmatprep.subr.bf16.mxu0 0
    %1281 = vmatpush2.bf16.msra.mxu0 0
    %1282 = vmatprep.subr.bf16.mxu0 0
    %1283 = vmatpush2.bf16.msra.mxu0 0
    %1284 = vmatprep.subr.bf16.mxu0 0
    %1285 = vmatpush2.bf16.msra.mxu0 0
    %1286 = vmatprep.subr.bf16.mxu0 0
    %1287 = vmatpush2.bf16.msra.mxu0 0
    %1288 = vmatprep.subr.bf16.mxu0 0
    %1289 = vmatpush2.bf16.msra.mxu0 0
    %1290 = vmatprep.mubr.bf16.mxu0 0
    %1291 = vmatmul.mubr.bf16.gmra.mxu0 %v1256
    %v1292 = vpop.f32.mrf.mxu0
    %v1293 = vadd.f32 0.0, %v1292
    %v1294 = vpop.f32.mrf.mxu0
    %v1295 = vpop.f32.mrf.mxu0
    %v1296 = vadd.f32 0.0, %v1295
    %v1297 = vpop.f32.mrf.mxu0
    %1298 = vdwg.mxu0
    %v1299 = vadd.f32 %v1197, %v1293
    %v1300 = vadd.f32 %v1200, %v1296
    %v1303 = vcombine.high %v1299, %v1299
    %v1305 = vunpack.c.l.s4 1983009808
    %v1306 = vunpack.c.0.s8 %v1305
    %v1307 = vlaneseq
    %v1308 = vshrl.u32 %v1307, 7
    %v1309 = vsub.s32 %v1306, %v1308
    %v1310 = vrot.slane %v1299, %v1309
    %v1312 = vunpack.c.l.s4 1983009808
    %v1313 = vunpack.c.0.s8 %v1312
    %v1314 = vlaneseq
    %v1315 = vshrl.u32 %v1314, 7
    %v1316 = vsub.s32 %v1313, %v1315
    %v1317 = vrot.slane %v1303, %v1316
    %v1318 = vcombine.high %v1310, %v1310
    %v1319 = vcombine.high %v1317, %v1317
    %v1321 = vunpack.c.l.s4 1983009808
    %v1322 = vunpack.c.0.s8 %v1321
    %v1323 = vlaneseq
    %v1324 = vshrl.u32 %v1323, 7
    %v1325 = vsub.s32 %v1322, %v1324
    %v1326 = vrot.slane %v1300, %v1325
    %v1327 = vcombine.high %v1326, %v1326
    %v1328 = vcombine.low %v1310, %v1318
    %v1330 = vunpack.c.l.s4 1983009808
    %v1331 = vunpack.c.0.s8 %v1330
    %v1332 = vlaneseq
    %v1333 = vshrl.u32 %v1332, 7
    %v1334 = vsub.s32 %v1331, %v1333
    %v1335 = vrot.slane %v1328, %v1334
    %v1337 = vunpack.c.l.s4 1983009808
    %v1338 = vunpack.c.0.s8 %v1337
    %v1339 = vlaneseq
    %v1340 = vshrl.u32 %v1339, 7
    %v1341 = vsub.s32 %v1338, %v1340
    %v1342 = vrot.slane %v1317, %v1341
    %v1343 = vcombine.low %v1335, %v1342
    %v1344 = vcombine.low %v1319, %v1326
    %v1346 = vunpack.c.l.s4 1983009808
    %v1347 = vunpack.c.0.s8 %v1346
    %v1348 = vlaneseq
    %v1349 = vshrl.u32 %v1348, 7
    %v1350 = vsub.s32 %v1347, %v1349
    %v1351 = vrot.slane %v1344, %v1350
    %v1353 = vunpack.c.l.s4 1983009808
    %v1354 = vunpack.c.0.s8 %v1353
    %v1355 = vlaneseq
    %v1356 = vshrl.u32 %v1355, 7
    %v1357 = vsub.s32 %v1354, %v1356
    %v1358 = vrot.slane %v1327, %v1357
    %v1359 = vcombine.low %v1351, %v1358
    %vm1362 = vcmask 1045504
    %v1363 = vsel %vm1362, %v1343, -inf
    %v1364 = vrot.slane %v1363, 4
    %v1365 = vmax.f32 %v1363, %v1364
    %v1366 = vrot.slane %v1365, 2
    %v1367 = vmax.f32 %v1365, %v1366
    %v1368 = vrot.slane %v1367, 1
    %v1369 = vmax.f32 %v1367, %v1368
    %v1370 = vsel %vm1362, %v1359, -inf
    %v1371 = vrot.slane %v1370, 4
    %v1372 = vmax.f32 %v1370, %v1371
    %v1373 = vrot.slane %v1372, 2
    %v1374 = vmax.f32 %v1372, %v1373
    %v1375 = vrot.slane %v1374, 1
    %v1376 = vmax.f32 %v1374, %v1375
    %v1377 = vld [vmem:[%s3] sm:$0x1]
    %v1379 = vlaneseq
    %v1380 = vshrl.u32 %v1379, 7
    %v1381 = vsub.s32 0, %v1380
    %v1382 = vrot.slane %v1377, %v1381
    %v1384 = vadd.f32 %v1369, %v1382
    %v1385 = vadd.f32 %v1376, %v1382
    %v1386 = vmax.f32 %v1384, 0.0
    %v1387 = vmax.f32 %v1385, 0.0
    %v1388 = vpack.c.bf16 %v1386, %v1386
    %v1389 = vpack.c.bf16 %v1387, %v1387
    %v1390 = vld [vmem:[%s8] sm:$0xf]
    %v1391 = vld [vmem:[%s8 + $0x4] sm:$0xf]
    %v1392 = vld [vmem:[%s8 + $0x8] sm:$0xf]
    %v1393 = vld [vmem:[%s8 + $0xc] sm:$0xf]
    %v1394 = vld [vmem:[%s8 + $0x10] sm:$0xf]
    %v1395 = vld [vmem:[%s8 + $0x14] sm:$0xf]
    %v1396 = vld [vmem:[%s8 + $0x18] sm:$0xf]
    %v1397 = vld [vmem:[%s8 + $0x1c] sm:$0xf]
    %v1398 = vld [vmem:[%s8 + $0x20] sm:$0xf]
    %v1399 = vld [vmem:[%s8 + $0x24] sm:$0xf]
    %v1400 = vld [vmem:[%s8 + $0x28] sm:$0xf]
    %v1401 = vld [vmem:[%s8 + $0x2c] sm:$0xf]
    %v1402 = vld [vmem:[%s8 + $0x30] sm:$0xf]
    %v1403 = vld [vmem:[%s8 + $0x34] sm:$0xf]
    %v1404 = vld [vmem:[%s8 + $0x38] sm:$0xf]
    %v1405 = vld [vmem:[%s8 + $0x3c] sm:$0xf]
    %v1408 = vunpack.c.l.b16 %v1388
    %v1409 = vunpack.c.l.b16 %v1389
    %v1410 = vrot.slane %v1409, 7
    %vm1411 = vcmask 1041409
    %v1412 = vsel %vm1411, %v1410, %v1408
    %v1413 = vpack.c.b16 %v1412, %v1412
    %v1431 = vunpack.c.l.b16 %v1390
    %v1432 = vunpack.c.l.b16 %v1391
    %v1433 = vunpack.c.l.b16 %v1392
    %v1434 = vunpack.c.l.b16 %v1393
    %v1435 = vunpack.c.l.b16 %v1394
    %v1436 = vunpack.c.l.b16 %v1395
    %v1437 = vunpack.c.l.b16 %v1396
    %v1438 = vunpack.c.l.b16 %v1397
    %v1439 = vunpack.c.l.b16 %v1398
    %v1440 = vunpack.c.l.b16 %v1399
    %v1441 = vunpack.c.l.b16 %v1400
    %v1442 = vunpack.c.l.b16 %v1401
    %v1443 = vunpack.c.l.b16 %v1402
    %v1444 = vunpack.c.l.b16 %v1403
    %v1445 = vunpack.c.l.b16 %v1404
    %v1446 = vunpack.c.l.b16 %v1405
    %v1447 = vpack.c.b16 %v1432, %v1431
    %v1448 = vpack.c.b16 %v1434, %v1433
    %v1449 = vpack.c.b16 %v1436, %v1435
    %v1450 = vpack.c.b16 %v1438, %v1437
    %v1451 = vpack.c.b16 %v1440, %v1439
    %v1452 = vpack.c.b16 %v1442, %v1441
    %v1453 = vpack.c.b16 %v1444, %v1443
    %v1454 = vpack.c.b16 %v1446, %v1445
    %1463 = vmatprep.subr.bf16.mxu0 0
    %1464 = vmatpush1.bf16.msra.mxu0 %v1454
    %1465 = vmatprep.subr.bf16.mxu0 0
    %1466 = vmatpush1.bf16.msra.mxu0 %v1453
    %1467 = vmatprep.subr.bf16.mxu0 0
    %1468 = vmatpush1.bf16.msra.mxu0 %v1452
    %1469 = vmatprep.subr.bf16.mxu0 0
    %1470 = vmatpush1.bf16.msra.mxu0 %v1451
    %1471 = vmatprep.subr.bf16.mxu0 0
    %1472 = vmatpush1.bf16.msra.mxu0 %v1450
    %1473 = vmatprep.subr.bf16.mxu0 0
    %1474 = vmatpush1.bf16.msra.mxu0 %v1449
    %1475 = vmatprep.subr.bf16.mxu0 0
    %1476 = vmatpush1.bf16.msra.mxu0 %v1448
    %1477 = vmatprep.subr.bf16.mxu0 0
    %1478 = vmatpush1.bf16.msra.mxu0 %v1447
    %1479 = vmatprep.subr.bf16.mxu0 0
    %1480 = vmatpush2.bf16.msra.mxu0 0
    %1481 = vmatprep.subr.bf16.mxu0 0
    %1482 = vmatpush2.bf16.msra.mxu0 0
    %1483 = vmatprep.subr.bf16.mxu0 0
    %1484 = vmatpush2.bf16.msra.mxu0 0
    %1485 = vmatprep.subr.bf16.mxu0 0
    %1486 = vmatpush2.bf16.msra.mxu0 0
    %1487 = vmatprep.subr.bf16.mxu0 0
    %1488 = vmatpush2.bf16.msra.mxu0 0
    %1489 = vmatprep.subr.bf16.mxu0 0
    %1490 = vmatpush2.bf16.msra.mxu0 0
    %1491 = vmatprep.subr.bf16.mxu0 0
    %1492 = vmatpush2.bf16.msra.mxu0 0
    %1493 = vmatprep.subr.bf16.mxu0 0
    %1494 = vmatpush2.bf16.msra.mxu0 0
    %1495 = vmatprep.mubr.bf16.mxu0 0
    %1496 = vmatmul.mubr.bf16.gmra.mxu0 %v1413
    %v1497 = vpop.f32.mrf.mxu0
    %v1498 = vadd.f32 0.0, %v1497
    %v1499 = vpop.f32.mrf.mxu0
    %v1500 = vpop.f32.mrf.mxu0
    %v1501 = vpop.f32.mrf.mxu0
    %1502 = vdwg.mxu0
    %v1504 = vlaneseq
    %v1505 = vshrl.u32 %v1504, 7
    %v1506 = vsub.s32 0, %v1505
    %v1507 = vrot.slane %v884, %v1506
    %v1509 = vadd.f32 %v1507, %v1498
    %v1510 = vld [vmem:[%s4] sm:$0xf]
    %v1511 = vld [vmem:[%s4 + $0x4] sm:$0xf]
    %v1512 = vld [vmem:[%s4 + $0x8] sm:$0xf]
    %v1513 = vld [vmem:[%s4 + $0xc] sm:$0xf]
    %v1514 = vld [vmem:[%s4 + $0x10] sm:$0xf]
    %v1515 = vld [vmem:[%s4 + $0x14] sm:$0xf]
    %v1516 = vld [vmem:[%s4 + $0x18] sm:$0xf]
    %v1517 = vld [vmem:[%s4 + $0x1c] sm:$0xf]
    %v1518 = vld [vmem:[%s4 + $0x20] sm:$0xf]
    %v1519 = vld [vmem:[%s4 + $0x24] sm:$0xf]
    %v1520 = vld [vmem:[%s4 + $0x28] sm:$0xf]
    %v1521 = vld [vmem:[%s4 + $0x2c] sm:$0xf]
    %v1522 = vld [vmem:[%s4 + $0x30] sm:$0xf]
    %v1523 = vld [vmem:[%s4 + $0x34] sm:$0xf]
    %v1524 = vld [vmem:[%s4 + $0x38] sm:$0xf]
    %v1525 = vld [vmem:[%s4 + $0x3c] sm:$0xf]
    %v1526 = vunpack.i.l.s16 %v911
    %v1527 = vunpack.i.h.s16 %v911
    %v1528 = vunpack.i.l.s16 %v918
    %v1529 = vunpack.i.h.s16 %v918
    %v1530 = vunpack.i.l.s16 %v919
    %v1531 = vunpack.i.l.s16 %v934
    %v1532 = vunpack.i.h.s16 %v934
    %v1533 = vunpack.i.l.s16 %v941
    %v1534 = vunpack.i.h.s16 %v941
    %v1535 = vunpack.i.l.s16 %v942
    %v1536 = vunpack.i.h.s16 %v919
    %v1537 = vunpack.i.h.s16 %v942
    %v1538 = vpack.i.b16 %v1528, %v1527
    %v1539 = vpack.i.b16 %v1530, %v1529
    %v1540 = vpack.i.b16 %v1532, %v1536
    %v1541 = vpack.i.b16 %v1534, %v1533
    %v1542 = vpack.i.b16 %v1537, %v1535
    %v1543 = vcombine.low %v1538, %v1539
    %v1544 = vcombine.low %v1540, %v1541
    %v1546 = vunpack.c.l.s4 1966171168
    %v1547 = vunpack.c.0.s8 %v1546
    %v1548 = vlaneseq
    %v1549 = vshrl.u32 %v1548, 7
    %v1550 = vsub.s32 %v1547, %v1549
    %v1551 = vrot.slane %v1543, %v1550
    %v1553 = vunpack.c.l.s4 1966171168
    %v1554 = vunpack.c.0.s8 %v1553
    %v1555 = vlaneseq
    %v1556 = vshrl.u32 %v1555, 7
    %v1557 = vsub.s32 %v1554, %v1556
    %v1558 = vrot.slane %v1544, %v1557
    %v1560 = vunpack.c.l.s4 1966171168
    %v1561 = vunpack.c.0.s8 %v1560
    %v1562 = vlaneseq
    %v1563 = vshrl.u32 %v1562, 7
    %v1564 = vsub.s32 %v1561, %v1563
    %v1565 = vrot.slane %v1542, %v1564
    %v1566 = vcombine.low %v1551, %v1558
    %v1568 = vunpack.c.l.s4 1966171168
    %v1569 = vunpack.c.0.s8 %v1568
    %v1570 = vlaneseq
    %v1571 = vshrl.u32 %v1570, 7
    %v1572 = vsub.s32 %v1569, %v1571
    %v1573 = vrot.slane %v1566, %v1572
    %v1575 = vunpack.c.l.s4 1966171168
    %v1576 = vunpack.c.0.s8 %v1575
    %v1577 = vlaneseq
    %v1578 = vshrl.u32 %v1577, 7
    %v1579 = vsub.s32 %v1576, %v1578
    %v1580 = vrot.slane %v1565, %v1579
    %v1581 = vcombine.low %v1573, %v1580
    %v1586 = vunpack.c.l.b16 %v1514
    %v1587 = vunpack.c.l.b16 %v1515
    %v1588 = vunpack.c.l.b16 %v1516
    %v1589 = vunpack.c.l.b16 %v1517
    %v1590 = vpack.c.b16 %v1587, %v1586
    %v1591 = vpack.c.b16 %v1589, %v1588
    %v1595 = vsel %vm1062, %v1581, 0
    %1597 = vmatprep.subr.bf16.mxu0 0
    %1598 = vmatpush1.bf16.msra.mxu0 0
    %1599 = vmatprep.subr.bf16.mxu0 0
    %1600 = vmatpush1.bf16.msra.mxu0 0
    %1601 = vmatprep.subr.bf16.mxu0 0
    %1602 = vmatpush1.bf16.msra.mxu0 0
    %1603 = vmatprep.subr.bf16.mxu0 0
    %1604 = vmatpush1.bf16.msra.mxu0 0
    %1605 = vmatprep.subr.bf16.mxu0 0
    %1606 = vmatpush1.bf16.msra.mxu0 0
    %1607 = vmatprep.subr.bf16.mxu0 0
    %1608 = vmatpush1.bf16.msra.mxu0 0
    %1609 = vmatprep.subr.bf16.mxu0 0
    %1610 = vmatpush1.bf16.msra.mxu0 %v1591
    %1611 = vmatprep.subr.bf16.mxu0 0
    %1612 = vmatpush1.bf16.msra.mxu0 %v1590
    %1613 = vmatprep.subr.bf16.mxu0 0
    %1614 = vmatpush2.bf16.msra.mxu0 0
    %1615 = vmatprep.subr.bf16.mxu0 0
    %1616 = vmatpush2.bf16.msra.mxu0 0
    %1617 = vmatprep.subr.bf16.mxu0 0
    %1618 = vmatpush2.bf16.msra.mxu0 0
    %1619 = vmatprep.subr.bf16.mxu0 0
    %1620 = vmatpush2.bf16.msra.mxu0 0
    %1621 = vmatprep.subr.bf16.mxu0 0
    %1622 = vmatpush2.bf16.msra.mxu0 0
    %1623 = vmatprep.subr.bf16.mxu0 0
    %1624 = vmatpush2.bf16.msra.mxu0 0
    %1625 = vmatprep.subr.bf16.mxu0 0
    %1626 = vmatpush2.bf16.msra.mxu0 0
    %1627 = vmatprep.subr.bf16.mxu0 0
    %1628 = vmatpush2.bf16.msra.mxu0 0
    %1629 = vmatprep.mubr.bf16.mxu0 0
    %1630 = vmatmul.mubr.bf16.gmra.mxu0 %v1595
    %v1631 = vpop.f32.mrf.mxu0
    %v1632 = vadd.f32 0.0, %v1631
    %v1633 = vpop.f32.mrf.mxu0
    %v1634 = vpop.f32.mrf.mxu0
    %v1635 = vadd.f32 0.0, %v1634
    %v1636 = vpop.f32.mrf.mxu0
    %1637 = vdwg.mxu0
    %v1638 = vpack.i.b16 %v1527, %v1526
    %v1639 = vpack.i.b16 %v1529, %v1528
    %v1640 = vpack.i.b16 %v1531, %v1530
    %v1641 = vpack.i.b16 %v1533, %v1532
    %v1642 = vpack.i.b16 %v1535, %v1534
    %v1643 = vcombine.low %v1638, %v1639
    %v1644 = vcombine.low %v1640, %v1641
    %v1646 = vunpack.c.l.s4 1966171168
    %v1647 = vunpack.c.0.s8 %v1646
    %v1648 = vlaneseq
    %v1649 = vshrl.u32 %v1648, 7
    %v1650 = vsub.s32 %v1647, %v1649
    %v1651 = vrot.slane %v1643, %v1650
    %v1653 = vunpack.c.l.s4 1966171168
    %v1654 = vunpack.c.0.s8 %v1653
    %v1655 = vlaneseq
    %v1656 = vshrl.u32 %v1655, 7
    %v1657 = vsub.s32 %v1654, %v1656
    %v1658 = vrot.slane %v1644, %v1657
    %v1660 = vunpack.c.l.s4 1966171168
    %v1661 = vunpack.c.0.s8 %v1660
    %v1662 = vlaneseq
    %v1663 = vshrl.u32 %v1662, 7
    %v1664 = vsub.s32 %v1661, %v1663
    %v1665 = vrot.slane %v1642, %v1664
    %v1666 = vcombine.low %v1651, %v1658
    %v1668 = vunpack.c.l.s4 1966171168
    %v1669 = vunpack.c.0.s8 %v1668
    %v1670 = vlaneseq
    %v1671 = vshrl.u32 %v1670, 7
    %v1672 = vsub.s32 %v1669, %v1671
    %v1673 = vrot.slane %v1666, %v1672
    %v1675 = vunpack.c.l.s4 1966171168
    %v1676 = vunpack.c.0.s8 %v1675
    %v1677 = vlaneseq
    %v1678 = vshrl.u32 %v1677, 7
    %v1679 = vsub.s32 %v1676, %v1678
    %v1680 = vrot.slane %v1665, %v1679
    %v1681 = vcombine.low %v1673, %v1680
    %v1686 = vunpack.c.l.b16 %v1510
    %v1687 = vunpack.c.l.b16 %v1511
    %v1688 = vunpack.c.l.b16 %v1512
    %v1689 = vunpack.c.l.b16 %v1513
    %v1690 = vpack.c.b16 %v1687, %v1686
    %v1691 = vpack.c.b16 %v1689, %v1688
    %v1695 = vsel %vm1062, %v1681, 0
    %1697 = vmatprep.subr.bf16.mxu0 0
    %1698 = vmatpush1.bf16.msra.mxu0 0
    %1699 = vmatprep.subr.bf16.mxu0 0
    %1700 = vmatpush1.bf16.msra.mxu0 0
    %1701 = vmatprep.subr.bf16.mxu0 0
    %1702 = vmatpush1.bf16.msra.mxu0 0
    %1703 = vmatprep.subr.bf16.mxu0 0
    %1704 = vmatpush1.bf16.msra.mxu0 0
    %1705 = vmatprep.subr.bf16.mxu0 0
    %1706 = vmatpush1.bf16.msra.mxu0 0
    %1707 = vmatprep.subr.bf16.mxu0 0
    %1708 = vmatpush1.bf16.msra.mxu0 0
    %1709 = vmatprep.subr.bf16.mxu0 0
    %1710 = vmatpush1.bf16.msra.mxu0 %v1691
    %1711 = vmatprep.subr.bf16.mxu0 0
    %1712 = vmatpush1.bf16.msra.mxu0 %v1690
    %1713 = vmatprep.subr.bf16.mxu0 0
    %1714 = vmatpush2.bf16.msra.mxu0 0
    %1715 = vmatprep.subr.bf16.mxu0 0
    %1716 = vmatpush2.bf16.msra.mxu0 0
    %1717 = vmatprep.subr.bf16.mxu0 0
    %1718 = vmatpush2.bf16.msra.mxu0 0
    %1719 = vmatprep.subr.bf16.mxu0 0
    %1720 = vmatpush2.bf16.msra.mxu0 0
    %1721 = vmatprep.subr.bf16.mxu0 0
    %1722 = vmatpush2.bf16.msra.mxu0 0
    %1723 = vmatprep.subr.bf16.mxu0 0
    %1724 = vmatpush2.bf16.msra.mxu0 0
    %1725 = vmatprep.subr.bf16.mxu0 0
    %1726 = vmatpush2.bf16.msra.mxu0 0
    %1727 = vmatprep.subr.bf16.mxu0 0
    %1728 = vmatpush2.bf16.msra.mxu0 0
    %1729 = vmatprep.mubr.bf16.mxu0 0
    %1730 = vmatmul.mubr.bf16.gmra.mxu0 %v1695
    %v1731 = vpop.f32.mrf.mxu0
    %v1732 = vadd.f32 %v1632, %v1731
    %v1733 = vpop.f32.mrf.mxu0
    %v1734 = vpop.f32.mrf.mxu0
    %v1735 = vadd.f32 %v1635, %v1734
    %v1736 = vpop.f32.mrf.mxu0
    %1737 = vdwg.mxu0
    %v1738 = vunpack.i.l.s16 %v943
    %v1739 = vunpack.i.l.s16 %v944
    %v1740 = vpack.i.b16 %v1536, %v1530
    %v1741 = vpack.i.b16 %v1533, %v1738
    %v1742 = vpack.i.b16 %v1739, %v1537
    %v1743 = vcombine.low %v1639, %v1740
    %v1744 = vcombine.low %v1741, %v1642
    %v1746 = vunpack.c.l.s4 1966171168
    %v1747 = vunpack.c.0.s8 %v1746
    %v1748 = vlaneseq
    %v1749 = vshrl.u32 %v1748, 7
    %v1750 = vsub.s32 %v1747, %v1749
    %v1751 = vrot.slane %v1743, %v1750
    %v1753 = vunpack.c.l.s4 1966171168
    %v1754 = vunpack.c.0.s8 %v1753
    %v1755 = vlaneseq
    %v1756 = vshrl.u32 %v1755, 7
    %v1757 = vsub.s32 %v1754, %v1756
    %v1758 = vrot.slane %v1744, %v1757
    %v1760 = vunpack.c.l.s4 1966171168
    %v1761 = vunpack.c.0.s8 %v1760
    %v1762 = vlaneseq
    %v1763 = vshrl.u32 %v1762, 7
    %v1764 = vsub.s32 %v1761, %v1763
    %v1765 = vrot.slane %v1742, %v1764
    %v1766 = vcombine.low %v1751, %v1758
    %v1768 = vunpack.c.l.s4 1966171168
    %v1769 = vunpack.c.0.s8 %v1768
    %v1770 = vlaneseq
    %v1771 = vshrl.u32 %v1770, 7
    %v1772 = vsub.s32 %v1769, %v1771
    %v1773 = vrot.slane %v1766, %v1772
    %v1775 = vunpack.c.l.s4 1966171168
    %v1776 = vunpack.c.0.s8 %v1775
    %v1777 = vlaneseq
    %v1778 = vshrl.u32 %v1777, 7
    %v1779 = vsub.s32 %v1776, %v1778
    %v1780 = vrot.slane %v1765, %v1779
    %v1781 = vcombine.low %v1773, %v1780
    %v1786 = vunpack.c.l.b16 %v1518
    %v1787 = vunpack.c.l.b16 %v1519
    %v1788 = vunpack.c.l.b16 %v1520
    %v1789 = vunpack.c.l.b16 %v1521
    %v1790 = vpack.c.b16 %v1787, %v1786
    %v1791 = vpack.c.b16 %v1789, %v1788
    %v1795 = vsel %vm1062, %v1781, 0
    %1797 = vmatprep.subr.bf16.mxu0 0
    %1798 = vmatpush1.bf16.msra.mxu0 0
    %1799 = vmatprep.subr.bf16.mxu0 0
    %1800 = vmatpush1.bf16.msra.mxu0 0
    %1801 = vmatprep.subr.bf16.mxu0 0
    %1802 = vmatpush1.bf16.msra.mxu0 0
    %1803 = vmatprep.subr.bf16.mxu0 0
    %1804 = vmatpush1.bf16.msra.mxu0 0
    %1805 = vmatprep.subr.bf16.mxu0 0
    %1806 = vmatpush1.bf16.msra.mxu0 0
    %1807 = vmatprep.subr.bf16.mxu0 0
    %1808 = vmatpush1.bf16.msra.mxu0 0
    %1809 = vmatprep.subr.bf16.mxu0 0
    %1810 = vmatpush1.bf16.msra.mxu0 %v1791
    %1811 = vmatprep.subr.bf16.mxu0 0
    %1812 = vmatpush1.bf16.msra.mxu0 %v1790
    %1813 = vmatprep.subr.bf16.mxu0 0
    %1814 = vmatpush2.bf16.msra.mxu0 0
    %1815 = vmatprep.subr.bf16.mxu0 0
    %1816 = vmatpush2.bf16.msra.mxu0 0
    %1817 = vmatprep.subr.bf16.mxu0 0
    %1818 = vmatpush2.bf16.msra.mxu0 0
    %1819 = vmatprep.subr.bf16.mxu0 0
    %1820 = vmatpush2.bf16.msra.mxu0 0
    %1821 = vmatprep.subr.bf16.mxu0 0
    %1822 = vmatpush2.bf16.msra.mxu0 0
    %1823 = vmatprep.subr.bf16.mxu0 0
    %1824 = vmatpush2.bf16.msra.mxu0 0
    %1825 = vmatprep.subr.bf16.mxu0 0
    %1826 = vmatpush2.bf16.msra.mxu0 0
    %1827 = vmatprep.subr.bf16.mxu0 0
    %1828 = vmatpush2.bf16.msra.mxu0 0
    %1829 = vmatprep.mubr.bf16.mxu0 0
    %1830 = vmatmul.mubr.bf16.gmra.mxu0 %v1795
    %v1831 = vpop.f32.mrf.mxu0
    %v1832 = vadd.f32 0.0, %v1831
    %v1833 = vpop.f32.mrf.mxu0
    %v1834 = vpop.f32.mrf.mxu0
    %v1835 = vadd.f32 0.0, %v1834
    %v1836 = vpop.f32.mrf.mxu0
    %1837 = vdwg.mxu0
    %v1838 = vadd.f32 %v1732, %v1832
    %v1839 = vadd.f32 %v1735, %v1835
    %v1840 = vunpack.i.h.s16 %v943
    %v1841 = vunpack.i.h.s16 %v944
    %v1842 = vpack.i.b16 %v1738, %v1536
    %v1843 = vpack.i.b16 %v1534, %v1840
    %v1844 = vpack.i.b16 %v1841, %v1739
    %v1845 = vcombine.low %v1539, %v1842
    %v1846 = vcombine.low %v1843, %v1542
    %v1848 = vunpack.c.l.s4 1966171168
    %v1849 = vunpack.c.0.s8 %v1848
    %v1850 = vlaneseq
    %v1851 = vshrl.u32 %v1850, 7
    %v1852 = vsub.s32 %v1849, %v1851
    %v1853 = vrot.slane %v1845, %v1852
    %v1855 = vunpack.c.l.s4 1966171168
    %v1856 = vunpack.c.0.s8 %v1855
    %v1857 = vlaneseq
    %v1858 = vshrl.u32 %v1857, 7
    %v1859 = vsub.s32 %v1856, %v1858
    %v1860 = vrot.slane %v1846, %v1859
    %v1862 = vunpack.c.l.s4 1966171168
    %v1863 = vunpack.c.0.s8 %v1862
    %v1864 = vlaneseq
    %v1865 = vshrl.u32 %v1864, 7
    %v1866 = vsub.s32 %v1863, %v1865
    %v1867 = vrot.slane %v1844, %v1866
    %v1868 = vcombine.low %v1853, %v1860
    %v1870 = vunpack.c.l.s4 1966171168
    %v1871 = vunpack.c.0.s8 %v1870
    %v1872 = vlaneseq
    %v1873 = vshrl.u32 %v1872, 7
    %v1874 = vsub.s32 %v1871, %v1873
    %v1875 = vrot.slane %v1868, %v1874
    %v1877 = vunpack.c.l.s4 1966171168
    %v1878 = vunpack.c.0.s8 %v1877
    %v1879 = vlaneseq
    %v1880 = vshrl.u32 %v1879, 7
    %v1881 = vsub.s32 %v1878, %v1880
    %v1882 = vrot.slane %v1867, %v1881
    %v1883 = vcombine.low %v1875, %v1882
    %v1888 = vunpack.c.l.b16 %v1522
    %v1889 = vunpack.c.l.b16 %v1523
    %v1890 = vunpack.c.l.b16 %v1524
    %v1891 = vunpack.c.l.b16 %v1525
    %v1892 = vpack.c.b16 %v1889, %v1888
    %v1893 = vpack.c.b16 %v1891, %v1890
    %v1897 = vsel %vm1062, %v1883, 0
    %1899 = vmatprep.subr.bf16.mxu0 0
    %1900 = vmatpush1.bf16.msra.mxu0 0
    %1901 = vmatprep.subr.bf16.mxu0 0
    %1902 = vmatpush1.bf16.msra.mxu0 0
    %1903 = vmatprep.subr.bf16.mxu0 0
    %1904 = vmatpush1.bf16.msra.mxu0 0
    %1905 = vmatprep.subr.bf16.mxu0 0
    %1906 = vmatpush1.bf16.msra.mxu0 0
    %1907 = vmatprep.subr.bf16.mxu0 0
    %1908 = vmatpush1.bf16.msra.mxu0 0
    %1909 = vmatprep.subr.bf16.mxu0 0
    %1910 = vmatpush1.bf16.msra.mxu0 0
    %1911 = vmatprep.subr.bf16.mxu0 0
    %1912 = vmatpush1.bf16.msra.mxu0 %v1893
    %1913 = vmatprep.subr.bf16.mxu0 0
    %1914 = vmatpush1.bf16.msra.mxu0 %v1892
    %1915 = vmatprep.subr.bf16.mxu0 0
    %1916 = vmatpush2.bf16.msra.mxu0 0
    %1917 = vmatprep.subr.bf16.mxu0 0
    %1918 = vmatpush2.bf16.msra.mxu0 0
    %1919 = vmatprep.subr.bf16.mxu0 0
    %1920 = vmatpush2.bf16.msra.mxu0 0
    %1921 = vmatprep.subr.bf16.mxu0 0
    %1922 = vmatpush2.bf16.msra.mxu0 0
    %1923 = vmatprep.subr.bf16.mxu0 0
    %1924 = vmatpush2.bf16.msra.mxu0 0
    %1925 = vmatprep.subr.bf16.mxu0 0
    %1926 = vmatpush2.bf16.msra.mxu0 0
    %1927 = vmatprep.subr.bf16.mxu0 0
    %1928 = vmatpush2.bf16.msra.mxu0 0
    %1929 = vmatprep.subr.bf16.mxu0 0
    %1930 = vmatpush2.bf16.msra.mxu0 0
    %1931 = vmatprep.mubr.bf16.mxu0 0
    %1932 = vmatmul.mubr.bf16.gmra.mxu0 %v1897
    %v1933 = vpop.f32.mrf.mxu0
    %v1934 = vadd.f32 0.0, %v1933
    %v1935 = vpop.f32.mrf.mxu0
    %v1936 = vpop.f32.mrf.mxu0
    %v1937 = vadd.f32 0.0, %v1936
    %v1938 = vpop.f32.mrf.mxu0
    %1939 = vdwg.mxu0
    %v1940 = vadd.f32 %v1838, %v1934
    %v1941 = vadd.f32 %v1839, %v1937
    %v1944 = vcombine.high %v1940, %v1940
    %v1946 = vunpack.c.l.s4 1966171168
    %v1947 = vunpack.c.0.s8 %v1946
    %v1948 = vlaneseq
    %v1949 = vshrl.u32 %v1948, 7
    %v1950 = vsub.s32 %v1947, %v1949
    %v1951 = vrot.slane %v1940, %v1950
    %v1953 = vunpack.c.l.s4 1966171168
    %v1954 = vunpack.c.0.s8 %v1953
    %v1955 = vlaneseq
    %v1956 = vshrl.u32 %v1955, 7
    %v1957 = vsub.s32 %v1954, %v1956
    %v1958 = vrot.slane %v1944, %v1957
    %v1959 = vcombine.high %v1951, %v1951
    %v1960 = vcombine.high %v1958, %v1958
    %v1962 = vunpack.c.l.s4 1966171168
    %v1963 = vunpack.c.0.s8 %v1962
    %v1964 = vlaneseq
    %v1965 = vshrl.u32 %v1964, 7
    %v1966 = vsub.s32 %v1963, %v1965
    %v1967 = vrot.slane %v1951, %v1966
    %v1969 = vunpack.c.l.s4 1966171168
    %v1970 = vunpack.c.0.s8 %v1969
    %v1971 = vlaneseq
    %v1972 = vshrl.u32 %v1971, 7
    %v1973 = vsub.s32 %v1970, %v1972
    %v1974 = vrot.slane %v1958, %v1973
    %v1976 = vunpack.c.l.s4 1966171168
    %v1977 = vunpack.c.0.s8 %v1976
    %v1978 = vlaneseq
    %v1979 = vshrl.u32 %v1978, 7
    %v1980 = vsub.s32 %v1977, %v1979
    %v1981 = vrot.slane %v1959, %v1980
    %v1983 = vunpack.c.l.s4 1966171168
    %v1984 = vunpack.c.0.s8 %v1983
    %v1985 = vlaneseq
    %v1986 = vshrl.u32 %v1985, 7
    %v1987 = vsub.s32 %v1984, %v1986
    %v1988 = vrot.slane %v1960, %v1987
    %v1989 = vcombine.high %v1967, %v1967
    %v1990 = vcombine.high %v1974, %v1974
    %v1991 = vcombine.high %v1981, %v1981
    %v1992 = vcombine.high %v1988, %v1988
    %v1994 = vunpack.c.l.s4 1966171168
    %v1995 = vunpack.c.0.s8 %v1994
    %v1996 = vlaneseq
    %v1997 = vshrl.u32 %v1996, 7
    %v1998 = vsub.s32 %v1995, %v1997
    %v1999 = vrot.slane %v1941, %v1998
    %v2000 = vcombine.high %v1999, %v1999
    %v2002 = vunpack.c.l.s4 1966171168
    %v2003 = vunpack.c.0.s8 %v2002
    %v2004 = vlaneseq
    %v2005 = vshrl.u32 %v2004, 7
    %v2006 = vsub.s32 %v2003, %v2005
    %v2007 = vrot.slane %v1999, %v2006
    %v2009 = vunpack.c.l.s4 1966171168
    %v2010 = vunpack.c.0.s8 %v2009
    %v2011 = vlaneseq
    %v2012 = vshrl.u32 %v2011, 7
    %v2013 = vsub.s32 %v2010, %v2012
    %v2014 = vrot.slane %v2000, %v2013
    %v2015 = vcombine.low %v1967, %v1981
    %v2016 = vcombine.low %v1989, %v1991
    %v2018 = vunpack.c.l.s4 1966171168
    %v2019 = vunpack.c.0.s8 %v2018
    %v2020 = vlaneseq
    %v2021 = vshrl.u32 %v2020, 7
    %v2022 = vsub.s32 %v2019, %v2021
    %v2023 = vrot.slane %v2015, %v2022
    %v2025 = vunpack.c.l.s4 1966171168
    %v2026 = vunpack.c.0.s8 %v2025
    %v2027 = vlaneseq
    %v2028 = vshrl.u32 %v2027, 7
    %v2029 = vsub.s32 %v2026, %v2028
    %v2030 = vrot.slane %v2016, %v2029
    %v2032 = vunpack.c.l.s4 1966171168
    %v2033 = vunpack.c.0.s8 %v2032
    %v2034 = vlaneseq
    %v2035 = vshrl.u32 %v2034, 7
    %v2036 = vsub.s32 %v2033, %v2035
    %v2037 = vrot.slane %v1974, %v2036
    %v2038 = vcombine.low %v2023, %v2030
    %v2040 = vunpack.c.l.s4 1966171168
    %v2041 = vunpack.c.0.s8 %v2040
    %v2042 = vlaneseq
    %v2043 = vshrl.u32 %v2042, 7
    %v2044 = vsub.s32 %v2041, %v2043
    %v2045 = vrot.slane %v2038, %v2044
    %v2047 = vunpack.c.l.s4 1966171168
    %v2048 = vunpack.c.0.s8 %v2047
    %v2049 = vlaneseq
    %v2050 = vshrl.u32 %v2049, 7
    %v2051 = vsub.s32 %v2048, %v2050
    %v2052 = vrot.slane %v2037, %v2051
    %v2053 = vcombine.low %v2045, %v2052
    %v2054 = vcombine.low %v1988, %v1990
    %v2055 = vcombine.low %v1992, %v2007
    %v2057 = vunpack.c.l.s4 1966171168
    %v2058 = vunpack.c.0.s8 %v2057
    %v2059 = vlaneseq
    %v2060 = vshrl.u32 %v2059, 7
    %v2061 = vsub.s32 %v2058, %v2060
    %v2062 = vrot.slane %v2054, %v2061
    %v2064 = vunpack.c.l.s4 1966171168
    %v2065 = vunpack.c.0.s8 %v2064
    %v2066 = vlaneseq
    %v2067 = vshrl.u32 %v2066, 7
    %v2068 = vsub.s32 %v2065, %v2067
    %v2069 = vrot.slane %v2055, %v2068
    %v2071 = vunpack.c.l.s4 1966171168
    %v2072 = vunpack.c.0.s8 %v2071
    %v2073 = vlaneseq
    %v2074 = vshrl.u32 %v2073, 7
    %v2075 = vsub.s32 %v2072, %v2074
    %v2076 = vrot.slane %v2014, %v2075
    %v2077 = vcombine.low %v2062, %v2069
    %v2079 = vunpack.c.l.s4 1966171168
    %v2080 = vunpack.c.0.s8 %v2079
    %v2081 = vlaneseq
    %v2082 = vshrl.u32 %v2081, 7
    %v2083 = vsub.s32 %v2080, %v2082
    %v2084 = vrot.slane %v2077, %v2083
    %v2086 = vunpack.c.l.s4 1966171168
    %v2087 = vunpack.c.0.s8 %v2086
    %v2088 = vlaneseq
    %v2089 = vshrl.u32 %v2088, 7
    %v2090 = vsub.s32 %v2087, %v2089
    %v2091 = vrot.slane %v2076, %v2090
    %v2092 = vcombine.low %v2084, %v2091
    %vm2095 = vcmask 1044480
    %v2096 = vsel %vm2095, %v2053, -inf
    %v2097 = vrot.slane %v2096, 4
    %v2098 = vmax.f32 %v2096, %v2097
    %v2099 = vrot.slane %v2098, 2
    %v2100 = vmax.f32 %v2098, %v2099
    %v2101 = vrot.slane %v2100, 1
    %v2102 = vmax.f32 %v2100, %v2101
    %v2103 = vsel %vm2095, %v2092, -inf
    %v2104 = vrot.slane %v2103, 4
    %v2105 = vmax.f32 %v2103, %v2104
    %v2106 = vrot.slane %v2105, 2
    %v2107 = vmax.f32 %v2105, %v2106
    %v2108 = vrot.slane %v2107, 1
    %v2109 = vmax.f32 %v2107, %v2108
    %v2110 = vld [vmem:[%s5] sm:$0x1]
    %v2112 = vlaneseq
    %v2113 = vshrl.u32 %v2112, 7
    %v2114 = vsub.s32 0, %v2113
    %v2115 = vrot.slane %v2110, %v2114
    %v2117 = vadd.f32 %v2102, %v2115
    %v2118 = vadd.f32 %v2109, %v2115
    %v2119 = vmax.f32 %v2117, 0.0
    %v2120 = vmax.f32 %v2118, 0.0
    %v2121 = vpack.c.bf16 %v2119, %v2119
    %v2122 = vpack.c.bf16 %v2120, %v2120
    %v2123 = vld [vmem:[%s9] sm:$0xf]
    %v2124 = vld [vmem:[%s9 + $0x4] sm:$0xf]
    %v2125 = vld [vmem:[%s9 + $0x8] sm:$0xf]
    %v2126 = vld [vmem:[%s9 + $0xc] sm:$0xf]
    %v2127 = vld [vmem:[%s9 + $0x10] sm:$0xf]
    %v2128 = vld [vmem:[%s9 + $0x14] sm:$0xf]
    %v2129 = vld [vmem:[%s9 + $0x18] sm:$0xf]
    %v2130 = vld [vmem:[%s9 + $0x1c] sm:$0xf]
    %v2131 = vld [vmem:[%s9 + $0x20] sm:$0xf]
    %v2132 = vld [vmem:[%s9 + $0x24] sm:$0xf]
    %v2133 = vld [vmem:[%s9 + $0x28] sm:$0xf]
    %v2134 = vld [vmem:[%s9 + $0x2c] sm:$0xf]
    %v2135 = vld [vmem:[%s9 + $0x30] sm:$0xf]
    %v2136 = vld [vmem:[%s9 + $0x34] sm:$0xf]
    %v2137 = vld [vmem:[%s9 + $0x38] sm:$0xf]
    %v2138 = vld [vmem:[%s9 + $0x3c] sm:$0xf]
    %v2141 = vunpack.c.l.b16 %v2121
    %v2142 = vunpack.c.l.b16 %v2122
    %v2143 = vrot.slane %v2142, 7
    %v2144 = vsel %vm1411, %v2143, %v2141
    %v2145 = vpack.c.b16 %v2144, %v2144
    %v2163 = vunpack.c.l.b16 %v2123
    %v2164 = vunpack.c.l.b16 %v2124
    %v2165 = vunpack.c.l.b16 %v2125
    %v2166 = vunpack.c.l.b16 %v2126
    %v2167 = vunpack.c.l.b16 %v2127
    %v2168 = vunpack.c.l.b16 %v2128
    %v2169 = vunpack.c.l.b16 %v2129
    %v2170 = vunpack.c.l.b16 %v2130
    %v2171 = vunpack.c.l.b16 %v2131
    %v2172 = vunpack.c.l.b16 %v2132
    %v2173 = vunpack.c.l.b16 %v2133
    %v2174 = vunpack.c.l.b16 %v2134
    %v2175 = vunpack.c.l.b16 %v2135
    %v2176 = vunpack.c.l.b16 %v2136
    %v2177 = vunpack.c.l.b16 %v2137
    %v2178 = vunpack.c.l.b16 %v2138
    %v2179 = vpack.c.b16 %v2164, %v2163
    %v2180 = vpack.c.b16 %v2166, %v2165
    %v2181 = vpack.c.b16 %v2168, %v2167
    %v2182 = vpack.c.b16 %v2170, %v2169
    %v2183 = vpack.c.b16 %v2172, %v2171
    %v2184 = vpack.c.b16 %v2174, %v2173
    %v2185 = vpack.c.b16 %v2176, %v2175
    %v2186 = vpack.c.b16 %v2178, %v2177
    %2195 = vmatprep.subr.bf16.mxu0 0
    %2196 = vmatpush1.bf16.msra.mxu0 %v2186
    %2197 = vmatprep.subr.bf16.mxu0 0
    %2198 = vmatpush1.bf16.msra.mxu0 %v2185
    %2199 = vmatprep.subr.bf16.mxu0 0
    %2200 = vmatpush1.bf16.msra.mxu0 %v2184
    %2201 = vmatprep.subr.bf16.mxu0 0
    %2202 = vmatpush1.bf16.msra.mxu0 %v2183
    %2203 = vmatprep.subr.bf16.mxu0 0
    %2204 = vmatpush1.bf16.msra.mxu0 %v2182
    %2205 = vmatprep.subr.bf16.mxu0 0
    %2206 = vmatpush1.bf16.msra.mxu0 %v2181
    %2207 = vmatprep.subr.bf16.mxu0 0
    %2208 = vmatpush1.bf16.msra.mxu0 %v2180
    %2209 = vmatprep.subr.bf16.mxu0 0
    %2210 = vmatpush1.bf16.msra.mxu0 %v2179
    %2211 = vmatprep.subr.bf16.mxu0 0
    %2212 = vmatpush2.bf16.msra.mxu0 0
    %2213 = vmatprep.subr.bf16.mxu0 0
    %2214 = vmatpush2.bf16.msra.mxu0 0
    %2215 = vmatprep.subr.bf16.mxu0 0
    %2216 = vmatpush2.bf16.msra.mxu0 0
    %2217 = vmatprep.subr.bf16.mxu0 0
    %2218 = vmatpush2.bf16.msra.mxu0 0
    %2219 = vmatprep.subr.bf16.mxu0 0
    %2220 = vmatpush2.bf16.msra.mxu0 0
    %2221 = vmatprep.subr.bf16.mxu0 0
    %2222 = vmatpush2.bf16.msra.mxu0 0
    %2223 = vmatprep.subr.bf16.mxu0 0
    %2224 = vmatpush2.bf16.msra.mxu0 0
    %2225 = vmatprep.subr.bf16.mxu0 0
    %2226 = vmatpush2.bf16.msra.mxu0 0
    %2227 = vmatprep.mubr.bf16.mxu0 0
    %2228 = vmatmul.mubr.bf16.gmra.mxu0 %v2145
    %v2229 = vpop.f32.mrf.mxu0
    %v2230 = vadd.f32 0.0, %v2229
    %v2231 = vpop.f32.mrf.mxu0
    %v2232 = vpop.f32.mrf.mxu0
    %v2233 = vpop.f32.mrf.mxu0
    %2234 = vdwg.mxu0
    %v2235 = vadd.f32 %v1509, %v2230
    %v2236 = vld [vmem:[%s6] sm:$0xf]
    %v2237 = vld [vmem:[%s6 + $0x4] sm:$0xf]
    %v2238 = vld [vmem:[%s6 + $0x8] sm:$0xf]
    %v2239 = vld [vmem:[%s6 + $0xc] sm:$0xf]
    %v2240 = vld [vmem:[%s6 + $0x10] sm:$0xf]
    %v2241 = vld [vmem:[%s6 + $0x14] sm:$0xf]
    %v2242 = vld [vmem:[%s6 + $0x18] sm:$0xf]
    %v2243 = vld [vmem:[%s6 + $0x1c] sm:$0xf]
    %v2244 = vld [vmem:[%s6 + $0x20] sm:$0xf]
    %v2245 = vld [vmem:[%s6 + $0x24] sm:$0xf]
    %v2246 = vld [vmem:[%s6 + $0x28] sm:$0xf]
    %v2247 = vld [vmem:[%s6 + $0x2c] sm:$0xf]
    %v2248 = vld [vmem:[%s6 + $0x30] sm:$0xf]
    %v2249 = vld [vmem:[%s6 + $0x34] sm:$0xf]
    %v2250 = vld [vmem:[%s6 + $0x38] sm:$0xf]
    %v2251 = vld [vmem:[%s6 + $0x3c] sm:$0xf]
    %v2252 = vld [vmem:[%s6 + $0x40] sm:$0xf]
    %v2253 = vld [vmem:[%s6 + $0x44] sm:$0xf]
    %v2254 = vld [vmem:[%s6 + $0x48] sm:$0xf]
    %v2255 = vld [vmem:[%s6 + $0x4c] sm:$0xf]
    %v2257 = vunpack.c.l.s4 1983009808
    %v2258 = vunpack.c.0.s8 %v2257
    %v2259 = vlaneseq
    %v2260 = vshrl.u32 %v2259, 7
    %v2261 = vsub.s32 %v2258, %v2260
    %v2262 = vrot.slane %v882, %v2261
    %v2263 = vcombine.high %v2262, %v2262
    %v2265 = vunpack.c.l.s4 1983009808
    %v2266 = vunpack.c.0.s8 %v2265
    %v2267 = vlaneseq
    %v2268 = vshrl.u32 %v2267, 7
    %v2269 = vsub.s32 %v2266, %v2268
    %v2270 = vrot.slane %v883, %v2269
    %v2271 = vcombine.high %v2270, %v2270
    %vm2272 = vsmask.f32 1280
    %vm2273 = vsmask.f32 3336
    %vm2274 = vmor %vm2272, %vm2273
    %vm2275 = vsmask.f32 5392
    %vm2276 = vmor %vm2274, %vm2275
    %vm2277 = vsmask.f32 7448
    %vm2278 = vmor %vm2276, %vm2277
    %v2280 = vshrl.u32 %v2262, 16
    %v2282 = vrot.slane %v2280, 6
    %v2283 = vshll.u32 %v2262, 16
    %v2285 = vrot.slane %v2283, 7
    %v2286 = vor.u32 %v2282, %v2285
    %v2287 = vrot.slane %v2286, 2
    %v2289 = vshll.u32 %v2263, 16
    %v2291 = vrot.slane %v2289, 7
    %v2292 = vsel %vm2278, %v2287, %v2291
    %v2294 = vshrl.u32 %v2270, 16
    %v2296 = vrot.slane %v2294, 6
    %v2297 = vshll.u32 %v2270, 16
    %v2299 = vrot.slane %v2297, 7
    %v2300 = vor.u32 %v2296, %v2299
    %v2301 = vrot.slane %v2300, 2
    %v2303 = vshll.u32 %v2271, 16
    %v2305 = vrot.slane %v2303, 7
    %v2306 = vsel %vm2278, %v2301, %v2305
    %v2307 = vcombine.low %v2292, %v2306
    %v2309 = vunpack.c.l.s4 1983009808
    %v2310 = vunpack.c.0.s8 %v2309
    %v2311 = vlaneseq
    %v2312 = vshrl.u32 %v2311, 7
    %v2313 = vsub.s32 %v2310, %v2312
    %v2314 = vrot.slane %v2307, %v2313
    %v2319 = vunpack.c.l.b16 %v2240
    %v2320 = vunpack.c.l.b16 %v2241
    %v2321 = vunpack.c.l.b16 %v2242
    %v2322 = vunpack.c.l.b16 %v2243
    %v2323 = vpack.c.b16 %v2320, %v2319
    %v2324 = vpack.c.b16 %v2322, %v2321
    %v2328 = vsel %vm1062, %v2314, 0
    %2330 = vmatprep.subr.bf16.mxu0 0
    %2331 = vmatpush1.bf16.msra.mxu0 0
    %2332 = vmatprep.subr.bf16.mxu0 0
    %2333 = vmatpush1.bf16.msra.mxu0 0
    %2334 = vmatprep.subr.bf16.mxu0 0
    %2335 = vmatpush1.bf16.msra.mxu0 0
    %2336 = vmatprep.subr.bf16.mxu0 0
    %2337 = vmatpush1.bf16.msra.mxu0 0
    %2338 = vmatprep.subr.bf16.mxu0 0
    %2339 = vmatpush1.bf16.msra.mxu0 0
    %2340 = vmatprep.subr.bf16.mxu0 0
    %2341 = vmatpush1.bf16.msra.mxu0 0
    %2342 = vmatprep.subr.bf16.mxu0 0
    %2343 = vmatpush1.bf16.msra.mxu0 %v2324
    %2344 = vmatprep.subr.bf16.mxu0 0
    %2345 = vmatpush1.bf16.msra.mxu0 %v2323
    %2346 = vmatprep.subr.bf16.mxu0 0
    %2347 = vmatpush2.bf16.msra.mxu0 0
    %2348 = vmatprep.subr.bf16.mxu0 0
    %2349 = vmatpush2.bf16.msra.mxu0 0
    %2350 = vmatprep.subr.bf16.mxu0 0
    %2351 = vmatpush2.bf16.msra.mxu0 0
    %2352 = vmatprep.subr.bf16.mxu0 0
    %2353 = vmatpush2.bf16.msra.mxu0 0
    %2354 = vmatprep.subr.bf16.mxu0 0
    %2355 = vmatpush2.bf16.msra.mxu0 0
    %2356 = vmatprep.subr.bf16.mxu0 0
    %2357 = vmatpush2.bf16.msra.mxu0 0
    %2358 = vmatprep.subr.bf16.mxu0 0
    %2359 = vmatpush2.bf16.msra.mxu0 0
    %2360 = vmatprep.subr.bf16.mxu0 0
    %2361 = vmatpush2.bf16.msra.mxu0 0
    %2362 = vmatprep.mubr.bf16.mxu0 0
    %2363 = vmatmul.mubr.bf16.gmra.mxu0 %v2328
    %v2364 = vpop.f32.mrf.mxu0
    %v2365 = vadd.f32 0.0, %v2364
    %v2366 = vpop.f32.mrf.mxu0
    %v2367 = vpop.f32.mrf.mxu0
    %v2368 = vpop.f32.mrf.mxu0
    %2369 = vdwg.mxu0
    %v2370 = vcombine.low %v882, %v883
    %v2372 = vunpack.c.l.s4 1983009808
    %v2373 = vunpack.c.0.s8 %v2372
    %v2374 = vlaneseq
    %v2375 = vshrl.u32 %v2374, 7
    %v2376 = vsub.s32 %v2373, %v2375
    %v2377 = vrot.slane %v2370, %v2376
    %v2382 = vunpack.c.l.b16 %v2236
    %v2383 = vunpack.c.l.b16 %v2237
    %v2384 = vunpack.c.l.b16 %v2238
    %v2385 = vunpack.c.l.b16 %v2239
    %v2386 = vpack.c.b16 %v2383, %v2382
    %v2387 = vpack.c.b16 %v2385, %v2384
    %v2391 = vsel %vm1062, %v2377, 0
    %2393 = vmatprep.subr.bf16.mxu0 0
    %2394 = vmatpush1.bf16.msra.mxu0 0
    %2395 = vmatprep.subr.bf16.mxu0 0
    %2396 = vmatpush1.bf16.msra.mxu0 0
    %2397 = vmatprep.subr.bf16.mxu0 0
    %2398 = vmatpush1.bf16.msra.mxu0 0
    %2399 = vmatprep.subr.bf16.mxu0 0
    %2400 = vmatpush1.bf16.msra.mxu0 0
    %2401 = vmatprep.subr.bf16.mxu0 0
    %2402 = vmatpush1.bf16.msra.mxu0 0
    %2403 = vmatprep.subr.bf16.mxu0 0
    %2404 = vmatpush1.bf16.msra.mxu0 0
    %2405 = vmatprep.subr.bf16.mxu0 0
    %2406 = vmatpush1.bf16.msra.mxu0 %v2387
    %2407 = vmatprep.subr.bf16.mxu0 0
    %2408 = vmatpush1.bf16.msra.mxu0 %v2386
    %2409 = vmatprep.subr.bf16.mxu0 0
    %2410 = vmatpush2.bf16.msra.mxu0 0
    %2411 = vmatprep.subr.bf16.mxu0 0
    %2412 = vmatpush2.bf16.msra.mxu0 0
    %2413 = vmatprep.subr.bf16.mxu0 0
    %2414 = vmatpush2.bf16.msra.mxu0 0
    %2415 = vmatprep.subr.bf16.mxu0 0
    %2416 = vmatpush2.bf16.msra.mxu0 0
    %2417 = vmatprep.subr.bf16.mxu0 0
    %2418 = vmatpush2.bf16.msra.mxu0 0
    %2419 = vmatprep.subr.bf16.mxu0 0
    %2420 = vmatpush2.bf16.msra.mxu0 0
    %2421 = vmatprep.subr.bf16.mxu0 0
    %2422 = vmatpush2.bf16.msra.mxu0 0
    %2423 = vmatprep.subr.bf16.mxu0 0
    %2424 = vmatpush2.bf16.msra.mxu0 0
    %2425 = vmatprep.mubr.bf16.mxu0 0
    %2426 = vmatmul.mubr.bf16.gmra.mxu0 %v2391
    %v2427 = vpop.f32.mrf.mxu0
    %v2428 = vadd.f32 %v2365, %v2427
    %v2429 = vpop.f32.mrf.mxu0
    %v2430 = vpop.f32.mrf.mxu0
    %v2431 = vpop.f32.mrf.mxu0
    %2432 = vdwg.mxu0
    %vm2433 = vcmask 1040384
    %vm2434 = vcmask 1042434
    %vm2435 = vmor %vm2433, %vm2434
    %vm2436 = vcmask 1044484
    %vm2437 = vmor %vm2435, %vm2436
    %vm2438 = vcmask 1046534
    %vm2439 = vmor %vm2437, %vm2438
    %v2440 = vrot.slane %v2262, 7
    %v2441 = vrot.slane %v2440, 2
    %v2442 = vrot.slane %v2263, 7
    %v2443 = vsel %vm2439, %v2441, %v2442
    %v2444 = vrot.slane %v2270, 7
    %v2445 = vrot.slane %v2444, 2
    %v2446 = vrot.slane %v2271, 7
    %v2447 = vsel %vm2439, %v2445, %v2446
    %v2448 = vcombine.low %v2443, %v2447
    %v2450 = vunpack.c.l.s4 1983009808
    %v2451 = vunpack.c.0.s8 %v2450
    %v2452 = vlaneseq
    %v2453 = vshrl.u32 %v2452, 7
    %v2454 = vsub.s32 %v2451, %v2453
    %v2455 = vrot.slane %v2448, %v2454
    %v2460 = vunpack.c.l.b16 %v2244
    %v2461 = vunpack.c.l.b16 %v2245
    %v2462 = vunpack.c.l.b16 %v2246
    %v2463 = vunpack.c.l.b16 %v2247
    %v2464 = vpack.c.b16 %v2461, %v2460
    %v2465 = vpack.c.b16 %v2463, %v2462
    %v2469 = vsel %vm1062, %v2455, 0
    %2471 = vmatprep.subr.bf16.mxu0 0
    %2472 = vmatpush1.bf16.msra.mxu0 0
    %2473 = vmatprep.subr.bf16.mxu0 0
    %2474 = vmatpush1.bf16.msra.mxu0 0
    %2475 = vmatprep.subr.bf16.mxu0 0
    %2476 = vmatpush1.bf16.msra.mxu0 0
    %2477 = vmatprep.subr.bf16.mxu0 0
    %2478 = vmatpush1.bf16.msra.mxu0 0
    %2479 = vmatprep.subr.bf16.mxu0 0
    %2480 = vmatpush1.bf16.msra.mxu0 0
    %2481 = vmatprep.subr.bf16.mxu0 0
    %2482 = vmatpush1.bf16.msra.mxu0 0
    %2483 = vmatprep.subr.bf16.mxu0 0
    %2484 = vmatpush1.bf16.msra.mxu0 %v2465
    %2485 = vmatprep.subr.bf16.mxu0 0
    %2486 = vmatpush1.bf16.msra.mxu0 %v2464
    %2487 = vmatprep.subr.bf16.mxu0 0
    %2488 = vmatpush2.bf16.msra.mxu0 0
    %2489 = vmatprep.subr.bf16.mxu0 0
    %2490 = vmatpush2.bf16.msra.mxu0 0
    %2491 = vmatprep.subr.bf16.mxu0 0
    %2492 = vmatpush2.bf16.msra.mxu0 0
    %2493 = vmatprep.subr.bf16.mxu0 0
    %2494 = vmatpush2.bf16.msra.mxu0 0
    %2495 = vmatprep.subr.bf16.mxu0 0
    %2496 = vmatpush2.bf16.msra.mxu0 0
    %2497 = vmatprep.subr.bf16.mxu0 0
    %2498 = vmatpush2.bf16.msra.mxu0 0
    %2499 = vmatprep.subr.bf16.mxu0 0
    %2500 = vmatpush2.bf16.msra.mxu0 0
    %2501 = vmatprep.subr.bf16.mxu0 0
    %2502 = vmatpush2.bf16.msra.mxu0 0
    %2503 = vmatprep.mubr.bf16.mxu0 0
    %2504 = vmatmul.mubr.bf16.gmra.mxu0 %v2469
    %v2505 = vpop.f32.mrf.mxu0
    %v2506 = vadd.f32 0.0, %v2505
    %v2507 = vpop.f32.mrf.mxu0
    %v2508 = vpop.f32.mrf.mxu0
    %v2509 = vpop.f32.mrf.mxu0
    %2510 = vdwg.mxu0
    %v2511 = vadd.f32 %v2428, %v2506
    %vm2512 = vmor %vm945, %vm948
    %vm2513 = vmor %vm2512, %vm952
    %vm2514 = vmor %vm2513, %vm956
    %v2515 = vrot.slane %v2280, 7
    %v2516 = vrot.slane %v2515, 2
    %v2517 = vshrl.u32 %v2263, 16
    %v2519 = vrot.slane %v2517, 7
    %v2520 = vor.u32 %v2519, %v2289
    %v2521 = vsel %vm2514, %v2516, %v2520
    %v2522 = vrot.slane %v2294, 7
    %v2523 = vrot.slane %v2522, 2
    %v2524 = vshrl.u32 %v2271, 16
    %v2526 = vrot.slane %v2524, 7
    %v2527 = vor.u32 %v2526, %v2303
    %v2528 = vsel %vm2514, %v2523, %v2527
    %v2529 = vcombine.low %v2521, %v2528
    %v2531 = vunpack.c.l.s4 1983009808
    %v2532 = vunpack.c.0.s8 %v2531
    %v2533 = vlaneseq
    %v2534 = vshrl.u32 %v2533, 7
    %v2535 = vsub.s32 %v2532, %v2534
    %v2536 = vrot.slane %v2529, %v2535
    %v2541 = vunpack.c.l.b16 %v2248
    %v2542 = vunpack.c.l.b16 %v2249
    %v2543 = vunpack.c.l.b16 %v2250
    %v2544 = vunpack.c.l.b16 %v2251
    %v2545 = vpack.c.b16 %v2542, %v2541
    %v2546 = vpack.c.b16 %v2544, %v2543
    %v2550 = vsel %vm1062, %v2536, 0
    %2552 = vmatprep.subr.bf16.mxu0 0
    %2553 = vmatpush1.bf16.msra.mxu0 0
    %2554 = vmatprep.subr.bf16.mxu0 0
    %2555 = vmatpush1.bf16.msra.mxu0 0
    %2556 = vmatprep.subr.bf16.mxu0 0
    %2557 = vmatpush1.bf16.msra.mxu0 0
    %2558 = vmatprep.subr.bf16.mxu0 0
    %2559 = vmatpush1.bf16.msra.mxu0 0
    %2560 = vmatprep.subr.bf16.mxu0 0
    %2561 = vmatpush1.bf16.msra.mxu0 0
    %2562 = vmatprep.subr.bf16.mxu0 0
    %2563 = vmatpush1.bf16.msra.mxu0 0
    %2564 = vmatprep.subr.bf16.mxu0 0
    %2565 = vmatpush1.bf16.msra.mxu0 %v2546
    %2566 = vmatprep.subr.bf16.mxu0 0
    %2567 = vmatpush1.bf16.msra.mxu0 %v2545
    %2568 = vmatprep.subr.bf16.mxu0 0
    %2569 = vmatpush2.bf16.msra.mxu0 0
    %2570 = vmatprep.subr.bf16.mxu0 0
    %2571 = vmatpush2.bf16.msra.mxu0 0
    %2572 = vmatprep.subr.bf16.mxu0 0
    %2573 = vmatpush2.bf16.msra.mxu0 0
    %2574 = vmatprep.subr.bf16.mxu0 0
    %2575 = vmatpush2.bf16.msra.mxu0 0
    %2576 = vmatprep.subr.bf16.mxu0 0
    %2577 = vmatpush2.bf16.msra.mxu0 0
    %2578 = vmatprep.subr.bf16.mxu0 0
    %2579 = vmatpush2.bf16.msra.mxu0 0
    %2580 = vmatprep.subr.bf16.mxu0 0
    %2581 = vmatpush2.bf16.msra.mxu0 0
    %2582 = vmatprep.subr.bf16.mxu0 0
    %2583 = vmatpush2.bf16.msra.mxu0 0
    %2584 = vmatprep.mubr.bf16.mxu0 0
    %2585 = vmatmul.mubr.bf16.gmra.mxu0 %v2550
    %v2586 = vpop.f32.mrf.mxu0
    %v2587 = vadd.f32 0.0, %v2586
    %v2588 = vpop.f32.mrf.mxu0
    %v2589 = vpop.f32.mrf.mxu0
    %v2590 = vpop.f32.mrf.mxu0
    %2591 = vdwg.mxu0
    %v2592 = vadd.f32 %v2511, %v2587
    %v2593 = vcombine.low %v2263, %v2271
    %v2595 = vunpack.c.l.s4 1983009808
    %v2596 = vunpack.c.0.s8 %v2595
    %v2597 = vlaneseq
    %v2598 = vshrl.u32 %v2597, 7
    %v2599 = vsub.s32 %v2596, %v2598
    %v2600 = vrot.slane %v2593, %v2599
    %v2605 = vunpack.c.l.b16 %v2252
    %v2606 = vunpack.c.l.b16 %v2253
    %v2607 = vunpack.c.l.b16 %v2254
    %v2608 = vunpack.c.l.b16 %v2255
    %v2609 = vpack.c.b16 %v2606, %v2605
    %v2610 = vpack.c.b16 %v2608, %v2607
    %v2614 = vsel %vm1062, %v2600, 0
    %2616 = vmatprep.subr.bf16.mxu0 0
    %2617 = vmatpush1.bf16.msra.mxu0 0
    %2618 = vmatprep.subr.bf16.mxu0 0
    %2619 = vmatpush1.bf16.msra.mxu0 0
    %2620 = vmatprep.subr.bf16.mxu0 0
    %2621 = vmatpush1.bf16.msra.mxu0 0
    %2622 = vmatprep.subr.bf16.mxu0 0
    %2623 = vmatpush1.bf16.msra.mxu0 0
    %2624 = vmatprep.subr.bf16.mxu0 0
    %2625 = vmatpush1.bf16.msra.mxu0 0
    %2626 = vmatprep.subr.bf16.mxu0 0
    %2627 = vmatpush1.bf16.msra.mxu0 0
    %2628 = vmatprep.subr.bf16.mxu0 0
    %2629 = vmatpush1.bf16.msra.mxu0 %v2610
    %2630 = vmatprep.subr.bf16.mxu0 0
    %2631 = vmatpush1.bf16.msra.mxu0 %v2609
    %2632 = vmatprep.subr.bf16.mxu0 0
    %2633 = vmatpush2.bf16.msra.mxu0 0
    %2634 = vmatprep.subr.bf16.mxu0 0
    %2635 = vmatpush2.bf16.msra.mxu0 0
    %2636 = vmatprep.subr.bf16.mxu0 0
    %2637 = vmatpush2.bf16.msra.mxu0 0
    %2638 = vmatprep.subr.bf16.mxu0 0
    %2639 = vmatpush2.bf16.msra.mxu0 0
    %2640 = vmatprep.subr.bf16.mxu0 0
    %2641 = vmatpush2.bf16.msra.mxu0 0
    %2642 = vmatprep.subr.bf16.mxu0 0
    %2643 = vmatpush2.bf16.msra.mxu0 0
    %2644 = vmatprep.subr.bf16.mxu0 0
    %2645 = vmatpush2.bf16.msra.mxu0 0
    %2646 = vmatprep.subr.bf16.mxu0 0
    %2647 = vmatpush2.bf16.msra.mxu0 0
    %2648 = vmatprep.mubr.bf16.mxu0 0
    %2649 = vmatmul.mubr.bf16.gmra.mxu0 %v2614
    %v2650 = vpop.f32.mrf.mxu0
    %v2651 = vadd.f32 0.0, %v2650
    %v2652 = vpop.f32.mrf.mxu0
    %v2653 = vpop.f32.mrf.mxu0
    %v2654 = vpop.f32.mrf.mxu0
    %2655 = vdwg.mxu0
    %v2656 = vadd.f32 %v2592, %v2651
    %v2658 = vcombine.high %v2656, %v2656
    %vm2660 = vcmask 1043456
    %v2661 = vsel %vm2660, %v2656, -inf
    %v2662 = vrot.slane %v2661, 4
    %v2663 = vmax.f32 %v2661, %v2662
    %v2664 = vrot.slane %v2663, 2
    %v2665 = vmax.f32 %v2663, %v2664
    %v2666 = vrot.slane %v2665, 1
    %v2667 = vmax.f32 %v2665, %v2666
    %v2668 = vsel %vm2660, %v2658, -inf
    %v2669 = vrot.slane %v2668, 4
    %v2670 = vmax.f32 %v2668, %v2669
    %v2671 = vrot.slane %v2670, 2
    %v2672 = vmax.f32 %v2670, %v2671
    %v2673 = vrot.slane %v2672, 1
    %v2674 = vmax.f32 %v2672, %v2673
    %v2675 = vld [vmem:[%s7] sm:$0x1]
    %v2677 = vlaneseq
    %v2678 = vshrl.u32 %v2677, 7
    %v2679 = vsub.s32 0, %v2678
    %v2680 = vrot.slane %v2675, %v2679
    %v2682 = vadd.f32 %v2667, %v2680
    %v2683 = vadd.f32 %v2674, %v2680
    %v2684 = vmax.f32 %v2682, 0.0
    %v2685 = vmax.f32 %v2683, 0.0
    %v2686 = vpack.c.bf16 %v2684, %v2684
    %v2687 = vpack.c.bf16 %v2685, %v2685
    %v2688 = vld [vmem:[%s10] sm:$0xf]
    %v2689 = vld [vmem:[%s10 + $0x4] sm:$0xf]
    %v2690 = vld [vmem:[%s10 + $0x8] sm:$0xf]
    %v2691 = vld [vmem:[%s10 + $0xc] sm:$0xf]
    %v2692 = vld [vmem:[%s10 + $0x10] sm:$0xf]
    %v2693 = vld [vmem:[%s10 + $0x14] sm:$0xf]
    %v2694 = vld [vmem:[%s10 + $0x18] sm:$0xf]
    %v2695 = vld [vmem:[%s10 + $0x1c] sm:$0xf]
    %v2696 = vld [vmem:[%s10 + $0x20] sm:$0xf]
    %v2697 = vld [vmem:[%s10 + $0x24] sm:$0xf]
    %v2698 = vld [vmem:[%s10 + $0x28] sm:$0xf]
    %v2699 = vld [vmem:[%s10 + $0x2c] sm:$0xf]
    %v2700 = vld [vmem:[%s10 + $0x30] sm:$0xf]
    %v2701 = vld [vmem:[%s10 + $0x34] sm:$0xf]
    %v2702 = vld [vmem:[%s10 + $0x38] sm:$0xf]
    %v2703 = vld [vmem:[%s10 + $0x3c] sm:$0xf]
    %v2706 = vunpack.c.l.b16 %v2686
    %v2707 = vunpack.c.l.b16 %v2687
    %v2708 = vrot.slane %v2707, 7
    %v2709 = vsel %vm1411, %v2708, %v2706
    %v2710 = vpack.c.b16 %v2709, %v2709
    %v2728 = vunpack.c.l.b16 %v2688
    %v2729 = vunpack.c.l.b16 %v2689
    %v2730 = vunpack.c.l.b16 %v2690
    %v2731 = vunpack.c.l.b16 %v2691
    %v2732 = vunpack.c.l.b16 %v2692
    %v2733 = vunpack.c.l.b16 %v2693
    %v2734 = vunpack.c.l.b16 %v2694
    %v2735 = vunpack.c.l.b16 %v2695
    %v2736 = vunpack.c.l.b16 %v2696
    %v2737 = vunpack.c.l.b16 %v2697
    %v2738 = vunpack.c.l.b16 %v2698
    %v2739 = vunpack.c.l.b16 %v2699
    %v2740 = vunpack.c.l.b16 %v2700
    %v2741 = vunpack.c.l.b16 %v2701
    %v2742 = vunpack.c.l.b16 %v2702
    %v2743 = vunpack.c.l.b16 %v2703
    %v2744 = vpack.c.b16 %v2729, %v2728
    %v2745 = vpack.c.b16 %v2731, %v2730
    %v2746 = vpack.c.b16 %v2733, %v2732
    %v2747 = vpack.c.b16 %v2735, %v2734
    %v2748 = vpack.c.b16 %v2737, %v2736
    %v2749 = vpack.c.b16 %v2739, %v2738
    %v2750 = vpack.c.b16 %v2741, %v2740
    %v2751 = vpack.c.b16 %v2743, %v2742
    %2760 = vmatprep.subr.bf16.mxu0 0
    %2761 = vmatpush1.bf16.msra.mxu0 %v2751
    %2762 = vmatprep.subr.bf16.mxu0 0
    %2763 = vmatpush1.bf16.msra.mxu0 %v2750
    %2764 = vmatprep.subr.bf16.mxu0 0
    %2765 = vmatpush1.bf16.msra.mxu0 %v2749
    %2766 = vmatprep.subr.bf16.mxu0 0
    %2767 = vmatpush1.bf16.msra.mxu0 %v2748
    %2768 = vmatprep.subr.bf16.mxu0 0
    %2769 = vmatpush1.bf16.msra.mxu0 %v2747
    %2770 = vmatprep.subr.bf16.mxu0 0
    %2771 = vmatpush1.bf16.msra.mxu0 %v2746
    %2772 = vmatprep.subr.bf16.mxu0 0
    %2773 = vmatpush1.bf16.msra.mxu0 %v2745
    %2774 = vmatprep.subr.bf16.mxu0 0
    %2775 = vmatpush1.bf16.msra.mxu0 %v2744
    %2776 = vmatprep.subr.bf16.mxu0 0
    %2777 = vmatpush2.bf16.msra.mxu0 0
    %2778 = vmatprep.subr.bf16.mxu0 0
    %2779 = vmatpush2.bf16.msra.mxu0 0
    %2780 = vmatprep.subr.bf16.mxu0 0
    %2781 = vmatpush2.bf16.msra.mxu0 0
    %2782 = vmatprep.subr.bf16.mxu0 0
    %2783 = vmatpush2.bf16.msra.mxu0 0
    %2784 = vmatprep.subr.bf16.mxu0 0
    %2785 = vmatpush2.bf16.msra.mxu0 0
    %2786 = vmatprep.subr.bf16.mxu0 0
    %2787 = vmatpush2.bf16.msra.mxu0 0
    %2788 = vmatprep.subr.bf16.mxu0 0
    %2789 = vmatpush2.bf16.msra.mxu0 0
    %2790 = vmatprep.subr.bf16.mxu0 0
    %2791 = vmatpush2.bf16.msra.mxu0 0
    %2792 = vmatprep.mubr.bf16.mxu0 0
    %2793 = vmatmul.mubr.bf16.gmra.mxu0 %v2710
    %v2794 = vpop.f32.mrf.mxu0
    %v2795 = vadd.f32 0.0, %v2794
    %v2796 = vpop.f32.mrf.mxu0
    %v2797 = vpop.f32.mrf.mxu0
    %v2798 = vpop.f32.mrf.mxu0
    %2799 = vdwg.mxu0
    %v2800 = vadd.f32 %v2235, %v2795
    %2801 = vst [vmem:[#allocation6] sm:$0x3] %v2800
    // Predicated region
    $region522: #{textcnn_forward.1} parent=1 // pred_check
      _
    $region523: #{textcnn_forward.1} parent=1 // pred_check_branch
      %2803 = sbr.rel (0) target = $region525
    $region524: #{textcnn_forward.1} parent=1 // pred_region
      %s2805 = ssub.s32 32, 32
      %2806 = vsyncadd [#allocation7], %s2805
      %s2808 = sshll.u32 [#allocation6], 4
      %s2809 = int_to_ptr.vmem [resolvable:$true] %s2808
      %2811 = dma.vmem_to_hbm [thread:$0]  %s2809, 32, %s12, [#allocation7]
    $region525: #{textcnn_forward.1} parent=1 // pred_fallthru
      _
    // Predicated region
    $region526: #{textcnn_forward.1} parent=1 // pred_check
      _
    $region527: #{textcnn_forward.1} parent=1 // pred_check_branch
      %2813 = sbr.rel (0) target = $region529
    $region528: #{textcnn_forward.1} parent=1 // pred_region
      %2814 = dma.done [#allocation7], 32
    $region529: #{textcnn_forward.1} parent=1 // pred_fallthru
      _
    %2815 = vsyncpa [#allocation7], 1
  %2816 = vsyncmov [#allocation3]
  %s2817 = vpop.sfrf %2816
  %p2818 = scmp.eq.s32.totalorder %s2817, 0
  %p2819 = pneg %p2818
  %2821 = shalt.err (%p2819)
  %s2822 = scalar_lea.sflag [#allocation3], 1
  %2823 = vsyncmov %s2822
  %s2824 = vpop.sfrf %2823
  %p2825 = scmp.eq.s32.totalorder %s2824, 0
  %p2826 = pneg %p2825
  %2828 = shalt.err (%p2826)
  %s2829 = scalar_lea.sflag [#allocation3], 2
  %2830 = vsyncmov %s2829
  %s2831 = vpop.sfrf %2830
  %p2832 = scmp.eq.s32.totalorder %s2831, 0
  %p2833 = pneg %p2832
  %2835 = shalt.err (%p2833)
  %s2836 = scalar_lea.sflag [#allocation3], 3
  %2837 = vsyncmov %s2836
  %s2838 = vpop.sfrf %2837
  %p2839 = scmp.eq.s32.totalorder %s2838, 0
  %p2840 = pneg %p2839
  %2842 = shalt.err (%p2840)
  %s2843 = scalar_lea.sflag [#allocation3], 4
  %2844 = vsyncmov %s2843
  %s2845 = vpop.sfrf %2844
  %p2846 = scmp.eq.s32.totalorder %s2845, 0
  %p2847 = pneg %p2846
  %2849 = shalt.err (%p2847)
  %s2850 = scalar_lea.sflag [#allocation3], 5
  %2851 = vsyncmov %s2850
  %s2852 = vpop.sfrf %2851
  %p2853 = scmp.eq.s32.totalorder %s2852, 0
  %p2854 = pneg %p2853
  %2856 = shalt.err (%p2854)
  %s2857 = scalar_lea.sflag [#allocation3], 6
  %2858 = vsyncmov %s2857
  %s2859 = vpop.sfrf %2858
  %p2860 = scmp.eq.s32.totalorder %s2859, 0
  %p2861 = pneg %p2860
  %2863 = shalt.err (%p2861)
  %s2864 = scalar_lea.sflag [#allocation3], 7
  %2865 = vsyncmov %s2864
  %s2866 = vpop.sfrf %2865
  %p2867 = scmp.eq.s32.totalorder %s2866, 0
  %p2868 = pneg %p2867
  %2870 = shalt.err (%p2868)
  %s2871 = scalar_lea.sflag [#allocation3], 8
  %2872 = vsyncmov %s2871
  %s2873 = vpop.sfrf %2872
  %p2874 = scmp.eq.s32.totalorder %s2873, 0
  %p2875 = pneg %p2874
  %2877 = shalt.err (%p2875)
  %s2878 = scalar_lea.sflag [#allocation3], 9
  %2879 = vsyncmov %s2878
  %s2880 = vpop.sfrf %2879
  %p2881 = scmp.eq.s32.totalorder %s2880, 0
  %p2882 = pneg %p2881
  %2884 = shalt.err (%p2882)
  %s2885 = scalar_lea.sflag [#allocation3], 10
  %2886 = vsyncmov %s2885
  %s2887 = vpop.sfrf %2886
  %p2888 = scmp.eq.s32.totalorder %s2887, 0
  %p2889 = pneg %p2888
  %2891 = shalt.err (%p2889)
  %s2892 = scalar_lea.sflag [#allocation3], 11
  %2893 = vsyncmov %s2892
  %s2894 = vpop.sfrf %2893
  %p2895 = scmp.eq.s32.totalorder %s2894, 0
  %p2896 = pneg %p2895
  %2898 = shalt.err (%p2896)
  %s2899 = scalar_lea.sflag [#allocation3], 12
  %2900 = vsyncmov %s2899
  %s2901 = vpop.sfrf %2900
  %p2902 = scmp.eq.s32.totalorder %s2901, 0
  %p2903 = pneg %p2902
  %2905 = shalt.err (%p2903)
  %s2906 = scalar_lea.sflag [#allocation3], 13
  %2907 = vsyncmov %s2906
  %s2908 = vpop.sfrf %2907
  %p2909 = scmp.eq.s32.totalorder %s2908, 0
  %p2910 = pneg %p2909
  %2912 = shalt.err (%p2910)
  %s2913 = scalar_lea.sflag [#allocation3], 14
  %2914 = vsyncmov %s2913
  %s2915 = vpop.sfrf %2914
  %p2916 = scmp.eq.s32.totalorder %s2915, 0
  %p2917 = pneg %p2916
  %2919 = shalt.err (%p2917)
  %s2920 = scalar_lea.sflag [#allocation3], 15
  %2921 = vsyncmov %s2920
  %s2922 = vpop.sfrf %2921
  %p2923 = scmp.eq.s32.totalorder %s2922, 0
  %p2924 = pneg %p2923
  %2926 = shalt.err (%p2924)

</llo_original>
